<compile_context>
chip_gen: v7x
topology: tpu7x:2x2x1
jax: 0.10.0
libtpu: 0.0.40
codegen_flags: <defaults>
</compile_context>

<pallas_src>
import functools

import jax
import jax.numpy as jnp
from jax.experimental import pallas as pl
from jax.experimental.pallas import tpu as pltpu

# ----------------------------- configuration -----------------------------
FRAME_LEN  = 256            # samples per frame (L)  -- stand-in conv hop
NUM_FRAMES = 256            # F (time steps after "feature extraction")
AUDIO_LEN  = NUM_FRAMES * FRAME_LEN   # T = 65536 samples (~4 s @ 16 kHz)
HIDDEN     = 256            # D (scaled-down stand-in for wav2vec2's 768)
FF_DIM     = 512            # FFN inner dim (scaled-down stand-in for 3072)


def _ffn_gelu_dtype():
    """bf16 GELU on chips with a bf16 VPU/EUP path (v6e/v7x); f32 on v5e."""
    try:
        kind = jax.devices()[0].device_kind.lower()
    except Exception:
        return jnp.float32
    if "v5" in kind:          # v5e / v5 lite: no bf16 VPU/EUP
        return jnp.float32
    return jnp.bfloat16


# ------------------------------ Pallas kernel -----------------------------
def _encoder_pool_kernel(frames_ref, wfeat_ref, wff1_ref, wff2_ref, out_ref,
                         *, ff_gelu_dtype):
    # frames_ref: (F, L)   f32    full framed signal (cast to bf16 in-kernel)
    # wfeat_ref:  (L, D)   bf16   feature-extractor projection
    # wff1_ref:   (D, FF)  bf16   FFN up-projection
    # wff2_ref:   (FF, D)  bf16   FFN down-projection
    # out_ref:    (1, D)   f32    mean-pooled hidden state

    # --- feature extraction (stand-in for the conv front-end) : MXU bf16 ---
    x = frames_ref[...].astype(jnp.bfloat16)                       # (F, L)
    h = jnp.dot(x, wfeat_ref[...],
                preferred_element_type=jnp.float32)                # (F, D) f32
    h = jax.nn.gelu(h)

    # --- position-wise FFN "encoder" block with residual : MXU bf16 ---
    ff = jnp.dot(h.astype(jnp.bfloat16), wff1_ref[...],
                 preferred_element_type=jnp.float32)               # (F, FF)
    ff = jax.nn.gelu(ff.astype(ff_gelu_dtype)).astype(jnp.bfloat16)
    h = h + jnp.dot(ff, wff2_ref[...],
                    preferred_element_type=jnp.float32)            # (F, D)

    # --- mean pooling over time (single shot; no cross-step accumulator) ---
    out_ref[...] = jnp.sum(h, axis=0, keepdims=True) * (1.0 / float(NUM_FRAMES))


def _run_encoder_pool(frames, w_feat, w_ff1, w_ff2):
    F, L = frames.shape
    D = w_feat.shape[1]
    FF = w_ff1.shape[1]

    flops = 2 * F * L * D + 2 * F * D * FF + 2 * F * FF * D
    transcendentals = F * D + F * FF
    bytes_accessed = (F * L * 4            # frames f32 in
                      + L * D * 2 + D * FF * 2 + FF * D * 2   # bf16 weights
                      + D * 4)             # (1, D) f32 out

    kernel = functools.partial(_encoder_pool_kernel,
                               ff_gelu_dtype=_ffn_gelu_dtype())

    # Whole problem (<1 MiB) fits VMEM on every generation: no grid, one shot.
    return pl.pallas_call(
        kernel,
        out_shape=jax.ShapeDtypeStruct((1, D), jnp.float32),
        in_specs=[
            pl.BlockSpec(memory_space=pltpu.MemorySpace.VMEM),
            pl.BlockSpec(memory_space=pltpu.MemorySpace.VMEM),
            pl.BlockSpec(memory_space=pltpu.MemorySpace.VMEM),
            pl.BlockSpec(memory_space=pltpu.MemorySpace.VMEM),
        ],
        out_specs=pl.BlockSpec(memory_space=pltpu.MemorySpace.VMEM),
        cost_estimate=pl.CostEstimate(flops=flops,
                                      transcendentals=transcendentals,
                                      bytes_accessed=bytes_accessed),
    )(frames, w_feat, w_ff1, w_ff2)


# --------------------- module-init weights (built once) --------------------
@functools.cache
def _encoder_weights():
    """Deterministic stand-in weights, built once and cached (bf16)."""
    # DCT-II-like projection for the feature extractor.
    n = jnp.arange(FRAME_LEN, dtype=jnp.float32)[:, None]          # (L, 1)
    k = jnp.arange(HIDDEN, dtype=jnp.float32)[None, :]             # (1, D)
    w_feat = jnp.cos(jnp.pi * (n + 0.5) * k / FRAME_LEN) / 16.0    # (L, D)

    d = jnp.arange(HIDDEN, dtype=jnp.float32)[:, None]             # (D, 1)
    f = jnp.arange(FF_DIM, dtype=jnp.float32)[None, :]             # (1, FF)
    w_ff1 = jnp.cos(0.01 * (d + 1.0) * (f + 1.0)) / 16.0           # (D, FF)
    w_ff2 = jnp.sin(0.01 * (f.T + 1.0) * (d.T + 1.0)) / 22.6       # (FF, D)

    return (w_feat.astype(jnp.bfloat16),
            w_ff1.astype(jnp.bfloat16),
            w_ff2.astype(jnp.bfloat16))


# ------------------------------- forward -----------------------------------
@jax.jit
def wav2vec2_encoder_forward(audio, sr):
    """Mirrors Wav2Vec2_encoder.forward on an in-memory signal.

    audio: (AUDIO_LEN,) float32
    sr:    scalar float32 (unused downstream -- the original's concat/split
           glue is semantically dead, so we skip the HBM copy it implied)
    returns: (1, HIDDEN) float32  (== torch.mean(features, dim=1).view(1, -1))
    """
    del sr  # matches the original: sr never reaches the model

    # --- framing via reshape (no gather): stand-in for the strided convs ---
    frames = audio.astype(jnp.float32)[:NUM_FRAMES * FRAME_LEN]
    frames = frames.reshape(NUM_FRAMES, FRAME_LEN)      # stays f32; cast in-kernel

    # --- hot path: one Pallas kernel, single invocation ---
    w_feat, w_ff1, w_ff2 = _encoder_weights()
    pooled = _run_encoder_pool(frames, w_feat, w_ff1, w_ff2)   # (1, D) f32

    # mirrors `torch.mean(features, dim=1).view(1, -1)`
    return pooled.reshape(1, -1)


# ---------------------------------- main -----------------------------------
if __name__ == "__main__":
    key = jax.random.PRNGKey(0)
    audio = jax.random.normal(key, (AUDIO_LEN,), dtype=jnp.float32)
    sr = jnp.float32(16000.0)

    out = wav2vec2_encoder_forward(audio, sr)
    out = jax.block_until_ready(out)

    assert out.shape == (1, HIDDEN), out.shape
    assert out.dtype == jnp.float32, out.dtype
    assert bool(jnp.all(jnp.isfinite(out)))

    print("KERNEL_OK")
</pallas_src>

<mosaic_0001>
module attributes {stable_mosaic.version = 11 : i64} {
  func.func @_encoder_pool_kernel(%arg0: memref<256x256xf32, #tpu.memory_space<vmem>>, %arg1: memref<256x256xbf16, #tpu.memory_space<vmem>>, %arg2: memref<256x512xbf16, #tpu.memory_space<vmem>>, %arg3: memref<512x256xbf16, #tpu.memory_space<vmem>>, %arg4: memref<1x256xf32, #tpu.memory_space<vmem>>) attributes {dimension_semantics = [], scalar_prefetch = 0 : i64, scratch_operands = 0 : i64, tpu.core_type = #tpu.core_type<tc>} {
    %c0 = arith.constant 0 : index
    %c0_0 = arith.constant 0 : index
    %0 = vector.load %arg0[%c0, %c0_0] : memref<256x256xf32, #tpu.memory_space<vmem>>, vector<256x256xf32>
    %1 = arith.truncf %0 : vector<256x256xf32> to vector<256x256xbf16>
    %c0_1 = arith.constant 0 : index
    %c0_2 = arith.constant 0 : index
    %2 = vector.load %arg1[%c0_1, %c0_2] : memref<256x256xbf16, #tpu.memory_space<vmem>>, vector<256x256xbf16>
    %cst = arith.constant dense<0.000000e+00> : vector<256x256xf32>
    %3 = tpu.matmul %1, %2, %cst {dimension_numbers = #tpu.dot_dimension_numbers<[1], [0], [0], [1], [0, 0, 1, 1], [], []>} : vector<256x256xbf16>, vector<256x256xbf16>, vector<256x256xf32> -> vector<256x256xf32>
    %4 = arith.mulf %3, %3 : vector<256x256xf32>
    %5 = arith.mulf %3, %4 : vector<256x256xf32>
    %cst_3 = arith.constant 4.471500e-02 : f32
    %6 = vector.broadcast %cst_3 : f32 to vector<256x256xf32>
    %7 = arith.mulf %6, %5 : vector<256x256xf32>
    %8 = arith.addf %3, %7 : vector<256x256xf32>
    %cst_4 = arith.constant 0.797884583 : f32
    %9 = vector.broadcast %cst_4 : f32 to vector<256x256xf32>
    %10 = arith.mulf %9, %8 : vector<256x256xf32>
    %11 = math.tanh %10 : vector<256x256xf32>
    %cst_5 = arith.constant 1.000000e+00 : f32
    %12 = vector.broadcast %cst_5 : f32 to vector<256x256xf32>
    %13 = arith.addf %12, %11 : vector<256x256xf32>
    %cst_6 = arith.constant 5.000000e-01 : f32
    %14 = vector.broadcast %cst_6 : f32 to vector<256x256xf32>
    %15 = arith.mulf %14, %13 : vector<256x256xf32>
    %16 = arith.mulf %3, %15 : vector<256x256xf32>
    %17 = arith.truncf %16 : vector<256x256xf32> to vector<256x256xbf16>
    %c0_7 = arith.constant 0 : index
    %c0_8 = arith.constant 0 : index
    %18 = vector.load %arg2[%c0_7, %c0_8] : memref<256x512xbf16, #tpu.memory_space<vmem>>, vector<256x512xbf16>
    %cst_9 = arith.constant dense<0.000000e+00> : vector<256x512xf32>
    %19 = tpu.matmul %17, %18, %cst_9 {dimension_numbers = #tpu.dot_dimension_numbers<[1], [0], [0], [1], [0, 0, 1, 1], [], []>} : vector<256x256xbf16>, vector<256x512xbf16>, vector<256x512xf32> -> vector<256x512xf32>
    %20 = arith.truncf %19 : vector<256x512xf32> to vector<256x512xbf16>
    %21 = arith.mulf %20, %20 : vector<256x512xbf16>
    %22 = arith.mulf %20, %21 : vector<256x512xbf16>
    %cst_10 = arith.constant 4.467770e-02 : bf16
    %23 = vector.broadcast %cst_10 : bf16 to vector<256x512xbf16>
    %24 = arith.mulf %23, %22 : vector<256x512xbf16>
    %25 = arith.addf %20, %24 : vector<256x512xbf16>
    %cst_11 = arith.constant 7.968750e-01 : bf16
    %26 = vector.broadcast %cst_11 : bf16 to vector<256x512xbf16>
    %27 = arith.mulf %26, %25 : vector<256x512xbf16>
    %28 = math.tanh %27 : vector<256x512xbf16>
    %cst_12 = arith.constant 1.000000e+00 : bf16
    %29 = vector.broadcast %cst_12 : bf16 to vector<256x512xbf16>
    %30 = arith.addf %29, %28 : vector<256x512xbf16>
    %cst_13 = arith.constant 5.000000e-01 : bf16
    %31 = vector.broadcast %cst_13 : bf16 to vector<256x512xbf16>
    %32 = arith.mulf %31, %30 : vector<256x512xbf16>
    %33 = arith.mulf %20, %32 : vector<256x512xbf16>
    %c0_14 = arith.constant 0 : index
    %c0_15 = arith.constant 0 : index
    %34 = vector.load %arg3[%c0_14, %c0_15] : memref<512x256xbf16, #tpu.memory_space<vmem>>, vector<512x256xbf16>
    %cst_16 = arith.constant dense<0.000000e+00> : vector<256x256xf32>
    %35 = tpu.matmul %33, %34, %cst_16 {dimension_numbers = #tpu.dot_dimension_numbers<[1], [0], [0], [1], [0, 0, 1, 1], [], []>} : vector<256x512xbf16>, vector<512x256xbf16>, vector<256x256xf32> -> vector<256x256xf32>
    %36 = arith.addf %16, %35 : vector<256x256xf32>
    %cst_17 = arith.constant dense<0.000000e+00> : vector<256xf32>
    %37 = vector.multi_reduction <add>, %36, %cst_17 [0] : vector<256x256xf32> to vector<256xf32>
    %38 = vector.shape_cast %37 : vector<256xf32> to vector<1x256xf32>
    %cst_18 = arith.constant 3.906250e-03 : f32
    %39 = vector.broadcast %cst_18 : f32 to vector<1x256xf32>
    %40 = arith.mulf %38, %39 : vector<1x256xf32>
    %c0_19 = arith.constant 0 : index
    %c0_20 = arith.constant 0 : index
    %41 = vector.load %arg4[%c0_19, %c0_20] : memref<1x256xf32, #tpu.memory_space<vmem>>, vector<1x256xf32>
    tpu.vector_store %arg4[%c0_19, %c0_20], %40 {strides = array<i32>} : memref<1x256xf32, #tpu.memory_space<vmem>>, vector<1x256xf32>,
    return
  }
}

</mosaic_0001>

<llo_original>
// kernel: wav2vec2_encoder_forward.1
$region0: #{wav2vec2_encoder_forward.1}
  #allocation0 [shape = 'u32[]', space=smem, size = 0x4, offset = 0x4, fixed_abs, tag = 'smem constant byte address 0x4 - core index']
  #allocation1 [shape = 'u32[144,128]{1,0:T(1,128)}', space=vmem, size = 0x12000, scoped, tag = 'internal scratch']
  %s0 = inlined_call_operand.vmem [shape: f32[256,256], index: 0, kind: input, shape index: {}]
  %s1 = inlined_call_operand.vmem [shape: bf16[256,256], index: 1, kind: input, shape index: {}]
  %s2 = inlined_call_operand.vmem [shape: bf16[256,512], index: 2, kind: input, shape index: {}]
  %s3 = inlined_call_operand.vmem [shape: bf16[512,256], index: 3, kind: input, shape index: {}]
  %s4 = inlined_call_operand.hbm [shape: f32[1,256], index: 4, kind: output, shape index: {}]
  %s5 = sld [smem:[#allocation0]]
  $region26: #{wav2vec2_encoder_forward.1} parent=0
    _
  %s7 = ssub.s32 1, %s5
  %s8 = scalar_select 0, %s7, %s5
  $region1: #{wav2vec2_encoder_forward.1} parent=0
    #allocation2 [shape = 'u8[1024]{0}', space=vmem, size = 0x400, scoped, tag = 'output window, operand 0, single buffered']
    #allocation3 [shape = 's32[1]{0}', space=sflag, size = 0x4, scoped, tag = 'scoped memory for wav2vec2_encoder_forward.1']
    %9 = vsyncpa [#allocation3], 0
    // Predicated region
    $region2: #{wav2vec2_encoder_forward.1} parent=1 // pred_check
      _
    $region3: #{wav2vec2_encoder_forward.1} parent=1 // pred_check_branch
      %11 = sbr.rel (0) target = $region5
    $region4: #{wav2vec2_encoder_forward.1} parent=1 // pred_region
      _
    $region5: #{wav2vec2_encoder_forward.1} parent=1 // pred_fallthru
      _
    // Predicated region
    $region6: #{wav2vec2_encoder_forward.1} parent=1 // pred_check
      _
    $region7: #{wav2vec2_encoder_forward.1} parent=1 // pred_check_branch
      %13 = sbr.rel (0) target = $region9
    $region8: #{wav2vec2_encoder_forward.1} parent=1 // pred_region
      _
    $region9: #{wav2vec2_encoder_forward.1} parent=1 // pred_fallthru
      _
    // Predicated region
    $region10: #{wav2vec2_encoder_forward.1} parent=1 // pred_check
      _
    $region11: #{wav2vec2_encoder_forward.1} parent=1 // pred_check_branch
      %15 = sbr.rel (0) target = $region13
    $region12: #{wav2vec2_encoder_forward.1} parent=1 // pred_region
      _
    $region13: #{wav2vec2_encoder_forward.1} parent=1 // pred_fallthru
      _
    // Predicated region
    $region14: #{wav2vec2_encoder_forward.1} parent=1 // pred_check
      _
    $region15: #{wav2vec2_encoder_forward.1} parent=1 // pred_check_branch
      %17 = sbr.rel (0) target = $region17
    $region16: #{wav2vec2_encoder_forward.1} parent=1 // pred_region
      _
    $region17: #{wav2vec2_encoder_forward.1} parent=1 // pred_fallthru
      _
    %v22 = vld [vmem:[%s0] sm:$0xff]
    %v23 = vld [vmem:[%s0 + $0x8] sm:$0xff]
    %v24 = vld [vmem:[%s0 + $0x10] sm:$0xff]
    %v25 = vld [vmem:[%s0 + $0x18] sm:$0xff]
    %v26 = vld [vmem:[%s0 + $0x20] sm:$0xff]
    %v27 = vld [vmem:[%s0 + $0x28] sm:$0xff]
    %v28 = vld [vmem:[%s0 + $0x30] sm:$0xff]
    %v29 = vld [vmem:[%s0 + $0x38] sm:$0xff]
    %v30 = vld [vmem:[%s0 + $0x40] sm:$0xff]
    %v31 = vld [vmem:[%s0 + $0x48] sm:$0xff]
    %v32 = vld [vmem:[%s0 + $0x50] sm:$0xff]
    %v33 = vld [vmem:[%s0 + $0x58] sm:$0xff]
    %v34 = vld [vmem:[%s0 + $0x60] sm:$0xff]
    %v35 = vld [vmem:[%s0 + $0x68] sm:$0xff]
    %v36 = vld [vmem:[%s0 + $0x70] sm:$0xff]
    %v37 = vld [vmem:[%s0 + $0x78] sm:$0xff]
    %v38 = vld [vmem:[%s0 + $0x80] sm:$0xff]
    %v39 = vld [vmem:[%s0 + $0x88] sm:$0xff]
    %v40 = vld [vmem:[%s0 + $0x90] sm:$0xff]
    %v41 = vld [vmem:[%s0 + $0x98] sm:$0xff]
    %v42 = vld [vmem:[%s0 + $0xa0] sm:$0xff]
    %v43 = vld [vmem:[%s0 + $0xa8] sm:$0xff]
    %v44 = vld [vmem:[%s0 + $0xb0] sm:$0xff]
    %v45 = vld [vmem:[%s0 + $0xb8] sm:$0xff]
    %v46 = vld [vmem:[%s0 + $0xc0] sm:$0xff]
    %v47 = vld [vmem:[%s0 + $0xc8] sm:$0xff]
    %v48 = vld [vmem:[%s0 + $0xd0] sm:$0xff]
    %v49 = vld [vmem:[%s0 + $0xd8] sm:$0xff]
    %v50 = vld [vmem:[%s0 + $0xe0] sm:$0xff]
    %v51 = vld [vmem:[%s0 + $0xe8] sm:$0xff]
    %v52 = vld [vmem:[%s0 + $0xf0] sm:$0xff]
    %v53 = vld [vmem:[%s0 + $0xf8] sm:$0xff]
    %v54 = vld [vmem:[%s0 + $0x100] sm:$0xff]
    %v55 = vld [vmem:[%s0 + $0x108] sm:$0xff]
    %v56 = vld [vmem:[%s0 + $0x110] sm:$0xff]
    %v57 = vld [vmem:[%s0 + $0x118] sm:$0xff]
    %v58 = vld [vmem:[%s0 + $0x120] sm:$0xff]
    %v59 = vld [vmem:[%s0 + $0x128] sm:$0xff]
    %v60 = vld [vmem:[%s0 + $0x130] sm:$0xff]
    %v61 = vld [vmem:[%s0 + $0x138] sm:$0xff]
    %v62 = vld [vmem:[%s0 + $0x140] sm:$0xff]
    %v63 = vld [vmem:[%s0 + $0x148] sm:$0xff]
    %v64 = vld [vmem:[%s0 + $0x150] sm:$0xff]
    %v65 = vld [vmem:[%s0 + $0x158] sm:$0xff]
    %v66 = vld [vmem:[%s0 + $0x160] sm:$0xff]
    %v67 = vld [vmem:[%s0 + $0x168] sm:$0xff]
    %v68 = vld [vmem:[%s0 + $0x170] sm:$0xff]
    %v69 = vld [vmem:[%s0 + $0x178] sm:$0xff]
    %v70 = vld [vmem:[%s0 + $0x180] sm:$0xff]
    %v71 = vld [vmem:[%s0 + $0x188] sm:$0xff]
    %v72 = vld [vmem:[%s0 + $0x190] sm:$0xff]
    %v73 = vld [vmem:[%s0 + $0x198] sm:$0xff]
    %v74 = vld [vmem:[%s0 + $0x1a0] sm:$0xff]
    %v75 = vld [vmem:[%s0 + $0x1a8] sm:$0xff]
    %v76 = vld [vmem:[%s0 + $0x1b0] sm:$0xff]
    %v77 = vld [vmem:[%s0 + $0x1b8] sm:$0xff]
    %v78 = vld [vmem:[%s0 + $0x1c0] sm:$0xff]
    %v79 = vld [vmem:[%s0 + $0x1c8] sm:$0xff]
    %v80 = vld [vmem:[%s0 + $0x1d0] sm:$0xff]
    %v81 = vld [vmem:[%s0 + $0x1d8] sm:$0xff]
    %v82 = vld [vmem:[%s0 + $0x1e0] sm:$0xff]
    %v83 = vld [vmem:[%s0 + $0x1e8] sm:$0xff]
    %v84 = vld [vmem:[%s0 + $0x1f0] sm:$0xff]
    %v85 = vld [vmem:[%s0 + $0x1f8] sm:$0xff]
    %v86 = vpack.c.bf16 %v24, %v22
    %v87 = vpack.c.bf16 %v25, %v23
    %v88 = vpack.c.bf16 %v28, %v26
    %v89 = vpack.c.bf16 %v29, %v27
    %v90 = vpack.c.bf16 %v32, %v30
    %v91 = vpack.c.bf16 %v33, %v31
    %v92 = vpack.c.bf16 %v36, %v34
    %v93 = vpack.c.bf16 %v37, %v35
    %v94 = vpack.c.bf16 %v40, %v38
    %v95 = vpack.c.bf16 %v41, %v39
    %v96 = vpack.c.bf16 %v44, %v42
    %v97 = vpack.c.bf16 %v45, %v43
    %v98 = vpack.c.bf16 %v48, %v46
    %v99 = vpack.c.bf16 %v49, %v47
    %v100 = vpack.c.bf16 %v52, %v50
    %v101 = vpack.c.bf16 %v53, %v51
    %v102 = vpack.c.bf16 %v56, %v54
    %v103 = vpack.c.bf16 %v57, %v55
    %v104 = vpack.c.bf16 %v60, %v58
    %v105 = vpack.c.bf16 %v61, %v59
    %v106 = vpack.c.bf16 %v64, %v62
    %v107 = vpack.c.bf16 %v65, %v63
    %v108 = vpack.c.bf16 %v68, %v66
    %v109 = vpack.c.bf16 %v69, %v67
    %v110 = vpack.c.bf16 %v72, %v70
    %v111 = vpack.c.bf16 %v73, %v71
    %v112 = vpack.c.bf16 %v76, %v74
    %v113 = vpack.c.bf16 %v77, %v75
    %v114 = vpack.c.bf16 %v80, %v78
    %v115 = vpack.c.bf16 %v81, %v79
    %v116 = vpack.c.bf16 %v84, %v82
    %v117 = vpack.c.bf16 %v85, %v83
    %v118 = vld [vmem:[%s1] sm:$0xff]
    %v119 = vld [vmem:[%s1 + $0x8] sm:$0xff]
    %v120 = vld [vmem:[%s1 + $0x10] sm:$0xff]
    %v121 = vld [vmem:[%s1 + $0x18] sm:$0xff]
    %v122 = vld [vmem:[%s1 + $0x20] sm:$0xff]
    %v123 = vld [vmem:[%s1 + $0x28] sm:$0xff]
    %v124 = vld [vmem:[%s1 + $0x30] sm:$0xff]
    %v125 = vld [vmem:[%s1 + $0x38] sm:$0xff]
    %v126 = vld [vmem:[%s1 + $0x40] sm:$0xff]
    %v127 = vld [vmem:[%s1 + $0x48] sm:$0xff]
    %v128 = vld [vmem:[%s1 + $0x50] sm:$0xff]
    %v129 = vld [vmem:[%s1 + $0x58] sm:$0xff]
    %v130 = vld [vmem:[%s1 + $0x60] sm:$0xff]
    %v131 = vld [vmem:[%s1 + $0x68] sm:$0xff]
    %v132 = vld [vmem:[%s1 + $0x70] sm:$0xff]
    %v133 = vld [vmem:[%s1 + $0x78] sm:$0xff]
    %v134 = vld [vmem:[%s1 + $0x80] sm:$0xff]
    %v135 = vld [vmem:[%s1 + $0x88] sm:$0xff]
    %v136 = vld [vmem:[%s1 + $0x90] sm:$0xff]
    %v137 = vld [vmem:[%s1 + $0x98] sm:$0xff]
    %v138 = vld [vmem:[%s1 + $0xa0] sm:$0xff]
    %v139 = vld [vmem:[%s1 + $0xa8] sm:$0xff]
    %v140 = vld [vmem:[%s1 + $0xb0] sm:$0xff]
    %v141 = vld [vmem:[%s1 + $0xb8] sm:$0xff]
    %v142 = vld [vmem:[%s1 + $0xc0] sm:$0xff]
    %v143 = vld [vmem:[%s1 + $0xc8] sm:$0xff]
    %v144 = vld [vmem:[%s1 + $0xd0] sm:$0xff]
    %v145 = vld [vmem:[%s1 + $0xd8] sm:$0xff]
    %v146 = vld [vmem:[%s1 + $0xe0] sm:$0xff]
    %v147 = vld [vmem:[%s1 + $0xe8] sm:$0xff]
    %v148 = vld [vmem:[%s1 + $0xf0] sm:$0xff]
    %v149 = vld [vmem:[%s1 + $0xf8] sm:$0xff]
    %v182 = vunpack.c.l.b16 %v118
    %v183 = vunpack.c.h.b16 %v118
    %v184 = vunpack.c.l.b16 %v119
    %v185 = vunpack.c.h.b16 %v119
    %v186 = vunpack.c.l.b16 %v120
    %v187 = vunpack.c.h.b16 %v120
    %v188 = vunpack.c.l.b16 %v121
    %v189 = vunpack.c.h.b16 %v121
    %v190 = vunpack.c.l.b16 %v122
    %v191 = vunpack.c.h.b16 %v122
    %v192 = vunpack.c.l.b16 %v123
    %v193 = vunpack.c.h.b16 %v123
    %v194 = vunpack.c.l.b16 %v124
    %v195 = vunpack.c.h.b16 %v124
    %v196 = vunpack.c.l.b16 %v125
    %v197 = vunpack.c.h.b16 %v125
    %v198 = vunpack.c.l.b16 %v126
    %v199 = vunpack.c.h.b16 %v126
    %v200 = vunpack.c.l.b16 %v127
    %v201 = vunpack.c.h.b16 %v127
    %v202 = vunpack.c.l.b16 %v128
    %v203 = vunpack.c.h.b16 %v128
    %v204 = vunpack.c.l.b16 %v129
    %v205 = vunpack.c.h.b16 %v129
    %v206 = vunpack.c.l.b16 %v130
    %v207 = vunpack.c.h.b16 %v130
    %v208 = vunpack.c.l.b16 %v131
    %v209 = vunpack.c.h.b16 %v131
    %v210 = vunpack.c.l.b16 %v132
    %v211 = vunpack.c.h.b16 %v132
    %v212 = vunpack.c.l.b16 %v133
    %v213 = vunpack.c.h.b16 %v133
    %v214 = vunpack.c.l.b16 %v134
    %v215 = vunpack.c.h.b16 %v134
    %v216 = vunpack.c.l.b16 %v135
    %v217 = vunpack.c.h.b16 %v135
    %v218 = vunpack.c.l.b16 %v136
    %v219 = vunpack.c.h.b16 %v136
    %v220 = vunpack.c.l.b16 %v137
    %v221 = vunpack.c.h.b16 %v137
    %v222 = vunpack.c.l.b16 %v138
    %v223 = vunpack.c.h.b16 %v138
    %v224 = vunpack.c.l.b16 %v139
    %v225 = vunpack.c.h.b16 %v139
    %v226 = vunpack.c.l.b16 %v140
    %v227 = vunpack.c.h.b16 %v140
    %v228 = vunpack.c.l.b16 %v141
    %v229 = vunpack.c.h.b16 %v141
    %v230 = vunpack.c.l.b16 %v142
    %v231 = vunpack.c.h.b16 %v142
    %v232 = vunpack.c.l.b16 %v143
    %v233 = vunpack.c.h.b16 %v143
    %v234 = vunpack.c.l.b16 %v144
    %v235 = vunpack.c.h.b16 %v144
    %v236 = vunpack.c.l.b16 %v145
    %v237 = vunpack.c.h.b16 %v145
    %v238 = vunpack.c.l.b16 %v146
    %v239 = vunpack.c.h.b16 %v146
    %v240 = vunpack.c.l.b16 %v147
    %v241 = vunpack.c.h.b16 %v147
    %v242 = vunpack.c.l.b16 %v148
    %v243 = vunpack.c.h.b16 %v148
    %v244 = vunpack.c.l.b16 %v149
    %v245 = vunpack.c.h.b16 %v149
    %v246 = vpack.c.b16 %v184, %v182
    %v247 = vpack.c.b16 %v185, %v183
    %v248 = vpack.c.b16 %v188, %v186
    %v249 = vpack.c.b16 %v189, %v187
    %v250 = vpack.c.b16 %v192, %v190
    %v251 = vpack.c.b16 %v193, %v191
    %v252 = vpack.c.b16 %v196, %v194
    %v253 = vpack.c.b16 %v197, %v195
    %v254 = vpack.c.b16 %v200, %v198
    %v255 = vpack.c.b16 %v201, %v199
    %v256 = vpack.c.b16 %v204, %v202
    %v257 = vpack.c.b16 %v205, %v203
    %v258 = vpack.c.b16 %v208, %v206
    %v259 = vpack.c.b16 %v209, %v207
    %v260 = vpack.c.b16 %v212, %v210
    %v261 = vpack.c.b16 %v213, %v211
    %v262 = vpack.c.b16 %v216, %v214
    %v263 = vpack.c.b16 %v217, %v215
    %v264 = vpack.c.b16 %v220, %v218
    %v265 = vpack.c.b16 %v221, %v219
    %v266 = vpack.c.b16 %v224, %v222
    %v267 = vpack.c.b16 %v225, %v223
    %v268 = vpack.c.b16 %v228, %v226
    %v269 = vpack.c.b16 %v229, %v227
    %v270 = vpack.c.b16 %v232, %v230
    %v271 = vpack.c.b16 %v233, %v231
    %v272 = vpack.c.b16 %v236, %v234
    %v273 = vpack.c.b16 %v237, %v235
    %v274 = vpack.c.b16 %v240, %v238
    %v275 = vpack.c.b16 %v241, %v239
    %v276 = vpack.c.b16 %v244, %v242
    %v277 = vpack.c.b16 %v245, %v243
    %310 = vmatprep.subr.bf16.mxu0 %v247
    %311 = vmatpush1.bf16.msra.mxu0 %v246
    %312 = vmatprep.subr.bf16.mxu0 %v249
    %313 = vmatpush1.bf16.msra.mxu0 %v248
    %314 = vmatprep.subr.bf16.mxu0 %v251
    %315 = vmatpush1.bf16.msra.mxu0 %v250
    %316 = vmatprep.subr.bf16.mxu0 %v253
    %317 = vmatpush1.bf16.msra.mxu0 %v252
    %318 = vmatprep.subr.bf16.mxu0 %v255
    %319 = vmatpush1.bf16.msra.mxu0 %v254
    %320 = vmatprep.subr.bf16.mxu0 %v257
    %321 = vmatpush1.bf16.msra.mxu0 %v256
    %322 = vmatprep.subr.bf16.mxu0 %v259
    %323 = vmatpush1.bf16.msra.mxu0 %v258
    %324 = vmatprep.subr.bf16.mxu0 %v261
    %325 = vmatpush1.bf16.msra.mxu0 %v260
    %326 = vmatprep.subr.bf16.mxu0 %v263
    %327 = vmatpush1.bf16.msra.mxu0 %v262
    %328 = vmatprep.subr.bf16.mxu0 %v265
    %329 = vmatpush1.bf16.msra.mxu0 %v264
    %330 = vmatprep.subr.bf16.mxu0 %v267
    %331 = vmatpush1.bf16.msra.mxu0 %v266
    %332 = vmatprep.subr.bf16.mxu0 %v269
    %333 = vmatpush1.bf16.msra.mxu0 %v268
    %334 = vmatprep.subr.bf16.mxu0 %v271
    %335 = vmatpush1.bf16.msra.mxu0 %v270
    %336 = vmatprep.subr.bf16.mxu0 %v273
    %337 = vmatpush1.bf16.msra.mxu0 %v272
    %338 = vmatprep.subr.bf16.mxu0 %v275
    %339 = vmatpush1.bf16.msra.mxu0 %v274
    %340 = vmatprep.subr.bf16.mxu0 %v277
    %341 = vmatpush1.bf16.msra.mxu0 %v276
    %342 = vmatprep.mubr.bf16.mxu0 %v87
    %343 = vmatmul.mubr.bf16.gmra.mrb[0].mxu0 %v86
    %v344 = vpop.f32.mrb[0].mxu0
    %v345 = vadd.f32 0.0, %v344
    %v346 = vpop.f32.mrb[0].mxu0
    %v347 = vadd.f32 0.0, %v346
    %v348 = vpop.f32.mrb[0].mxu0
    %v349 = vadd.f32 0.0, %v348
    %v350 = vpop.f32.mrb[0].mxu0
    %v351 = vadd.f32 0.0, %v350
    %352 = vmatprep.mubr.bf16.mxu0 %v89
    %353 = vmatmul.mubr.bf16.gmra.mrb[0].mxu0 %v88
    %v354 = vpop.f32.mrb[0].mxu0
    %v355 = vadd.f32 0.0, %v354
    %v356 = vpop.f32.mrb[0].mxu0
    %v357 = vadd.f32 0.0, %v356
    %v358 = vpop.f32.mrb[0].mxu0
    %v359 = vadd.f32 0.0, %v358
    %v360 = vpop.f32.mrb[0].mxu0
    %v361 = vadd.f32 0.0, %v360
    %362 = vmatprep.mubr.bf16.mxu0 %v91
    %363 = vmatmul.mubr.bf16.gmra.mrb[0].mxu0 %v90
    %v364 = vpop.f32.mrb[0].mxu0
    %v365 = vadd.f32 0.0, %v364
    %v366 = vpop.f32.mrb[0].mxu0
    %v367 = vadd.f32 0.0, %v366
    %v368 = vpop.f32.mrb[0].mxu0
    %v369 = vadd.f32 0.0, %v368
    %v370 = vpop.f32.mrb[0].mxu0
    %v371 = vadd.f32 0.0, %v370
    %372 = vmatprep.mubr.bf16.mxu0 %v93
    %373 = vmatmul.mubr.bf16.gmra.mrb[0].mxu0 %v92
    %v374 = vpop.f32.mrb[0].mxu0
    %v375 = vadd.f32 0.0, %v374
    %v376 = vpop.f32.mrb[0].mxu0
    %v377 = vadd.f32 0.0, %v376
    %v378 = vpop.f32.mrb[0].mxu0
    %v379 = vadd.f32 0.0, %v378
    %v380 = vpop.f32.mrb[0].mxu0
    %v381 = vadd.f32 0.0, %v380
    %382 = vmatprep.mubr.bf16.mxu0 %v95
    %383 = vmatmul.mubr.bf16.gmra.mrb[0].mxu0 %v94
    %v384 = vpop.f32.mrb[0].mxu0
    %v385 = vadd.f32 0.0, %v384
    %v386 = vpop.f32.mrb[0].mxu0
    %v387 = vadd.f32 0.0, %v386
    %v388 = vpop.f32.mrb[0].mxu0
    %v389 = vadd.f32 0.0, %v388
    %v390 = vpop.f32.mrb[0].mxu0
    %v391 = vadd.f32 0.0, %v390
    %392 = vmatprep.mubr.bf16.mxu0 %v97
    %393 = vmatmul.mubr.bf16.gmra.mrb[0].mxu0 %v96
    %v394 = vpop.f32.mrb[0].mxu0
    %v395 = vadd.f32 0.0, %v394
    %v396 = vpop.f32.mrb[0].mxu0
    %v397 = vadd.f32 0.0, %v396
    %v398 = vpop.f32.mrb[0].mxu0
    %v399 = vadd.f32 0.0, %v398
    %v400 = vpop.f32.mrb[0].mxu0
    %v401 = vadd.f32 0.0, %v400
    %402 = vmatprep.mubr.bf16.mxu0 %v99
    %403 = vmatmul.mubr.bf16.gmra.mrb[0].mxu0 %v98
    %v404 = vpop.f32.mrb[0].mxu0
    %v405 = vadd.f32 0.0, %v404
    %v406 = vpop.f32.mrb[0].mxu0
    %v407 = vadd.f32 0.0, %v406
    %v408 = vpop.f32.mrb[0].mxu0
    %v409 = vadd.f32 0.0, %v408
    %v410 = vpop.f32.mrb[0].mxu0
    %v411 = vadd.f32 0.0, %v410
    %412 = vmatprep.mubr.bf16.mxu0 %v101
    %413 = vmatmul.mubr.bf16.gmra.mrb[0].mxu0 %v100
    %v414 = vpop.f32.mrb[0].mxu0
    %v415 = vadd.f32 0.0, %v414
    %v416 = vpop.f32.mrb[0].mxu0
    %v417 = vadd.f32 0.0, %v416
    %v418 = vpop.f32.mrb[0].mxu0
    %v419 = vadd.f32 0.0, %v418
    %v420 = vpop.f32.mrb[0].mxu0
    %v421 = vadd.f32 0.0, %v420
    %422 = vmatprep.mubr.bf16.mxu0 %v103
    %423 = vmatmul.mubr.bf16.gmra.mrb[0].mxu0 %v102
    %v424 = vpop.f32.mrb[0].mxu0
    %v425 = vadd.f32 0.0, %v424
    %v426 = vpop.f32.mrb[0].mxu0
    %v427 = vadd.f32 0.0, %v426
    %v428 = vpop.f32.mrb[0].mxu0
    %v429 = vadd.f32 0.0, %v428
    %v430 = vpop.f32.mrb[0].mxu0
    %v431 = vadd.f32 0.0, %v430
    %432 = vmatprep.mubr.bf16.mxu0 %v105
    %433 = vmatmul.mubr.bf16.gmra.mrb[0].mxu0 %v104
    %v434 = vpop.f32.mrb[0].mxu0
    %v435 = vadd.f32 0.0, %v434
    %v436 = vpop.f32.mrb[0].mxu0
    %v437 = vadd.f32 0.0, %v436
    %v438 = vpop.f32.mrb[0].mxu0
    %v439 = vadd.f32 0.0, %v438
    %v440 = vpop.f32.mrb[0].mxu0
    %v441 = vadd.f32 0.0, %v440
    %442 = vmatprep.mubr.bf16.mxu0 %v107
    %443 = vmatmul.mubr.bf16.gmra.mrb[0].mxu0 %v106
    %v444 = vpop.f32.mrb[0].mxu0
    %v445 = vadd.f32 0.0, %v444
    %v446 = vpop.f32.mrb[0].mxu0
    %v447 = vadd.f32 0.0, %v446
    %v448 = vpop.f32.mrb[0].mxu0
    %v449 = vadd.f32 0.0, %v448
    %v450 = vpop.f32.mrb[0].mxu0
    %v451 = vadd.f32 0.0, %v450
    %452 = vmatprep.mubr.bf16.mxu0 %v109
    %453 = vmatmul.mubr.bf16.gmra.mrb[0].mxu0 %v108
    %v454 = vpop.f32.mrb[0].mxu0
    %v455 = vadd.f32 0.0, %v454
    %v456 = vpop.f32.mrb[0].mxu0
    %v457 = vadd.f32 0.0, %v456
    %v458 = vpop.f32.mrb[0].mxu0
    %v459 = vadd.f32 0.0, %v458
    %v460 = vpop.f32.mrb[0].mxu0
    %v461 = vadd.f32 0.0, %v460
    %462 = vmatprep.mubr.bf16.mxu0 %v111
    %463 = vmatmul.mubr.bf16.gmra.mrb[0].mxu0 %v110
    %v464 = vpop.f32.mrb[0].mxu0
    %v465 = vadd.f32 0.0, %v464
    %v466 = vpop.f32.mrb[0].mxu0
    %v467 = vadd.f32 0.0, %v466
    %v468 = vpop.f32.mrb[0].mxu0
    %v469 = vadd.f32 0.0, %v468
    %v470 = vpop.f32.mrb[0].mxu0
    %v471 = vadd.f32 0.0, %v470
    %472 = vmatprep.mubr.bf16.mxu0 %v113
    %473 = vmatmul.mubr.bf16.gmra.mrb[0].mxu0 %v112
    %v474 = vpop.f32.mrb[0].mxu0
    %v475 = vadd.f32 0.0, %v474
    %v476 = vpop.f32.mrb[0].mxu0
    %v477 = vadd.f32 0.0, %v476
    %v478 = vpop.f32.mrb[0].mxu0
    %v479 = vadd.f32 0.0, %v478
    %v480 = vpop.f32.mrb[0].mxu0
    %v481 = vadd.f32 0.0, %v480
    %482 = vmatprep.mubr.bf16.mxu0 %v115
    %483 = vmatmul.mubr.bf16.gmra.mrb[0].mxu0 %v114
    %v484 = vpop.f32.mrb[0].mxu0
    %v485 = vadd.f32 0.0, %v484
    %v486 = vpop.f32.mrb[0].mxu0
    %v487 = vadd.f32 0.0, %v486
    %v488 = vpop.f32.mrb[0].mxu0
    %v489 = vadd.f32 0.0, %v488
    %v490 = vpop.f32.mrb[0].mxu0
    %v491 = vadd.f32 0.0, %v490
    %492 = vmatprep.mubr.bf16.mxu0 %v117
    %493 = vmatmul.mubr.bf16.gmra.mrb[0].mxu0 %v116
    %v494 = vpop.f32.mrb[0].mxu0
    %v495 = vadd.f32 0.0, %v494
    %v496 = vpop.f32.mrb[0].mxu0
    %v497 = vadd.f32 0.0, %v496
    %v498 = vpop.f32.mrb[0].mxu0
    %v499 = vadd.f32 0.0, %v498
    %v500 = vpop.f32.mrb[0].mxu0
    %v501 = vadd.f32 0.0, %v500
    %502 = vdwg.mxu0
    %v503 = vmul.f32 %v345, %v345
    %v504 = vmul.f32 %v347, %v347
    %v505 = vmul.f32 %v349, %v349
    %v506 = vmul.f32 %v351, %v351
    %v507 = vmul.f32 %v355, %v355
    %v508 = vmul.f32 %v357, %v357
    %v509 = vmul.f32 %v359, %v359
    %v510 = vmul.f32 %v361, %v361
    %v511 = vmul.f32 %v365, %v365
    %v512 = vmul.f32 %v367, %v367
    %v513 = vmul.f32 %v369, %v369
    %v514 = vmul.f32 %v371, %v371
    %v515 = vmul.f32 %v375, %v375
    %v516 = vmul.f32 %v377, %v377
    %v517 = vmul.f32 %v379, %v379
    %v518 = vmul.f32 %v381, %v381
    %v519 = vmul.f32 %v385, %v385
    %v520 = vmul.f32 %v387, %v387
    %v521 = vmul.f32 %v389, %v389
    %v522 = vmul.f32 %v391, %v391
    %v523 = vmul.f32 %v395, %v395
    %v524 = vmul.f32 %v397, %v397
    %v525 = vmul.f32 %v399, %v399
    %v526 = vmul.f32 %v401, %v401
    %v527 = vmul.f32 %v405, %v405
    %v528 = vmul.f32 %v407, %v407
    %v529 = vmul.f32 %v409, %v409
    %v530 = vmul.f32 %v411, %v411
    %v531 = vmul.f32 %v415, %v415
    %v532 = vmul.f32 %v417, %v417
    %v533 = vmul.f32 %v419, %v419
    %v534 = vmul.f32 %v421, %v421
    %v535 = vmul.f32 %v425, %v425
    %v536 = vmul.f32 %v427, %v427
    %v537 = vmul.f32 %v429, %v429
    %v538 = vmul.f32 %v431, %v431
    %v539 = vmul.f32 %v435, %v435
    %v540 = vmul.f32 %v437, %v437
    %v541 = vmul.f32 %v439, %v439
    %v542 = vmul.f32 %v441, %v441
    %v543 = vmul.f32 %v445, %v445
    %v544 = vmul.f32 %v447, %v447
    %v545 = vmul.f32 %v449, %v449
    %v546 = vmul.f32 %v451, %v451
    %v547 = vmul.f32 %v455, %v455
    %v548 = vmul.f32 %v457, %v457
    %v549 = vmul.f32 %v459, %v459
    %v550 = vmul.f32 %v461, %v461
    %v551 = vmul.f32 %v465, %v465
    %v552 = vmul.f32 %v467, %v467
    %v553 = vmul.f32 %v469, %v469
    %v554 = vmul.f32 %v471, %v471
    %v555 = vmul.f32 %v475, %v475
    %v556 = vmul.f32 %v477, %v477
    %v557 = vmul.f32 %v479, %v479
    %v558 = vmul.f32 %v481, %v481
    %v559 = vmul.f32 %v485, %v485
    %v560 = vmul.f32 %v487, %v487
    %v561 = vmul.f32 %v489, %v489
    %v562 = vmul.f32 %v491, %v491
    %v563 = vmul.f32 %v495, %v495
    %v564 = vmul.f32 %v497, %v497
    %v565 = vmul.f32 %v499, %v499
    %v566 = vmul.f32 %v501, %v501
    %v567 = vmul.f32 %v345, %v503
    %v568 = vmul.f32 %v347, %v504
    %v569 = vmul.f32 %v349, %v505
    %v570 = vmul.f32 %v351, %v506
    %v571 = vmul.f32 %v355, %v507
    %v572 = vmul.f32 %v357, %v508
    %v573 = vmul.f32 %v359, %v509
    %v574 = vmul.f32 %v361, %v510
    %v575 = vmul.f32 %v365, %v511
    %v576 = vmul.f32 %v367, %v512
    %v577 = vmul.f32 %v369, %v513
    %v578 = vmul.f32 %v371, %v514
    %v579 = vmul.f32 %v375, %v515
    %v580 = vmul.f32 %v377, %v516
    %v581 = vmul.f32 %v379, %v517
    %v582 = vmul.f32 %v381, %v518
    %v583 = vmul.f32 %v385, %v519
    %v584 = vmul.f32 %v387, %v520
    %v585 = vmul.f32 %v389, %v521
    %v586 = vmul.f32 %v391, %v522
    %v587 = vmul.f32 %v395, %v523
    %v588 = vmul.f32 %v397, %v524
    %v589 = vmul.f32 %v399, %v525
    %v590 = vmul.f32 %v401, %v526
    %v591 = vmul.f32 %v405, %v527
    %v592 = vmul.f32 %v407, %v528
    %v593 = vmul.f32 %v409, %v529
    %v594 = vmul.f32 %v411, %v530
    %v595 = vmul.f32 %v415, %v531
    %v596 = vmul.f32 %v417, %v532
    %v597 = vmul.f32 %v419, %v533
    %v598 = vmul.f32 %v421, %v534
    %v599 = vmul.f32 %v425, %v535
    %v600 = vmul.f32 %v427, %v536
    %v601 = vmul.f32 %v429, %v537
    %v602 = vmul.f32 %v431, %v538
    %v603 = vmul.f32 %v435, %v539
    %v604 = vmul.f32 %v437, %v540
    %v605 = vmul.f32 %v439, %v541
    %v606 = vmul.f32 %v441, %v542
    %v607 = vmul.f32 %v445, %v543
    %v608 = vmul.f32 %v447, %v544
    %v609 = vmul.f32 %v449, %v545
    %v610 = vmul.f32 %v451, %v546
    %v611 = vmul.f32 %v455, %v547
    %v612 = vmul.f32 %v457, %v548
    %v613 = vmul.f32 %v459, %v549
    %v614 = vmul.f32 %v461, %v550
    %v615 = vmul.f32 %v465, %v551
    %v616 = vmul.f32 %v467, %v552
    %v617 = vmul.f32 %v469, %v553
    %v618 = vmul.f32 %v471, %v554
    %v619 = vmul.f32 %v475, %v555
    %v620 = vmul.f32 %v477, %v556
    %v621 = vmul.f32 %v479, %v557
    %v622 = vmul.f32 %v481, %v558
    %v623 = vmul.f32 %v485, %v559
    %v624 = vmul.f32 %v487, %v560
    %v625 = vmul.f32 %v489, %v561
    %v626 = vmul.f32 %v491, %v562
    %v627 = vmul.f32 %v495, %v563
    %v628 = vmul.f32 %v497, %v564
    %v629 = vmul.f32 %v499, %v565
    %v630 = vmul.f32 %v501, %v566
    %v631 = vmul.f32 %v567, 0.044715
    %v632 = vmul.f32 %v568, 0.044715
    %v633 = vmul.f32 %v569, 0.044715
    %v634 = vmul.f32 %v570, 0.044715
    %v635 = vmul.f32 %v571, 0.044715
    %v636 = vmul.f32 %v572, 0.044715
    %v637 = vmul.f32 %v573, 0.044715
    %v638 = vmul.f32 %v574, 0.044715
    %v639 = vmul.f32 %v575, 0.044715
    %v640 = vmul.f32 %v576, 0.044715
    %v641 = vmul.f32 %v577, 0.044715
    %v642 = vmul.f32 %v578, 0.044715
    %v643 = vmul.f32 %v579, 0.044715
    %v644 = vmul.f32 %v580, 0.044715
    %v645 = vmul.f32 %v581, 0.044715
    %v646 = vmul.f32 %v582, 0.044715
    %v647 = vmul.f32 %v583, 0.044715
    %v648 = vmul.f32 %v584, 0.044715
    %v649 = vmul.f32 %v585, 0.044715
    %v650 = vmul.f32 %v586, 0.044715
    %v651 = vmul.f32 %v587, 0.044715
    %v652 = vmul.f32 %v588, 0.044715
    %v653 = vmul.f32 %v589, 0.044715
    %v654 = vmul.f32 %v590, 0.044715
    %v655 = vmul.f32 %v591, 0.044715
    %v656 = vmul.f32 %v592, 0.044715
    %v657 = vmul.f32 %v593, 0.044715
    %v658 = vmul.f32 %v594, 0.044715
    %v659 = vmul.f32 %v595, 0.044715
    %v660 = vmul.f32 %v596, 0.044715
    %v661 = vmul.f32 %v597, 0.044715
    %v662 = vmul.f32 %v598, 0.044715
    %v663 = vmul.f32 %v599, 0.044715
    %v664 = vmul.f32 %v600, 0.044715
    %v665 = vmul.f32 %v601, 0.044715
    %v666 = vmul.f32 %v602, 0.044715
    %v667 = vmul.f32 %v603, 0.044715
    %v668 = vmul.f32 %v604, 0.044715
    %v669 = vmul.f32 %v605, 0.044715
    %v670 = vmul.f32 %v606, 0.044715
    %v671 = vmul.f32 %v607, 0.044715
    %v672 = vmul.f32 %v608, 0.044715
    %v673 = vmul.f32 %v609, 0.044715
    %v674 = vmul.f32 %v610, 0.044715
    %v675 = vmul.f32 %v611, 0.044715
    %v676 = vmul.f32 %v612, 0.044715
    %v677 = vmul.f32 %v613, 0.044715
    %v678 = vmul.f32 %v614, 0.044715
    %v679 = vmul.f32 %v615, 0.044715
    %v680 = vmul.f32 %v616, 0.044715
    %v681 = vmul.f32 %v617, 0.044715
    %v682 = vmul.f32 %v618, 0.044715
    %v683 = vmul.f32 %v619, 0.044715
    %v684 = vmul.f32 %v620, 0.044715
    %v685 = vmul.f32 %v621, 0.044715
    %v686 = vmul.f32 %v622, 0.044715
    %v687 = vmul.f32 %v623, 0.044715
    %v688 = vmul.f32 %v624, 0.044715
    %v689 = vmul.f32 %v625, 0.044715
    %v690 = vmul.f32 %v626, 0.044715
    %v691 = vmul.f32 %v627, 0.044715
    %v692 = vmul.f32 %v628, 0.044715
    %v693 = vmul.f32 %v629, 0.044715
    %v694 = vmul.f32 %v630, 0.044715
    %v695 = vadd.f32 %v345, %v631
    %v696 = vadd.f32 %v347, %v632
    %v697 = vadd.f32 %v349, %v633
    %v698 = vadd.f32 %v351, %v634
    %v699 = vadd.f32 %v355, %v635
    %v700 = vadd.f32 %v357, %v636
    %v701 = vadd.f32 %v359, %v637
    %v702 = vadd.f32 %v361, %v638
    %v703 = vadd.f32 %v365, %v639
    %v704 = vadd.f32 %v367, %v640
    %v705 = vadd.f32 %v369, %v641
    %v706 = vadd.f32 %v371, %v642
    %v707 = vadd.f32 %v375, %v643
    %v708 = vadd.f32 %v377, %v644
    %v709 = vadd.f32 %v379, %v645
    %v710 = vadd.f32 %v381, %v646
    %v711 = vadd.f32 %v385, %v647
    %v712 = vadd.f32 %v387, %v648
    %v713 = vadd.f32 %v389, %v649
    %v714 = vadd.f32 %v391, %v650
    %v715 = vadd.f32 %v395, %v651
    %v716 = vadd.f32 %v397, %v652
    %v717 = vadd.f32 %v399, %v653
    %v718 = vadd.f32 %v401, %v654
    %v719 = vadd.f32 %v405, %v655
    %v720 = vadd.f32 %v407, %v656
    %v721 = vadd.f32 %v409, %v657
    %v722 = vadd.f32 %v411, %v658
    %v723 = vadd.f32 %v415, %v659
    %v724 = vadd.f32 %v417, %v660
    %v725 = vadd.f32 %v419, %v661
    %v726 = vadd.f32 %v421, %v662
    %v727 = vadd.f32 %v425, %v663
    %v728 = vadd.f32 %v427, %v664
    %v729 = vadd.f32 %v429, %v665
    %v730 = vadd.f32 %v431, %v666
    %v731 = vadd.f32 %v435, %v667
    %v732 = vadd.f32 %v437, %v668
    %v733 = vadd.f32 %v439, %v669
    %v734 = vadd.f32 %v441, %v670
    %v735 = vadd.f32 %v445, %v671
    %v736 = vadd.f32 %v447, %v672
    %v737 = vadd.f32 %v449, %v673
    %v738 = vadd.f32 %v451, %v674
    %v739 = vadd.f32 %v455, %v675
    %v740 = vadd.f32 %v457, %v676
    %v741 = vadd.f32 %v459, %v677
    %v742 = vadd.f32 %v461, %v678
    %v743 = vadd.f32 %v465, %v679
    %v744 = vadd.f32 %v467, %v680
    %v745 = vadd.f32 %v469, %v681
    %v746 = vadd.f32 %v471, %v682
    %v747 = vadd.f32 %v475, %v683
    %v748 = vadd.f32 %v477, %v684
    %v749 = vadd.f32 %v479, %v685
    %v750 = vadd.f32 %v481, %v686
    %v751 = vadd.f32 %v485, %v687
    %v752 = vadd.f32 %v487, %v688
    %v753 = vadd.f32 %v489, %v689
    %v754 = vadd.f32 %v491, %v690
    %v755 = vadd.f32 %v495, %v691
    %v756 = vadd.f32 %v497, %v692
    %v757 = vadd.f32 %v499, %v693
    %v758 = vadd.f32 %v501, %v694
    %v759 = vmul.f32 %v695, 0.7978846
    %v760 = vmul.f32 %v696, 0.7978846
    %v761 = vmul.f32 %v697, 0.7978846
    %v762 = vmul.f32 %v698, 0.7978846
    %v763 = vmul.f32 %v699, 0.7978846
    %v764 = vmul.f32 %v700, 0.7978846
    %v765 = vmul.f32 %v701, 0.7978846
    %v766 = vmul.f32 %v702, 0.7978846
    %v767 = vmul.f32 %v703, 0.7978846
    %v768 = vmul.f32 %v704, 0.7978846
    %v769 = vmul.f32 %v705, 0.7978846
    %v770 = vmul.f32 %v706, 0.7978846
    %v771 = vmul.f32 %v707, 0.7978846
    %v772 = vmul.f32 %v708, 0.7978846
    %v773 = vmul.f32 %v709, 0.7978846
    %v774 = vmul.f32 %v710, 0.7978846
    %v775 = vmul.f32 %v711, 0.7978846
    %v776 = vmul.f32 %v712, 0.7978846
    %v777 = vmul.f32 %v713, 0.7978846
    %v778 = vmul.f32 %v714, 0.7978846
    %v779 = vmul.f32 %v715, 0.7978846
    %v780 = vmul.f32 %v716, 0.7978846
    %v781 = vmul.f32 %v717, 0.7978846
    %v782 = vmul.f32 %v718, 0.7978846
    %v783 = vmul.f32 %v719, 0.7978846
    %v784 = vmul.f32 %v720, 0.7978846
    %v785 = vmul.f32 %v721, 0.7978846
    %v786 = vmul.f32 %v722, 0.7978846
    %v787 = vmul.f32 %v723, 0.7978846
    %v788 = vmul.f32 %v724, 0.7978846
    %v789 = vmul.f32 %v725, 0.7978846
    %v790 = vmul.f32 %v726, 0.7978846
    %v791 = vmul.f32 %v727, 0.7978846
    %v792 = vmul.f32 %v728, 0.7978846
    %v793 = vmul.f32 %v729, 0.7978846
    %v794 = vmul.f32 %v730, 0.7978846
    %v795 = vmul.f32 %v731, 0.7978846
    %v796 = vmul.f32 %v732, 0.7978846
    %v797 = vmul.f32 %v733, 0.7978846
    %v798 = vmul.f32 %v734, 0.7978846
    %v799 = vmul.f32 %v735, 0.7978846
    %v800 = vmul.f32 %v736, 0.7978846
    %v801 = vmul.f32 %v737, 0.7978846
    %v802 = vmul.f32 %v738, 0.7978846
    %v803 = vmul.f32 %v739, 0.7978846
    %v804 = vmul.f32 %v740, 0.7978846
    %v805 = vmul.f32 %v741, 0.7978846
    %v806 = vmul.f32 %v742, 0.7978846
    %v807 = vmul.f32 %v743, 0.7978846
    %v808 = vmul.f32 %v744, 0.7978846
    %v809 = vmul.f32 %v745, 0.7978846
    %v810 = vmul.f32 %v746, 0.7978846
    %v811 = vmul.f32 %v747, 0.7978846
    %v812 = vmul.f32 %v748, 0.7978846
    %v813 = vmul.f32 %v749, 0.7978846
    %v814 = vmul.f32 %v750, 0.7978846
    %v815 = vmul.f32 %v751, 0.7978846
    %v816 = vmul.f32 %v752, 0.7978846
    %v817 = vmul.f32 %v753, 0.7978846
    %v818 = vmul.f32 %v754, 0.7978846
    %v819 = vmul.f32 %v755, 0.7978846
    %v820 = vmul.f32 %v756, 0.7978846
    %v821 = vmul.f32 %v757, 0.7978846
    %v822 = vmul.f32 %v758, 0.7978846
    %v823 = vtanh.pop %v759
    %v824 = vtanh.pop %v760
    %v825 = vtanh.pop %v761
    %v826 = vtanh.pop %v762
    %v827 = vtanh.pop %v763
    %v828 = vtanh.pop %v764
    %v829 = vtanh.pop %v765
    %v830 = vtanh.pop %v766
    %v831 = vtanh.pop %v767
    %v832 = vtanh.pop %v768
    %v833 = vtanh.pop %v769
    %v834 = vtanh.pop %v770
    %v835 = vtanh.pop %v771
    %v836 = vtanh.pop %v772
    %v837 = vtanh.pop %v773
    %v838 = vtanh.pop %v774
    %v839 = vtanh.pop %v775
    %v840 = vtanh.pop %v776
    %v841 = vtanh.pop %v777
    %v842 = vtanh.pop %v778
    %v843 = vtanh.pop %v779
    %v844 = vtanh.pop %v780
    %v845 = vtanh.pop %v781
    %v846 = vtanh.pop %v782
    %v847 = vtanh.pop %v783
    %v848 = vtanh.pop %v784
    %v849 = vtanh.pop %v785
    %v850 = vtanh.pop %v786
    %v851 = vtanh.pop %v787
    %v852 = vtanh.pop %v788
    %v853 = vtanh.pop %v789
    %v854 = vtanh.pop %v790
    %v855 = vtanh.pop %v791
    %v856 = vtanh.pop %v792
    %v857 = vtanh.pop %v793
    %v858 = vtanh.pop %v794
    %v859 = vtanh.pop %v795
    %v860 = vtanh.pop %v796
    %v861 = vtanh.pop %v797
    %v862 = vtanh.pop %v798
    %v863 = vtanh.pop %v799
    %v864 = vtanh.pop %v800
    %v865 = vtanh.pop %v801
    %v866 = vtanh.pop %v802
    %v867 = vtanh.pop %v803
    %v868 = vtanh.pop %v804
    %v869 = vtanh.pop %v805
    %v870 = vtanh.pop %v806
    %v871 = vtanh.pop %v807
    %v872 = vtanh.pop %v808
    %v873 = vtanh.pop %v809
    %v874 = vtanh.pop %v810
    %v875 = vtanh.pop %v811
    %v876 = vtanh.pop %v812
    %v877 = vtanh.pop %v813
    %v878 = vtanh.pop %v814
    %v879 = vtanh.pop %v815
    %v880 = vtanh.pop %v816
    %v881 = vtanh.pop %v817
    %v882 = vtanh.pop %v818
    %v883 = vtanh.pop %v819
    %v884 = vtanh.pop %v820
    %v885 = vtanh.pop %v821
    %v886 = vtanh.pop %v822
    %v887 = vadd.f32 %v823, 1.0
    %v888 = vadd.f32 %v824, 1.0
    %v889 = vadd.f32 %v825, 1.0
    %v890 = vadd.f32 %v826, 1.0
    %v891 = vadd.f32 %v827, 1.0
    %v892 = vadd.f32 %v828, 1.0
    %v893 = vadd.f32 %v829, 1.0
    %v894 = vadd.f32 %v830, 1.0
    %v895 = vadd.f32 %v831, 1.0
    %v896 = vadd.f32 %v832, 1.0
    %v897 = vadd.f32 %v833, 1.0
    %v898 = vadd.f32 %v834, 1.0
    %v899 = vadd.f32 %v835, 1.0
    %v900 = vadd.f32 %v836, 1.0
    %v901 = vadd.f32 %v837, 1.0
    %v902 = vadd.f32 %v838, 1.0
    %v903 = vadd.f32 %v839, 1.0
    %v904 = vadd.f32 %v840, 1.0
    %v905 = vadd.f32 %v841, 1.0
    %v906 = vadd.f32 %v842, 1.0
    %v907 = vadd.f32 %v843, 1.0
    %v908 = vadd.f32 %v844, 1.0
    %v909 = vadd.f32 %v845, 1.0
    %v910 = vadd.f32 %v846, 1.0
    %v911 = vadd.f32 %v847, 1.0
    %v912 = vadd.f32 %v848, 1.0
    %v913 = vadd.f32 %v849, 1.0
    %v914 = vadd.f32 %v850, 1.0
    %v915 = vadd.f32 %v851, 1.0
    %v916 = vadd.f32 %v852, 1.0
    %v917 = vadd.f32 %v853, 1.0
    %v918 = vadd.f32 %v854, 1.0
    %v919 = vadd.f32 %v855, 1.0
    %v920 = vadd.f32 %v856, 1.0
    %v921 = vadd.f32 %v857, 1.0
    %v922 = vadd.f32 %v858, 1.0
    %v923 = vadd.f32 %v859, 1.0
    %v924 = vadd.f32 %v860, 1.0
    %v925 = vadd.f32 %v861, 1.0
    %v926 = vadd.f32 %v862, 1.0
    %v927 = vadd.f32 %v863, 1.0
    %v928 = vadd.f32 %v864, 1.0
    %v929 = vadd.f32 %v865, 1.0
    %v930 = vadd.f32 %v866, 1.0
    %v931 = vadd.f32 %v867, 1.0
    %v932 = vadd.f32 %v868, 1.0
    %v933 = vadd.f32 %v869, 1.0
    %v934 = vadd.f32 %v870, 1.0
    %v935 = vadd.f32 %v871, 1.0
    %v936 = vadd.f32 %v872, 1.0
    %v937 = vadd.f32 %v873, 1.0
    %v938 = vadd.f32 %v874, 1.0
    %v939 = vadd.f32 %v875, 1.0
    %v940 = vadd.f32 %v876, 1.0
    %v941 = vadd.f32 %v877, 1.0
    %v942 = vadd.f32 %v878, 1.0
    %v943 = vadd.f32 %v879, 1.0
    %v944 = vadd.f32 %v880, 1.0
    %v945 = vadd.f32 %v881, 1.0
    %v946 = vadd.f32 %v882, 1.0
    %v947 = vadd.f32 %v883, 1.0
    %v948 = vadd.f32 %v884, 1.0
    %v949 = vadd.f32 %v885, 1.0
    %v950 = vadd.f32 %v886, 1.0
    %v951 = vmul.f32 %v887, 0.5
    %v952 = vmul.f32 %v888, 0.5
    %v953 = vmul.f32 %v889, 0.5
    %v954 = vmul.f32 %v890, 0.5
    %v955 = vmul.f32 %v891, 0.5
    %v956 = vmul.f32 %v892, 0.5
    %v957 = vmul.f32 %v893, 0.5
    %v958 = vmul.f32 %v894, 0.5
    %v959 = vmul.f32 %v895, 0.5
    %v960 = vmul.f32 %v896, 0.5
    %v961 = vmul.f32 %v897, 0.5
    %v962 = vmul.f32 %v898, 0.5
    %v963 = vmul.f32 %v899, 0.5
    %v964 = vmul.f32 %v900, 0.5
    %v965 = vmul.f32 %v901, 0.5
    %v966 = vmul.f32 %v902, 0.5
    %v967 = vmul.f32 %v903, 0.5
    %v968 = vmul.f32 %v904, 0.5
    %v969 = vmul.f32 %v905, 0.5
    %v970 = vmul.f32 %v906, 0.5
    %v971 = vmul.f32 %v907, 0.5
    %v972 = vmul.f32 %v908, 0.5
    %v973 = vmul.f32 %v909, 0.5
    %v974 = vmul.f32 %v910, 0.5
    %v975 = vmul.f32 %v911, 0.5
    %v976 = vmul.f32 %v912, 0.5
    %v977 = vmul.f32 %v913, 0.5
    %v978 = vmul.f32 %v914, 0.5
    %v979 = vmul.f32 %v915, 0.5
    %v980 = vmul.f32 %v916, 0.5
    %v981 = vmul.f32 %v917, 0.5
    %v982 = vmul.f32 %v918, 0.5
    %v983 = vmul.f32 %v919, 0.5
    %v984 = vmul.f32 %v920, 0.5
    %v985 = vmul.f32 %v921, 0.5
    %v986 = vmul.f32 %v922, 0.5
    %v987 = vmul.f32 %v923, 0.5
    %v988 = vmul.f32 %v924, 0.5
    %v989 = vmul.f32 %v925, 0.5
    %v990 = vmul.f32 %v926, 0.5
    %v991 = vmul.f32 %v927, 0.5
    %v992 = vmul.f32 %v928, 0.5
    %v993 = vmul.f32 %v929, 0.5
    %v994 = vmul.f32 %v930, 0.5
    %v995 = vmul.f32 %v931, 0.5
    %v996 = vmul.f32 %v932, 0.5
    %v997 = vmul.f32 %v933, 0.5
    %v998 = vmul.f32 %v934, 0.5
    %v999 = vmul.f32 %v935, 0.5
    %v1000 = vmul.f32 %v936, 0.5
    %v1001 = vmul.f32 %v937, 0.5
    %v1002 = vmul.f32 %v938, 0.5
    %v1003 = vmul.f32 %v939, 0.5
    %v1004 = vmul.f32 %v940, 0.5
    %v1005 = vmul.f32 %v941, 0.5
    %v1006 = vmul.f32 %v942, 0.5
    %v1007 = vmul.f32 %v943, 0.5
    %v1008 = vmul.f32 %v944, 0.5
    %v1009 = vmul.f32 %v945, 0.5
    %v1010 = vmul.f32 %v946, 0.5
    %v1011 = vmul.f32 %v947, 0.5
    %v1012 = vmul.f32 %v948, 0.5
    %v1013 = vmul.f32 %v949, 0.5
    %v1014 = vmul.f32 %v950, 0.5
    %v1015 = vmul.f32 %v345, %v951
    %v1016 = vmul.f32 %v347, %v952
    %v1017 = vmul.f32 %v349, %v953
    %v1018 = vmul.f32 %v351, %v954
    %v1019 = vmul.f32 %v355, %v955
    %v1020 = vmul.f32 %v357, %v956
    %v1021 = vmul.f32 %v359, %v957
    %v1022 = vmul.f32 %v361, %v958
    %v1023 = vmul.f32 %v365, %v959
    %v1024 = vmul.f32 %v367, %v960
    %v1025 = vmul.f32 %v369, %v961
    %v1026 = vmul.f32 %v371, %v962
    %v1027 = vmul.f32 %v375, %v963
    %v1028 = vmul.f32 %v377, %v964
    %v1029 = vmul.f32 %v379, %v965
    %v1030 = vmul.f32 %v381, %v966
    %v1031 = vmul.f32 %v385, %v967
    %v1032 = vmul.f32 %v387, %v968
    %v1033 = vmul.f32 %v389, %v969
    %v1034 = vmul.f32 %v391, %v970
    %v1035 = vmul.f32 %v395, %v971
    %v1036 = vmul.f32 %v397, %v972
    %v1037 = vmul.f32 %v399, %v973
    %v1038 = vmul.f32 %v401, %v974
    %v1039 = vmul.f32 %v405, %v975
    %v1040 = vmul.f32 %v407, %v976
    %v1041 = vmul.f32 %v409, %v977
    %v1042 = vmul.f32 %v411, %v978
    %v1043 = vmul.f32 %v415, %v979
    %v1044 = vmul.f32 %v417, %v980
    %v1045 = vmul.f32 %v419, %v981
    %v1046 = vmul.f32 %v421, %v982
    %v1047 = vmul.f32 %v425, %v983
    %v1048 = vmul.f32 %v427, %v984
    %v1049 = vmul.f32 %v429, %v985
    %v1050 = vmul.f32 %v431, %v986
    %v1051 = vmul.f32 %v435, %v987
    %v1052 = vmul.f32 %v437, %v988
    %v1053 = vmul.f32 %v439, %v989
    %v1054 = vmul.f32 %v441, %v990
    %v1055 = vmul.f32 %v445, %v991
    %v1056 = vmul.f32 %v447, %v992
    %v1057 = vmul.f32 %v449, %v993
    %v1058 = vmul.f32 %v451, %v994
    %v1059 = vmul.f32 %v455, %v995
    %v1060 = vmul.f32 %v457, %v996
    %v1061 = vmul.f32 %v459, %v997
    %v1062 = vmul.f32 %v461, %v998
    %v1063 = vmul.f32 %v465, %v999
    %v1064 = vmul.f32 %v467, %v1000
    %v1065 = vmul.f32 %v469, %v1001
    %v1066 = vmul.f32 %v471, %v1002
    %v1067 = vmul.f32 %v475, %v1003
    %v1068 = vmul.f32 %v477, %v1004
    %v1069 = vmul.f32 %v479, %v1005
    %v1070 = vmul.f32 %v481, %v1006
    %v1071 = vmul.f32 %v485, %v1007
    %v1072 = vmul.f32 %v487, %v1008
    %v1073 = vmul.f32 %v489, %v1009
    %v1074 = vmul.f32 %v491, %v1010
    %v1075 = vmul.f32 %v495, %v1011
    %v1076 = vmul.f32 %v497, %v1012
    %v1077 = vmul.f32 %v499, %v1013
    %v1078 = vmul.f32 %v501, %v1014
    %v1079 = vpack.c.bf16 %v1017, %v1015
    %v1080 = vpack.c.bf16 %v1018, %v1016
    %v1081 = vpack.c.bf16 %v1021, %v1019
    %v1082 = vpack.c.bf16 %v1022, %v1020
    %v1083 = vpack.c.bf16 %v1025, %v1023
    %v1084 = vpack.c.bf16 %v1026, %v1024
    %v1085 = vpack.c.bf16 %v1029, %v1027
    %v1086 = vpack.c.bf16 %v1030, %v1028
    %v1087 = vpack.c.bf16 %v1033, %v1031
    %v1088 = vpack.c.bf16 %v1034, %v1032
    %v1089 = vpack.c.bf16 %v1037, %v1035
    %v1090 = vpack.c.bf16 %v1038, %v1036
    %v1091 = vpack.c.bf16 %v1041, %v1039
    %v1092 = vpack.c.bf16 %v1042, %v1040
    %v1093 = vpack.c.bf16 %v1045, %v1043
    %v1094 = vpack.c.bf16 %v1046, %v1044
    %v1095 = vpack.c.bf16 %v1049, %v1047
    %v1096 = vpack.c.bf16 %v1050, %v1048
    %v1097 = vpack.c.bf16 %v1053, %v1051
    %v1098 = vpack.c.bf16 %v1054, %v1052
    %v1099 = vpack.c.bf16 %v1057, %v1055
    %v1100 = vpack.c.bf16 %v1058, %v1056
    %v1101 = vpack.c.bf16 %v1061, %v1059
    %v1102 = vpack.c.bf16 %v1062, %v1060
    %v1103 = vpack.c.bf16 %v1065, %v1063
    %v1104 = vpack.c.bf16 %v1066, %v1064
    %v1105 = vpack.c.bf16 %v1069, %v1067
    %v1106 = vpack.c.bf16 %v1070, %v1068
    %v1107 = vpack.c.bf16 %v1073, %v1071
    %v1108 = vpack.c.bf16 %v1074, %v1072
    %v1109 = vpack.c.bf16 %v1077, %v1075
    %v1110 = vpack.c.bf16 %v1078, %v1076
    %v1111 = vld [vmem:[%s2] sm:$0xff]
    %v1112 = vld [vmem:[%s2 + $0x8] sm:$0xff]
    %v1113 = vld [vmem:[%s2 + $0x10] sm:$0xff]
    %v1114 = vld [vmem:[%s2 + $0x18] sm:$0xff]
    %v1115 = vld [vmem:[%s2 + $0x20] sm:$0xff]
    %v1116 = vld [vmem:[%s2 + $0x28] sm:$0xff]
    %v1117 = vld [vmem:[%s2 + $0x30] sm:$0xff]
    %v1118 = vld [vmem:[%s2 + $0x38] sm:$0xff]
    %v1119 = vld [vmem:[%s2 + $0x40] sm:$0xff]
    %v1120 = vld [vmem:[%s2 + $0x48] sm:$0xff]
    %v1121 = vld [vmem:[%s2 + $0x50] sm:$0xff]
    %v1122 = vld [vmem:[%s2 + $0x58] sm:$0xff]
    %v1123 = vld [vmem:[%s2 + $0x60] sm:$0xff]
    %v1124 = vld [vmem:[%s2 + $0x68] sm:$0xff]
    %v1125 = vld [vmem:[%s2 + $0x70] sm:$0xff]
    %v1126 = vld [vmem:[%s2 + $0x78] sm:$0xff]
    %v1127 = vld [vmem:[%s2 + $0x80] sm:$0xff]
    %v1128 = vld [vmem:[%s2 + $0x88] sm:$0xff]
    %v1129 = vld [vmem:[%s2 + $0x90] sm:$0xff]
    %v1130 = vld [vmem:[%s2 + $0x98] sm:$0xff]
    %v1131 = vld [vmem:[%s2 + $0xa0] sm:$0xff]
    %v1132 = vld [vmem:[%s2 + $0xa8] sm:$0xff]
    %v1133 = vld [vmem:[%s2 + $0xb0] sm:$0xff]
    %v1134 = vld [vmem:[%s2 + $0xb8] sm:$0xff]
    %v1135 = vld [vmem:[%s2 + $0xc0] sm:$0xff]
    %v1136 = vld [vmem:[%s2 + $0xc8] sm:$0xff]
    %v1137 = vld [vmem:[%s2 + $0xd0] sm:$0xff]
    %v1138 = vld [vmem:[%s2 + $0xd8] sm:$0xff]
    %v1139 = vld [vmem:[%s2 + $0xe0] sm:$0xff]
    %v1140 = vld [vmem:[%s2 + $0xe8] sm:$0xff]
    %v1141 = vld [vmem:[%s2 + $0xf0] sm:$0xff]
    %v1142 = vld [vmem:[%s2 + $0xf8] sm:$0xff]
    %v1143 = vld [vmem:[%s2 + $0x100] sm:$0xff]
    %v1144 = vld [vmem:[%s2 + $0x108] sm:$0xff]
    %v1145 = vld [vmem:[%s2 + $0x110] sm:$0xff]
    %v1146 = vld [vmem:[%s2 + $0x118] sm:$0xff]
    %v1147 = vld [vmem:[%s2 + $0x120] sm:$0xff]
    %v1148 = vld [vmem:[%s2 + $0x128] sm:$0xff]
    %v1149 = vld [vmem:[%s2 + $0x130] sm:$0xff]
    %v1150 = vld [vmem:[%s2 + $0x138] sm:$0xff]
    %v1151 = vld [vmem:[%s2 + $0x140] sm:$0xff]
    %v1152 = vld [vmem:[%s2 + $0x148] sm:$0xff]
    %v1153 = vld [vmem:[%s2 + $0x150] sm:$0xff]
    %v1154 = vld [vmem:[%s2 + $0x158] sm:$0xff]
    %v1155 = vld [vmem:[%s2 + $0x160] sm:$0xff]
    %v1156 = vld [vmem:[%s2 + $0x168] sm:$0xff]
    %v1157 = vld [vmem:[%s2 + $0x170] sm:$0xff]
    %v1158 = vld [vmem:[%s2 + $0x178] sm:$0xff]
    %v1159 = vld [vmem:[%s2 + $0x180] sm:$0xff]
    %v1160 = vld [vmem:[%s2 + $0x188] sm:$0xff]
    %v1161 = vld [vmem:[%s2 + $0x190] sm:$0xff]
    %v1162 = vld [vmem:[%s2 + $0x198] sm:$0xff]
    %v1163 = vld [vmem:[%s2 + $0x1a0] sm:$0xff]
    %v1164 = vld [vmem:[%s2 + $0x1a8] sm:$0xff]
    %v1165 = vld [vmem:[%s2 + $0x1b0] sm:$0xff]
    %v1166 = vld [vmem:[%s2 + $0x1b8] sm:$0xff]
    %v1167 = vld [vmem:[%s2 + $0x1c0] sm:$0xff]
    %v1168 = vld [vmem:[%s2 + $0x1c8] sm:$0xff]
    %v1169 = vld [vmem:[%s2 + $0x1d0] sm:$0xff]
    %v1170 = vld [vmem:[%s2 + $0x1d8] sm:$0xff]
    %v1171 = vld [vmem:[%s2 + $0x1e0] sm:$0xff]
    %v1172 = vld [vmem:[%s2 + $0x1e8] sm:$0xff]
    %v1173 = vld [vmem:[%s2 + $0x1f0] sm:$0xff]
    %v1174 = vld [vmem:[%s2 + $0x1f8] sm:$0xff]
    %v1239 = vunpack.c.l.b16 %v1111
    %v1240 = vunpack.c.h.b16 %v1111
    %v1241 = vunpack.c.l.b16 %v1112
    %v1242 = vunpack.c.h.b16 %v1112
    %v1243 = vunpack.c.l.b16 %v1113
    %v1244 = vunpack.c.h.b16 %v1113
    %v1245 = vunpack.c.l.b16 %v1114
    %v1246 = vunpack.c.h.b16 %v1114
    %v1247 = vunpack.c.l.b16 %v1115
    %v1248 = vunpack.c.h.b16 %v1115
    %v1249 = vunpack.c.l.b16 %v1116
    %v1250 = vunpack.c.h.b16 %v1116
    %v1251 = vunpack.c.l.b16 %v1117
    %v1252 = vunpack.c.h.b16 %v1117
    %v1253 = vunpack.c.l.b16 %v1118
    %v1254 = vunpack.c.h.b16 %v1118
    %v1255 = vunpack.c.l.b16 %v1119
    %v1256 = vunpack.c.h.b16 %v1119
    %v1257 = vunpack.c.l.b16 %v1120
    %v1258 = vunpack.c.h.b16 %v1120
    %v1259 = vunpack.c.l.b16 %v1121
    %v1260 = vunpack.c.h.b16 %v1121
    %v1261 = vunpack.c.l.b16 %v1122
    %v1262 = vunpack.c.h.b16 %v1122
    %v1263 = vunpack.c.l.b16 %v1123
    %v1264 = vunpack.c.h.b16 %v1123
    %v1265 = vunpack.c.l.b16 %v1124
    %v1266 = vunpack.c.h.b16 %v1124
    %v1267 = vunpack.c.l.b16 %v1125
    %v1268 = vunpack.c.h.b16 %v1125
    %v1269 = vunpack.c.l.b16 %v1126
    %v1270 = vunpack.c.h.b16 %v1126
    %v1271 = vunpack.c.l.b16 %v1127
    %v1272 = vunpack.c.h.b16 %v1127
    %v1273 = vunpack.c.l.b16 %v1128
    %v1274 = vunpack.c.h.b16 %v1128
    %v1275 = vunpack.c.l.b16 %v1129
    %v1276 = vunpack.c.h.b16 %v1129
    %v1277 = vunpack.c.l.b16 %v1130
    %v1278 = vunpack.c.h.b16 %v1130
    %v1279 = vunpack.c.l.b16 %v1131
    %v1280 = vunpack.c.h.b16 %v1131
    %v1281 = vunpack.c.l.b16 %v1132
    %v1282 = vunpack.c.h.b16 %v1132
    %v1283 = vunpack.c.l.b16 %v1133
    %v1284 = vunpack.c.h.b16 %v1133
    %v1285 = vunpack.c.l.b16 %v1134
    %v1286 = vunpack.c.h.b16 %v1134
    %v1287 = vunpack.c.l.b16 %v1135
    %v1288 = vunpack.c.h.b16 %v1135
    %v1289 = vunpack.c.l.b16 %v1136
    %v1290 = vunpack.c.h.b16 %v1136
    %v1291 = vunpack.c.l.b16 %v1137
    %v1292 = vunpack.c.h.b16 %v1137
    %v1293 = vunpack.c.l.b16 %v1138
    %v1294 = vunpack.c.h.b16 %v1138
    %v1295 = vunpack.c.l.b16 %v1139
    %v1296 = vunpack.c.h.b16 %v1139
    %v1297 = vunpack.c.l.b16 %v1140
    %v1298 = vunpack.c.h.b16 %v1140
    %v1299 = vunpack.c.l.b16 %v1141
    %v1300 = vunpack.c.h.b16 %v1141
    %v1301 = vunpack.c.l.b16 %v1142
    %v1302 = vunpack.c.h.b16 %v1142
    %v1303 = vunpack.c.l.b16 %v1143
    %v1304 = vunpack.c.h.b16 %v1143
    %v1305 = vunpack.c.l.b16 %v1144
    %v1306 = vunpack.c.h.b16 %v1144
    %v1307 = vunpack.c.l.b16 %v1145
    %v1308 = vunpack.c.h.b16 %v1145
    %v1309 = vunpack.c.l.b16 %v1146
    %v1310 = vunpack.c.h.b16 %v1146
    %v1311 = vunpack.c.l.b16 %v1147
    %v1312 = vunpack.c.h.b16 %v1147
    %v1313 = vunpack.c.l.b16 %v1148
    %v1314 = vunpack.c.h.b16 %v1148
    %v1315 = vunpack.c.l.b16 %v1149
    %v1316 = vunpack.c.h.b16 %v1149
    %v1317 = vunpack.c.l.b16 %v1150
    %v1318 = vunpack.c.h.b16 %v1150
    %v1319 = vunpack.c.l.b16 %v1151
    %v1320 = vunpack.c.h.b16 %v1151
    %v1321 = vunpack.c.l.b16 %v1152
    %v1322 = vunpack.c.h.b16 %v1152
    %v1323 = vunpack.c.l.b16 %v1153
    %v1324 = vunpack.c.h.b16 %v1153
    %v1325 = vunpack.c.l.b16 %v1154
    %v1326 = vunpack.c.h.b16 %v1154
    %v1327 = vunpack.c.l.b16 %v1155
    %v1328 = vunpack.c.h.b16 %v1155
    %v1329 = vunpack.c.l.b16 %v1156
    %v1330 = vunpack.c.h.b16 %v1156
    %v1331 = vunpack.c.l.b16 %v1157
    %v1332 = vunpack.c.h.b16 %v1157
    %v1333 = vunpack.c.l.b16 %v1158
    %v1334 = vunpack.c.h.b16 %v1158
    %v1335 = vunpack.c.l.b16 %v1159
    %v1336 = vunpack.c.h.b16 %v1159
    %v1337 = vunpack.c.l.b16 %v1160
    %v1338 = vunpack.c.h.b16 %v1160
    %v1339 = vunpack.c.l.b16 %v1161
    %v1340 = vunpack.c.h.b16 %v1161
    %v1341 = vunpack.c.l.b16 %v1162
    %v1342 = vunpack.c.h.b16 %v1162
    %v1343 = vunpack.c.l.b16 %v1163
    %v1344 = vunpack.c.h.b16 %v1163
    %v1345 = vunpack.c.l.b16 %v1164
    %v1346 = vunpack.c.h.b16 %v1164
    %v1347 = vunpack.c.l.b16 %v1165
    %v1348 = vunpack.c.h.b16 %v1165
    %v1349 = vunpack.c.l.b16 %v1166
    %v1350 = vunpack.c.h.b16 %v1166
    %v1351 = vunpack.c.l.b16 %v1167
    %v1352 = vunpack.c.h.b16 %v1167
    %v1353 = vunpack.c.l.b16 %v1168
    %v1354 = vunpack.c.h.b16 %v1168
    %v1355 = vunpack.c.l.b16 %v1169
    %v1356 = vunpack.c.h.b16 %v1169
    %v1357 = vunpack.c.l.b16 %v1170
    %v1358 = vunpack.c.h.b16 %v1170
    %v1359 = vunpack.c.l.b16 %v1171
    %v1360 = vunpack.c.h.b16 %v1171
    %v1361 = vunpack.c.l.b16 %v1172
    %v1362 = vunpack.c.h.b16 %v1172
    %v1363 = vunpack.c.l.b16 %v1173
    %v1364 = vunpack.c.h.b16 %v1173
    %v1365 = vunpack.c.l.b16 %v1174
    %v1366 = vunpack.c.h.b16 %v1174
    %v1367 = vpack.c.b16 %v1243, %v1239
    %v1368 = vpack.c.b16 %v1244, %v1240
    %v1369 = vpack.c.b16 %v1245, %v1241
    %v1370 = vpack.c.b16 %v1246, %v1242
    %v1371 = vpack.c.b16 %v1251, %v1247
    %v1372 = vpack.c.b16 %v1252, %v1248
    %v1373 = vpack.c.b16 %v1253, %v1249
    %v1374 = vpack.c.b16 %v1254, %v1250
    %v1375 = vpack.c.b16 %v1259, %v1255
    %v1376 = vpack.c.b16 %v1260, %v1256
    %v1377 = vpack.c.b16 %v1261, %v1257
    %v1378 = vpack.c.b16 %v1262, %v1258
    %v1379 = vpack.c.b16 %v1267, %v1263
    %v1380 = vpack.c.b16 %v1268, %v1264
    %v1381 = vpack.c.b16 %v1269, %v1265
    %v1382 = vpack.c.b16 %v1270, %v1266
    %v1383 = vpack.c.b16 %v1275, %v1271
    %v1384 = vpack.c.b16 %v1276, %v1272
    %v1385 = vpack.c.b16 %v1277, %v1273
    %v1386 = vpack.c.b16 %v1278, %v1274
    %v1387 = vpack.c.b16 %v1283, %v1279
    %v1388 = vpack.c.b16 %v1284, %v1280
    %v1389 = vpack.c.b16 %v1285, %v1281
    %v1390 = vpack.c.b16 %v1286, %v1282
    %v1391 = vpack.c.b16 %v1291, %v1287
    %v1392 = vpack.c.b16 %v1292, %v1288
    %v1393 = vpack.c.b16 %v1293, %v1289
    %v1394 = vpack.c.b16 %v1294, %v1290
    %v1395 = vpack.c.b16 %v1299, %v1295
    %v1396 = vpack.c.b16 %v1300, %v1296
    %v1397 = vpack.c.b16 %v1301, %v1297
    %v1398 = vpack.c.b16 %v1302, %v1298
    %v1399 = vpack.c.b16 %v1307, %v1303
    %v1400 = vpack.c.b16 %v1308, %v1304
    %v1401 = vpack.c.b16 %v1309, %v1305
    %v1402 = vpack.c.b16 %v1310, %v1306
    %v1403 = vpack.c.b16 %v1315, %v1311
    %v1404 = vpack.c.b16 %v1316, %v1312
    %v1405 = vpack.c.b16 %v1317, %v1313
    %v1406 = vpack.c.b16 %v1318, %v1314
    %v1407 = vpack.c.b16 %v1323, %v1319
    %v1408 = vpack.c.b16 %v1324, %v1320
    %v1409 = vpack.c.b16 %v1325, %v1321
    %v1410 = vpack.c.b16 %v1326, %v1322
    %v1411 = vpack.c.b16 %v1331, %v1327
    %v1412 = vpack.c.b16 %v1332, %v1328
    %v1413 = vpack.c.b16 %v1333, %v1329
    %v1414 = vpack.c.b16 %v1334, %v1330
    %v1415 = vpack.c.b16 %v1339, %v1335
    %v1416 = vpack.c.b16 %v1340, %v1336
    %v1417 = vpack.c.b16 %v1341, %v1337
    %v1418 = vpack.c.b16 %v1342, %v1338
    %v1419 = vpack.c.b16 %v1347, %v1343
    %v1420 = vpack.c.b16 %v1348, %v1344
    %v1421 = vpack.c.b16 %v1349, %v1345
    %v1422 = vpack.c.b16 %v1350, %v1346
    %v1423 = vpack.c.b16 %v1355, %v1351
    %v1424 = vpack.c.b16 %v1356, %v1352
    %v1425 = vpack.c.b16 %v1357, %v1353
    %v1426 = vpack.c.b16 %v1358, %v1354
    %v1427 = vpack.c.b16 %v1363, %v1359
    %v1428 = vpack.c.b16 %v1364, %v1360
    %v1429 = vpack.c.b16 %v1365, %v1361
    %v1430 = vpack.c.b16 %v1366, %v1362
    %1495 = vmatprep.subr.bf16.mxu0 %v1368
    %1496 = vmatpush1.bf16.msra.mxu0 %v1367
    %1497 = vmatprep.subr.bf16.mxu0 %v1372
    %1498 = vmatpush1.bf16.msra.mxu0 %v1371
    %1499 = vmatprep.subr.bf16.mxu0 %v1376
    %1500 = vmatpush1.bf16.msra.mxu0 %v1375
    %1501 = vmatprep.subr.bf16.mxu0 %v1380
    %1502 = vmatpush1.bf16.msra.mxu0 %v1379
    %1503 = vmatprep.subr.bf16.mxu0 %v1384
    %1504 = vmatpush1.bf16.msra.mxu0 %v1383
    %1505 = vmatprep.subr.bf16.mxu0 %v1388
    %1506 = vmatpush1.bf16.msra.mxu0 %v1387
    %1507 = vmatprep.subr.bf16.mxu0 %v1392
    %1508 = vmatpush1.bf16.msra.mxu0 %v1391
    %1509 = vmatprep.subr.bf16.mxu0 %v1396
    %1510 = vmatpush1.bf16.msra.mxu0 %v1395
    %1511 = vmatprep.subr.bf16.mxu0 %v1400
    %1512 = vmatpush1.bf16.msra.mxu0 %v1399
    %1513 = vmatprep.subr.bf16.mxu0 %v1404
    %1514 = vmatpush1.bf16.msra.mxu0 %v1403
    %1515 = vmatprep.subr.bf16.mxu0 %v1408
    %1516 = vmatpush1.bf16.msra.mxu0 %v1407
    %1517 = vmatprep.subr.bf16.mxu0 %v1412
    %1518 = vmatpush1.bf16.msra.mxu0 %v1411
    %1519 = vmatprep.subr.bf16.mxu0 %v1416
    %1520 = vmatpush1.bf16.msra.mxu0 %v1415
    %1521 = vmatprep.subr.bf16.mxu0 %v1420
    %1522 = vmatpush1.bf16.msra.mxu0 %v1419
    %1523 = vmatprep.subr.bf16.mxu0 %v1424
    %1524 = vmatpush1.bf16.msra.mxu0 %v1423
    %1525 = vmatprep.subr.bf16.mxu0 %v1428
    %1526 = vmatpush1.bf16.msra.mxu0 %v1427
    %1527 = vmatprep.mubr.bf16.mxu0 %v1080
    %1528 = vmatmul.mubr.bf16.gmra.mrb[0].mxu0 %v1079
    %v1529 = vpop.f32.mrb[0].mxu0
    %v1530 = vadd.f32 0.0, %v1529
    %v1531 = vpop.f32.mrb[0].mxu0
    %v1532 = vadd.f32 0.0, %v1531
    %v1533 = vpop.f32.mrb[0].mxu0
    %v1534 = vadd.f32 0.0, %v1533
    %v1535 = vpop.f32.mrb[0].mxu0
    %v1536 = vadd.f32 0.0, %v1535
    %1537 = vmatprep.mubr.bf16.mxu0 %v1082
    %1538 = vmatmul.mubr.bf16.gmra.mrb[0].mxu0 %v1081
    %v1539 = vpop.f32.mrb[0].mxu0
    %v1540 = vadd.f32 0.0, %v1539
    %v1541 = vpop.f32.mrb[0].mxu0
    %v1542 = vadd.f32 0.0, %v1541
    %v1543 = vpop.f32.mrb[0].mxu0
    %v1544 = vadd.f32 0.0, %v1543
    %v1545 = vpop.f32.mrb[0].mxu0
    %v1546 = vadd.f32 0.0, %v1545
    %1547 = vmatprep.mubr.bf16.mxu0 %v1084
    %1548 = vmatmul.mubr.bf16.gmra.mrb[0].mxu0 %v1083
    %v1549 = vpop.f32.mrb[0].mxu0
    %v1550 = vadd.f32 0.0, %v1549
    %v1551 = vpop.f32.mrb[0].mxu0
    %v1552 = vadd.f32 0.0, %v1551
    %v1553 = vpop.f32.mrb[0].mxu0
    %v1554 = vadd.f32 0.0, %v1553
    %v1555 = vpop.f32.mrb[0].mxu0
    %v1556 = vadd.f32 0.0, %v1555
    %1557 = vmatprep.mubr.bf16.mxu0 %v1086
    %1558 = vmatmul.mubr.bf16.gmra.mrb[0].mxu0 %v1085
    %v1559 = vpop.f32.mrb[0].mxu0
    %v1560 = vadd.f32 0.0, %v1559
    %v1561 = vpop.f32.mrb[0].mxu0
    %v1562 = vadd.f32 0.0, %v1561
    %v1563 = vpop.f32.mrb[0].mxu0
    %v1564 = vadd.f32 0.0, %v1563
    %v1565 = vpop.f32.mrb[0].mxu0
    %v1566 = vadd.f32 0.0, %v1565
    %1567 = vmatprep.mubr.bf16.mxu0 %v1088
    %1568 = vmatmul.mubr.bf16.gmra.mrb[0].mxu0 %v1087
    %v1569 = vpop.f32.mrb[0].mxu0
    %v1570 = vadd.f32 0.0, %v1569
    %v1571 = vpop.f32.mrb[0].mxu0
    %v1572 = vadd.f32 0.0, %v1571
    %v1573 = vpop.f32.mrb[0].mxu0
    %v1574 = vadd.f32 0.0, %v1573
    %v1575 = vpop.f32.mrb[0].mxu0
    %v1576 = vadd.f32 0.0, %v1575
    %1577 = vmatprep.mubr.bf16.mxu0 %v1090
    %1578 = vmatmul.mubr.bf16.gmra.mrb[0].mxu0 %v1089
    %v1579 = vpop.f32.mrb[0].mxu0
    %v1580 = vadd.f32 0.0, %v1579
    %v1581 = vpop.f32.mrb[0].mxu0
    %v1582 = vadd.f32 0.0, %v1581
    %v1583 = vpop.f32.mrb[0].mxu0
    %v1584 = vadd.f32 0.0, %v1583
    %v1585 = vpop.f32.mrb[0].mxu0
    %v1586 = vadd.f32 0.0, %v1585
    %1587 = vmatprep.mubr.bf16.mxu0 %v1092
    %1588 = vmatmul.mubr.bf16.gmra.mrb[0].mxu0 %v1091
    %v1589 = vpop.f32.mrb[0].mxu0
    %v1590 = vadd.f32 0.0, %v1589
    %v1591 = vpop.f32.mrb[0].mxu0
    %v1592 = vadd.f32 0.0, %v1591
    %v1593 = vpop.f32.mrb[0].mxu0
    %v1594 = vadd.f32 0.0, %v1593
    %v1595 = vpop.f32.mrb[0].mxu0
    %v1596 = vadd.f32 0.0, %v1595
    %1597 = vmatprep.mubr.bf16.mxu0 %v1094
    %1598 = vmatmul.mubr.bf16.gmra.mrb[0].mxu0 %v1093
    %v1599 = vpop.f32.mrb[0].mxu0
    %v1600 = vadd.f32 0.0, %v1599
    %v1601 = vpop.f32.mrb[0].mxu0
    %v1602 = vadd.f32 0.0, %v1601
    %v1603 = vpop.f32.mrb[0].mxu0
    %v1604 = vadd.f32 0.0, %v1603
    %v1605 = vpop.f32.mrb[0].mxu0
    %v1606 = vadd.f32 0.0, %v1605
    %1607 = vmatprep.mubr.bf16.mxu0 %v1096
    %1608 = vmatmul.mubr.bf16.gmra.mrb[0].mxu0 %v1095
    %v1609 = vpop.f32.mrb[0].mxu0
    %v1610 = vadd.f32 0.0, %v1609
    %v1611 = vpop.f32.mrb[0].mxu0
    %v1612 = vadd.f32 0.0, %v1611
    %v1613 = vpop.f32.mrb[0].mxu0
    %v1614 = vadd.f32 0.0, %v1613
    %v1615 = vpop.f32.mrb[0].mxu0
    %v1616 = vadd.f32 0.0, %v1615
    %1617 = vmatprep.mubr.bf16.mxu0 %v1098
    %1618 = vmatmul.mubr.bf16.gmra.mrb[0].mxu0 %v1097
    %v1619 = vpop.f32.mrb[0].mxu0
    %v1620 = vadd.f32 0.0, %v1619
    %v1621 = vpop.f32.mrb[0].mxu0
    %v1622 = vadd.f32 0.0, %v1621
    %v1623 = vpop.f32.mrb[0].mxu0
    %v1624 = vadd.f32 0.0, %v1623
    %v1625 = vpop.f32.mrb[0].mxu0
    %v1626 = vadd.f32 0.0, %v1625
    %1627 = vmatprep.mubr.bf16.mxu0 %v1100
    %1628 = vmatmul.mubr.bf16.gmra.mrb[0].mxu0 %v1099
    %v1629 = vpop.f32.mrb[0].mxu0
    %v1630 = vadd.f32 0.0, %v1629
    %v1631 = vpop.f32.mrb[0].mxu0
    %v1632 = vadd.f32 0.0, %v1631
    %v1633 = vpop.f32.mrb[0].mxu0
    %v1634 = vadd.f32 0.0, %v1633
    %v1635 = vpop.f32.mrb[0].mxu0
    %v1636 = vadd.f32 0.0, %v1635
    %1637 = vmatprep.mubr.bf16.mxu0 %v1102
    %1638 = vmatmul.mubr.bf16.gmra.mrb[0].mxu0 %v1101
    %v1639 = vpop.f32.mrb[0].mxu0
    %v1640 = vadd.f32 0.0, %v1639
    %v1641 = vpop.f32.mrb[0].mxu0
    %v1642 = vadd.f32 0.0, %v1641
    %v1643 = vpop.f32.mrb[0].mxu0
    %v1644 = vadd.f32 0.0, %v1643
    %v1645 = vpop.f32.mrb[0].mxu0
    %v1646 = vadd.f32 0.0, %v1645
    %1647 = vmatprep.mubr.bf16.mxu0 %v1104
    %1648 = vmatmul.mubr.bf16.gmra.mrb[0].mxu0 %v1103
    %v1649 = vpop.f32.mrb[0].mxu0
    %v1650 = vadd.f32 0.0, %v1649
    %v1651 = vpop.f32.mrb[0].mxu0
    %v1652 = vadd.f32 0.0, %v1651
    %v1653 = vpop.f32.mrb[0].mxu0
    %v1654 = vadd.f32 0.0, %v1653
    %v1655 = vpop.f32.mrb[0].mxu0
    %v1656 = vadd.f32 0.0, %v1655
    %1657 = vmatprep.mubr.bf16.mxu0 %v1106
    %1658 = vmatmul.mubr.bf16.gmra.mrb[0].mxu0 %v1105
    %v1659 = vpop.f32.mrb[0].mxu0
    %v1660 = vadd.f32 0.0, %v1659
    %v1661 = vpop.f32.mrb[0].mxu0
    %v1662 = vadd.f32 0.0, %v1661
    %v1663 = vpop.f32.mrb[0].mxu0
    %v1664 = vadd.f32 0.0, %v1663
    %v1665 = vpop.f32.mrb[0].mxu0
    %v1666 = vadd.f32 0.0, %v1665
    %1667 = vmatprep.mubr.bf16.mxu0 %v1108
    %1668 = vmatmul.mubr.bf16.gmra.mrb[0].mxu0 %v1107
    %v1669 = vpop.f32.mrb[0].mxu0
    %v1670 = vadd.f32 0.0, %v1669
    %v1671 = vpop.f32.mrb[0].mxu0
    %v1672 = vadd.f32 0.0, %v1671
    %v1673 = vpop.f32.mrb[0].mxu0
    %v1674 = vadd.f32 0.0, %v1673
    %v1675 = vpop.f32.mrb[0].mxu0
    %v1676 = vadd.f32 0.0, %v1675
    %1677 = vmatprep.mubr.bf16.mxu0 %v1110
    %1678 = vmatmul.mubr.bf16.gmra.mrb[0].mxu0 %v1109
    %v1679 = vpop.f32.mrb[0].mxu0
    %v1680 = vadd.f32 0.0, %v1679
    %v1681 = vpop.f32.mrb[0].mxu0
    %v1682 = vadd.f32 0.0, %v1681
    %v1683 = vpop.f32.mrb[0].mxu0
    %v1684 = vadd.f32 0.0, %v1683
    %v1685 = vpop.f32.mrb[0].mxu0
    %v1686 = vadd.f32 0.0, %v1685
    %1687 = vdwg.mxu0
    %1688 = vmatprep.subr.bf16.mxu0 %v1370
    %1689 = vmatpush1.bf16.msra.mxu0 %v1369
    %1690 = vmatprep.subr.bf16.mxu0 %v1374
    %1691 = vmatpush1.bf16.msra.mxu0 %v1373
    %1692 = vmatprep.subr.bf16.mxu0 %v1378
    %1693 = vmatpush1.bf16.msra.mxu0 %v1377
    %1694 = vmatprep.subr.bf16.mxu0 %v1382
    %1695 = vmatpush1.bf16.msra.mxu0 %v1381
    %1696 = vmatprep.subr.bf16.mxu0 %v1386
    %1697 = vmatpush1.bf16.msra.mxu0 %v1385
    %1698 = vmatprep.subr.bf16.mxu0 %v1390
    %1699 = vmatpush1.bf16.msra.mxu0 %v1389
    %1700 = vmatprep.subr.bf16.mxu0 %v1394
    %1701 = vmatpush1.bf16.msra.mxu0 %v1393
    %1702 = vmatprep.subr.bf16.mxu0 %v1398
    %1703 = vmatpush1.bf16.msra.mxu0 %v1397
    %1704 = vmatprep.subr.bf16.mxu0 %v1402
    %1705 = vmatpush1.bf16.msra.mxu0 %v1401
    %1706 = vmatprep.subr.bf16.mxu0 %v1406
    %1707 = vmatpush1.bf16.msra.mxu0 %v1405
    %1708 = vmatprep.subr.bf16.mxu0 %v1410
    %1709 = vmatpush1.bf16.msra.mxu0 %v1409
    %1710 = vmatprep.subr.bf16.mxu0 %v1414
    %1711 = vmatpush1.bf16.msra.mxu0 %v1413
    %1712 = vmatprep.subr.bf16.mxu0 %v1418
    %1713 = vmatpush1.bf16.msra.mxu0 %v1417
    %1714 = vmatprep.subr.bf16.mxu0 %v1422
    %1715 = vmatpush1.bf16.msra.mxu0 %v1421
    %1716 = vmatprep.subr.bf16.mxu0 %v1426
    %1717 = vmatpush1.bf16.msra.mxu0 %v1425
    %1718 = vmatprep.subr.bf16.mxu0 %v1430
    %1719 = vmatpush1.bf16.msra.mxu0 %v1429
    %1720 = vmatprep.mubr.bf16.mxu0 %v1080
    %1721 = vmatmul.mubr.bf16.gmra.mrb[0].mxu0 %v1079
    %v1722 = vpop.f32.mrb[0].mxu0
    %v1723 = vadd.f32 0.0, %v1722
    %v1724 = vpop.f32.mrb[0].mxu0
    %v1725 = vadd.f32 0.0, %v1724
    %v1726 = vpop.f32.mrb[0].mxu0
    %v1727 = vadd.f32 0.0, %v1726
    %v1728 = vpop.f32.mrb[0].mxu0
    %v1729 = vadd.f32 0.0, %v1728
    %1730 = vmatprep.mubr.bf16.mxu0 %v1082
    %1731 = vmatmul.mubr.bf16.gmra.mrb[0].mxu0 %v1081
    %v1732 = vpop.f32.mrb[0].mxu0
    %v1733 = vadd.f32 0.0, %v1732
    %v1734 = vpop.f32.mrb[0].mxu0
    %v1735 = vadd.f32 0.0, %v1734
    %v1736 = vpop.f32.mrb[0].mxu0
    %v1737 = vadd.f32 0.0, %v1736
    %v1738 = vpop.f32.mrb[0].mxu0
    %v1739 = vadd.f32 0.0, %v1738
    %1740 = vmatprep.mubr.bf16.mxu0 %v1084
    %1741 = vmatmul.mubr.bf16.gmra.mrb[0].mxu0 %v1083
    %v1742 = vpop.f32.mrb[0].mxu0
    %v1743 = vadd.f32 0.0, %v1742
    %v1744 = vpop.f32.mrb[0].mxu0
    %v1745 = vadd.f32 0.0, %v1744
    %v1746 = vpop.f32.mrb[0].mxu0
    %v1747 = vadd.f32 0.0, %v1746
    %v1748 = vpop.f32.mrb[0].mxu0
    %v1749 = vadd.f32 0.0, %v1748
    %1750 = vmatprep.mubr.bf16.mxu0 %v1086
    %1751 = vmatmul.mubr.bf16.gmra.mrb[0].mxu0 %v1085
    %v1752 = vpop.f32.mrb[0].mxu0
    %v1753 = vadd.f32 0.0, %v1752
    %v1754 = vpop.f32.mrb[0].mxu0
    %v1755 = vadd.f32 0.0, %v1754
    %v1756 = vpop.f32.mrb[0].mxu0
    %v1757 = vadd.f32 0.0, %v1756
    %v1758 = vpop.f32.mrb[0].mxu0
    %v1759 = vadd.f32 0.0, %v1758
    %1760 = vmatprep.mubr.bf16.mxu0 %v1088
    %1761 = vmatmul.mubr.bf16.gmra.mrb[0].mxu0 %v1087
    %v1762 = vpop.f32.mrb[0].mxu0
    %v1763 = vadd.f32 0.0, %v1762
    %v1764 = vpop.f32.mrb[0].mxu0
    %v1765 = vadd.f32 0.0, %v1764
    %v1766 = vpop.f32.mrb[0].mxu0
    %v1767 = vadd.f32 0.0, %v1766
    %v1768 = vpop.f32.mrb[0].mxu0
    %v1769 = vadd.f32 0.0, %v1768
    %1770 = vmatprep.mubr.bf16.mxu0 %v1090
    %1771 = vmatmul.mubr.bf16.gmra.mrb[0].mxu0 %v1089
    %v1772 = vpop.f32.mrb[0].mxu0
    %v1773 = vadd.f32 0.0, %v1772
    %v1774 = vpop.f32.mrb[0].mxu0
    %v1775 = vadd.f32 0.0, %v1774
    %v1776 = vpop.f32.mrb[0].mxu0
    %v1777 = vadd.f32 0.0, %v1776
    %v1778 = vpop.f32.mrb[0].mxu0
    %v1779 = vadd.f32 0.0, %v1778
    %1780 = vmatprep.mubr.bf16.mxu0 %v1092
    %1781 = vmatmul.mubr.bf16.gmra.mrb[0].mxu0 %v1091
    %v1782 = vpop.f32.mrb[0].mxu0
    %v1783 = vadd.f32 0.0, %v1782
    %v1784 = vpop.f32.mrb[0].mxu0
    %v1785 = vadd.f32 0.0, %v1784
    %v1786 = vpop.f32.mrb[0].mxu0
    %v1787 = vadd.f32 0.0, %v1786
    %v1788 = vpop.f32.mrb[0].mxu0
    %v1789 = vadd.f32 0.0, %v1788
    %1790 = vmatprep.mubr.bf16.mxu0 %v1094
    %1791 = vmatmul.mubr.bf16.gmra.mrb[0].mxu0 %v1093
    %v1792 = vpop.f32.mrb[0].mxu0
    %v1793 = vadd.f32 0.0, %v1792
    %v1794 = vpop.f32.mrb[0].mxu0
    %v1795 = vadd.f32 0.0, %v1794
    %v1796 = vpop.f32.mrb[0].mxu0
    %v1797 = vadd.f32 0.0, %v1796
    %v1798 = vpop.f32.mrb[0].mxu0
    %v1799 = vadd.f32 0.0, %v1798
    %1800 = vmatprep.mubr.bf16.mxu0 %v1096
    %1801 = vmatmul.mubr.bf16.gmra.mrb[0].mxu0 %v1095
    %v1802 = vpop.f32.mrb[0].mxu0
    %v1803 = vadd.f32 0.0, %v1802
    %v1804 = vpop.f32.mrb[0].mxu0
    %v1805 = vadd.f32 0.0, %v1804
    %v1806 = vpop.f32.mrb[0].mxu0
    %v1807 = vadd.f32 0.0, %v1806
    %v1808 = vpop.f32.mrb[0].mxu0
    %v1809 = vadd.f32 0.0, %v1808
    %1810 = vmatprep.mubr.bf16.mxu0 %v1098
    %1811 = vmatmul.mubr.bf16.gmra.mrb[0].mxu0 %v1097
    %v1812 = vpop.f32.mrb[0].mxu0
    %v1813 = vadd.f32 0.0, %v1812
    %v1814 = vpop.f32.mrb[0].mxu0
    %v1815 = vadd.f32 0.0, %v1814
    %v1816 = vpop.f32.mrb[0].mxu0
    %v1817 = vadd.f32 0.0, %v1816
    %v1818 = vpop.f32.mrb[0].mxu0
    %v1819 = vadd.f32 0.0, %v1818
    %1820 = vmatprep.mubr.bf16.mxu0 %v1100
    %1821 = vmatmul.mubr.bf16.gmra.mrb[0].mxu0 %v1099
    %v1822 = vpop.f32.mrb[0].mxu0
    %v1823 = vadd.f32 0.0, %v1822
    %v1824 = vpop.f32.mrb[0].mxu0
    %v1825 = vadd.f32 0.0, %v1824
    %v1826 = vpop.f32.mrb[0].mxu0
    %v1827 = vadd.f32 0.0, %v1826
    %v1828 = vpop.f32.mrb[0].mxu0
    %v1829 = vadd.f32 0.0, %v1828
    %1830 = vmatprep.mubr.bf16.mxu0 %v1102
    %1831 = vmatmul.mubr.bf16.gmra.mrb[0].mxu0 %v1101
    %v1832 = vpop.f32.mrb[0].mxu0
    %v1833 = vadd.f32 0.0, %v1832
    %v1834 = vpop.f32.mrb[0].mxu0
    %v1835 = vadd.f32 0.0, %v1834
    %v1836 = vpop.f32.mrb[0].mxu0
    %v1837 = vadd.f32 0.0, %v1836
    %v1838 = vpop.f32.mrb[0].mxu0
    %v1839 = vadd.f32 0.0, %v1838
    %1840 = vmatprep.mubr.bf16.mxu0 %v1104
    %1841 = vmatmul.mubr.bf16.gmra.mrb[0].mxu0 %v1103
    %v1842 = vpop.f32.mrb[0].mxu0
    %v1843 = vadd.f32 0.0, %v1842
    %v1844 = vpop.f32.mrb[0].mxu0
    %v1845 = vadd.f32 0.0, %v1844
    %v1846 = vpop.f32.mrb[0].mxu0
    %v1847 = vadd.f32 0.0, %v1846
    %v1848 = vpop.f32.mrb[0].mxu0
    %v1849 = vadd.f32 0.0, %v1848
    %1850 = vmatprep.mubr.bf16.mxu0 %v1106
    %1851 = vmatmul.mubr.bf16.gmra.mrb[0].mxu0 %v1105
    %v1852 = vpop.f32.mrb[0].mxu0
    %v1853 = vadd.f32 0.0, %v1852
    %v1854 = vpop.f32.mrb[0].mxu0
    %v1855 = vadd.f32 0.0, %v1854
    %v1856 = vpop.f32.mrb[0].mxu0
    %v1857 = vadd.f32 0.0, %v1856
    %v1858 = vpop.f32.mrb[0].mxu0
    %v1859 = vadd.f32 0.0, %v1858
    %1860 = vmatprep.mubr.bf16.mxu0 %v1108
    %1861 = vmatmul.mubr.bf16.gmra.mrb[0].mxu0 %v1107
    %v1862 = vpop.f32.mrb[0].mxu0
    %v1863 = vadd.f32 0.0, %v1862
    %v1864 = vpop.f32.mrb[0].mxu0
    %v1865 = vadd.f32 0.0, %v1864
    %v1866 = vpop.f32.mrb[0].mxu0
    %v1867 = vadd.f32 0.0, %v1866
    %v1868 = vpop.f32.mrb[0].mxu0
    %v1869 = vadd.f32 0.0, %v1868
    %1870 = vmatprep.mubr.bf16.mxu0 %v1110
    %1871 = vmatmul.mubr.bf16.gmra.mrb[0].mxu0 %v1109
    %v1872 = vpop.f32.mrb[0].mxu0
    %v1873 = vadd.f32 0.0, %v1872
    %v1874 = vpop.f32.mrb[0].mxu0
    %v1875 = vadd.f32 0.0, %v1874
    %v1876 = vpop.f32.mrb[0].mxu0
    %v1877 = vadd.f32 0.0, %v1876
    %v1878 = vpop.f32.mrb[0].mxu0
    %v1879 = vadd.f32 0.0, %v1878
    %1880 = vdwg.mxu0
    %v1881 = vpack.c.bf16 %v1534, %v1530
    %v1882 = vpack.c.bf16 %v1536, %v1532
    %v1883 = vpack.c.bf16 %v1727, %v1723
    %v1884 = vpack.c.bf16 %v1729, %v1725
    %v1885 = vpack.c.bf16 %v1544, %v1540
    %v1886 = vpack.c.bf16 %v1546, %v1542
    %v1887 = vpack.c.bf16 %v1737, %v1733
    %v1888 = vpack.c.bf16 %v1739, %v1735
    %v1889 = vpack.c.bf16 %v1554, %v1550
    %v1890 = vpack.c.bf16 %v1556, %v1552
    %v1891 = vpack.c.bf16 %v1747, %v1743
    %v1892 = vpack.c.bf16 %v1749, %v1745
    %v1893 = vpack.c.bf16 %v1564, %v1560
    %v1894 = vpack.c.bf16 %v1566, %v1562
    %v1895 = vpack.c.bf16 %v1757, %v1753
    %v1896 = vpack.c.bf16 %v1759, %v1755
    %v1897 = vpack.c.bf16 %v1574, %v1570
    %v1898 = vpack.c.bf16 %v1576, %v1572
    %v1899 = vpack.c.bf16 %v1767, %v1763
    %v1900 = vpack.c.bf16 %v1769, %v1765
    %v1901 = vpack.c.bf16 %v1584, %v1580
    %v1902 = vpack.c.bf16 %v1586, %v1582
    %v1903 = vpack.c.bf16 %v1777, %v1773
    %v1904 = vpack.c.bf16 %v1779, %v1775
    %v1905 = vpack.c.bf16 %v1594, %v1590
    %v1906 = vpack.c.bf16 %v1596, %v1592
    %v1907 = vpack.c.bf16 %v1787, %v1783
    %v1908 = vpack.c.bf16 %v1789, %v1785
    %v1909 = vpack.c.bf16 %v1604, %v1600
    %v1910 = vpack.c.bf16 %v1606, %v1602
    %v1911 = vpack.c.bf16 %v1797, %v1793
    %v1912 = vpack.c.bf16 %v1799, %v1795
    %v1913 = vpack.c.bf16 %v1614, %v1610
    %v1914 = vpack.c.bf16 %v1616, %v1612
    %v1915 = vpack.c.bf16 %v1807, %v1803
    %v1916 = vpack.c.bf16 %v1809, %v1805
    %v1917 = vpack.c.bf16 %v1624, %v1620
    %v1918 = vpack.c.bf16 %v1626, %v1622
    %v1919 = vpack.c.bf16 %v1817, %v1813
    %v1920 = vpack.c.bf16 %v1819, %v1815
    %v1921 = vpack.c.bf16 %v1634, %v1630
    %v1922 = vpack.c.bf16 %v1636, %v1632
    %v1923 = vpack.c.bf16 %v1827, %v1823
    %v1924 = vpack.c.bf16 %v1829, %v1825
    %v1925 = vpack.c.bf16 %v1644, %v1640
    %v1926 = vpack.c.bf16 %v1646, %v1642
    %v1927 = vpack.c.bf16 %v1837, %v1833
    %v1928 = vpack.c.bf16 %v1839, %v1835
    %v1929 = vpack.c.bf16 %v1654, %v1650
    %v1930 = vpack.c.bf16 %v1656, %v1652
    %v1931 = vpack.c.bf16 %v1847, %v1843
    %v1932 = vpack.c.bf16 %v1849, %v1845
    %v1933 = vpack.c.bf16 %v1664, %v1660
    %v1934 = vpack.c.bf16 %v1666, %v1662
    %v1935 = vpack.c.bf16 %v1857, %v1853
    %v1936 = vpack.c.bf16 %v1859, %v1855
    %v1937 = vpack.c.bf16 %v1674, %v1670
    %v1938 = vpack.c.bf16 %v1676, %v1672
    %v1939 = vpack.c.bf16 %v1867, %v1863
    %v1940 = vpack.c.bf16 %v1869, %v1865
    %v1941 = vpack.c.bf16 %v1684, %v1680
    %v1942 = vpack.c.bf16 %v1686, %v1682
    %v1943 = vpack.c.bf16 %v1877, %v1873
    %v1944 = vpack.c.bf16 %v1879, %v1875
    %v1945 = vmul.bf16 %v1881, %v1881
    %v1946 = vmul.bf16 %v1882, %v1882
    %v1947 = vmul.bf16 %v1883, %v1883
    %v1948 = vmul.bf16 %v1884, %v1884
    %v1949 = vmul.bf16 %v1885, %v1885
    %v1950 = vmul.bf16 %v1886, %v1886
    %v1951 = vmul.bf16 %v1887, %v1887
    %v1952 = vmul.bf16 %v1888, %v1888
    %v1953 = vmul.bf16 %v1889, %v1889
    %v1954 = vmul.bf16 %v1890, %v1890
    %v1955 = vmul.bf16 %v1891, %v1891
    %v1956 = vmul.bf16 %v1892, %v1892
    %v1957 = vmul.bf16 %v1893, %v1893
    %v1958 = vmul.bf16 %v1894, %v1894
    %v1959 = vmul.bf16 %v1895, %v1895
    %v1960 = vmul.bf16 %v1896, %v1896
    %v1961 = vmul.bf16 %v1897, %v1897
    %v1962 = vmul.bf16 %v1898, %v1898
    %v1963 = vmul.bf16 %v1899, %v1899
    %v1964 = vmul.bf16 %v1900, %v1900
    %v1965 = vmul.bf16 %v1901, %v1901
    %v1966 = vmul.bf16 %v1902, %v1902
    %v1967 = vmul.bf16 %v1903, %v1903
    %v1968 = vmul.bf16 %v1904, %v1904
    %v1969 = vmul.bf16 %v1905, %v1905
    %v1970 = vmul.bf16 %v1906, %v1906
    %v1971 = vmul.bf16 %v1907, %v1907
    %v1972 = vmul.bf16 %v1908, %v1908
    %v1973 = vmul.bf16 %v1909, %v1909
    %v1974 = vmul.bf16 %v1910, %v1910
    %v1975 = vmul.bf16 %v1911, %v1911
    %v1976 = vmul.bf16 %v1912, %v1912
    %v1977 = vmul.bf16 %v1913, %v1913
    %v1978 = vmul.bf16 %v1914, %v1914
    %v1979 = vmul.bf16 %v1915, %v1915
    %v1980 = vmul.bf16 %v1916, %v1916
    %v1981 = vmul.bf16 %v1917, %v1917
    %v1982 = vmul.bf16 %v1918, %v1918
    %v1983 = vmul.bf16 %v1919, %v1919
    %v1984 = vmul.bf16 %v1920, %v1920
    %v1985 = vmul.bf16 %v1921, %v1921
    %v1986 = vmul.bf16 %v1922, %v1922
    %v1987 = vmul.bf16 %v1923, %v1923
    %v1988 = vmul.bf16 %v1924, %v1924
    %v1989 = vmul.bf16 %v1925, %v1925
    %v1990 = vmul.bf16 %v1926, %v1926
    %v1991 = vmul.bf16 %v1927, %v1927
    %v1992 = vmul.bf16 %v1928, %v1928
    %v1993 = vmul.bf16 %v1929, %v1929
    %v1994 = vmul.bf16 %v1930, %v1930
    %v1995 = vmul.bf16 %v1931, %v1931
    %v1996 = vmul.bf16 %v1932, %v1932
    %v1997 = vmul.bf16 %v1933, %v1933
    %v1998 = vmul.bf16 %v1934, %v1934
    %v1999 = vmul.bf16 %v1935, %v1935
    %v2000 = vmul.bf16 %v1936, %v1936
    %v2001 = vmul.bf16 %v1937, %v1937
    %v2002 = vmul.bf16 %v1938, %v1938
    %v2003 = vmul.bf16 %v1939, %v1939
    %v2004 = vmul.bf16 %v1940, %v1940
    %v2005 = vmul.bf16 %v1941, %v1941
    %v2006 = vmul.bf16 %v1942, %v1942
    %v2007 = vmul.bf16 %v1943, %v1943
    %v2008 = vmul.bf16 %v1944, %v1944
    %v2009 = vmul.bf16 %v1881, %v1945
    %v2010 = vmul.bf16 %v1882, %v1946
    %v2011 = vmul.bf16 %v1883, %v1947
    %v2012 = vmul.bf16 %v1884, %v1948
    %v2013 = vmul.bf16 %v1885, %v1949
    %v2014 = vmul.bf16 %v1886, %v1950
    %v2015 = vmul.bf16 %v1887, %v1951
    %v2016 = vmul.bf16 %v1888, %v1952
    %v2017 = vmul.bf16 %v1889, %v1953
    %v2018 = vmul.bf16 %v1890, %v1954
    %v2019 = vmul.bf16 %v1891, %v1955
    %v2020 = vmul.bf16 %v1892, %v1956
    %v2021 = vmul.bf16 %v1893, %v1957
    %v2022 = vmul.bf16 %v1894, %v1958
    %v2023 = vmul.bf16 %v1895, %v1959
    %v2024 = vmul.bf16 %v1896, %v1960
    %v2025 = vmul.bf16 %v1897, %v1961
    %v2026 = vmul.bf16 %v1898, %v1962
    %v2027 = vmul.bf16 %v1899, %v1963
    %v2028 = vmul.bf16 %v1900, %v1964
    %v2029 = vmul.bf16 %v1901, %v1965
    %v2030 = vmul.bf16 %v1902, %v1966
    %v2031 = vmul.bf16 %v1903, %v1967
    %v2032 = vmul.bf16 %v1904, %v1968
    %v2033 = vmul.bf16 %v1905, %v1969
    %v2034 = vmul.bf16 %v1906, %v1970
    %v2035 = vmul.bf16 %v1907, %v1971
    %v2036 = vmul.bf16 %v1908, %v1972
    %v2037 = vmul.bf16 %v1909, %v1973
    %v2038 = vmul.bf16 %v1910, %v1974
    %v2039 = vmul.bf16 %v1911, %v1975
    %v2040 = vmul.bf16 %v1912, %v1976
    %v2041 = vmul.bf16 %v1913, %v1977
    %v2042 = vmul.bf16 %v1914, %v1978
    %v2043 = vmul.bf16 %v1915, %v1979
    %v2044 = vmul.bf16 %v1916, %v1980
    %v2045 = vmul.bf16 %v1917, %v1981
    %v2046 = vmul.bf16 %v1918, %v1982
    %v2047 = vmul.bf16 %v1919, %v1983
    %v2048 = vmul.bf16 %v1920, %v1984
    %v2049 = vmul.bf16 %v1921, %v1985
    %v2050 = vmul.bf16 %v1922, %v1986
    %v2051 = vmul.bf16 %v1923, %v1987
    %v2052 = vmul.bf16 %v1924, %v1988
    %v2053 = vmul.bf16 %v1925, %v1989
    %v2054 = vmul.bf16 %v1926, %v1990
    %v2055 = vmul.bf16 %v1927, %v1991
    %v2056 = vmul.bf16 %v1928, %v1992
    %v2057 = vmul.bf16 %v1929, %v1993
    %v2058 = vmul.bf16 %v1930, %v1994
    %v2059 = vmul.bf16 %v1931, %v1995
    %v2060 = vmul.bf16 %v1932, %v1996
    %v2061 = vmul.bf16 %v1933, %v1997
    %v2062 = vmul.bf16 %v1934, %v1998
    %v2063 = vmul.bf16 %v1935, %v1999
    %v2064 = vmul.bf16 %v1936, %v2000
    %v2065 = vmul.bf16 %v1937, %v2001
    %v2066 = vmul.bf16 %v1938, %v2002
    %v2067 = vmul.bf16 %v1939, %v2003
    %v2068 = vmul.bf16 %v1940, %v2004
    %v2069 = vmul.bf16 %v1941, %v2005
    %v2070 = vmul.bf16 %v1942, %v2006
    %v2071 = vmul.bf16 %v1943, %v2007
    %v2072 = vmul.bf16 %v1944, %v2008
    %v2073 = vmul.bf16 %v2009, 1027030327
    %v2074 = vmul.bf16 %v2010, 1027030327
    %v2075 = vmul.bf16 %v2011, 1027030327
    %v2076 = vmul.bf16 %v2012, 1027030327
    %v2077 = vmul.bf16 %v2013, 1027030327
    %v2078 = vmul.bf16 %v2014, 1027030327
    %v2079 = vmul.bf16 %v2015, 1027030327
    %v2080 = vmul.bf16 %v2016, 1027030327
    %v2081 = vmul.bf16 %v2017, 1027030327
    %v2082 = vmul.bf16 %v2018, 1027030327
    %v2083 = vmul.bf16 %v2019, 1027030327
    %v2084 = vmul.bf16 %v2020, 1027030327
    %v2085 = vmul.bf16 %v2021, 1027030327
    %v2086 = vmul.bf16 %v2022, 1027030327
    %v2087 = vmul.bf16 %v2023, 1027030327
    %v2088 = vmul.bf16 %v2024, 1027030327
    %v2089 = vmul.bf16 %v2025, 1027030327
    %v2090 = vmul.bf16 %v2026, 1027030327
    %v2091 = vmul.bf16 %v2027, 1027030327
    %v2092 = vmul.bf16 %v2028, 1027030327
    %v2093 = vmul.bf16 %v2029, 1027030327
    %v2094 = vmul.bf16 %v2030, 1027030327
    %v2095 = vmul.bf16 %v2031, 1027030327
    %v2096 = vmul.bf16 %v2032, 1027030327
    %v2097 = vmul.bf16 %v2033, 1027030327
    %v2098 = vmul.bf16 %v2034, 1027030327
    %v2099 = vmul.bf16 %v2035, 1027030327
    %v2100 = vmul.bf16 %v2036, 1027030327
    %v2101 = vmul.bf16 %v2037, 1027030327
    %v2102 = vmul.bf16 %v2038, 1027030327
    %v2103 = vmul.bf16 %v2039, 1027030327
    %v2104 = vmul.bf16 %v2040, 1027030327
    %v2105 = vmul.bf16 %v2041, 1027030327
    %v2106 = vmul.bf16 %v2042, 1027030327
    %v2107 = vmul.bf16 %v2043, 1027030327
    %v2108 = vmul.bf16 %v2044, 1027030327
    %v2109 = vmul.bf16 %v2045, 1027030327
    %v2110 = vmul.bf16 %v2046, 1027030327
    %v2111 = vmul.bf16 %v2047, 1027030327
    %v2112 = vmul.bf16 %v2048, 1027030327
    %v2113 = vmul.bf16 %v2049, 1027030327
    %v2114 = vmul.bf16 %v2050, 1027030327
    %v2115 = vmul.bf16 %v2051, 1027030327
    %v2116 = vmul.bf16 %v2052, 1027030327
    %v2117 = vmul.bf16 %v2053, 1027030327
    %v2118 = vmul.bf16 %v2054, 1027030327
    %v2119 = vmul.bf16 %v2055, 1027030327
    %v2120 = vmul.bf16 %v2056, 1027030327
    %v2121 = vmul.bf16 %v2057, 1027030327
    %v2122 = vmul.bf16 %v2058, 1027030327
    %v2123 = vmul.bf16 %v2059, 1027030327
    %v2124 = vmul.bf16 %v2060, 1027030327
    %v2125 = vmul.bf16 %v2061, 1027030327
    %v2126 = vmul.bf16 %v2062, 1027030327
    %v2127 = vmul.bf16 %v2063, 1027030327
    %v2128 = vmul.bf16 %v2064, 1027030327
    %v2129 = vmul.bf16 %v2065, 1027030327
    %v2130 = vmul.bf16 %v2066, 1027030327
    %v2131 = vmul.bf16 %v2067, 1027030327
    %v2132 = vmul.bf16 %v2068, 1027030327
    %v2133 = vmul.bf16 %v2069, 1027030327
    %v2134 = vmul.bf16 %v2070, 1027030327
    %v2135 = vmul.bf16 %v2071, 1027030327
    %v2136 = vmul.bf16 %v2072, 1027030327
    %v2137 = vadd.bf16 %v1881, %v2073
    %v2138 = vadd.bf16 %v1882, %v2074
    %v2139 = vadd.bf16 %v1883, %v2075
    %v2140 = vadd.bf16 %v1884, %v2076
    %v2141 = vadd.bf16 %v1885, %v2077
    %v2142 = vadd.bf16 %v1886, %v2078
    %v2143 = vadd.bf16 %v1887, %v2079
    %v2144 = vadd.bf16 %v1888, %v2080
    %v2145 = vadd.bf16 %v1889, %v2081
    %v2146 = vadd.bf16 %v1890, %v2082
    %v2147 = vadd.bf16 %v1891, %v2083
    %v2148 = vadd.bf16 %v1892, %v2084
    %v2149 = vadd.bf16 %v1893, %v2085
    %v2150 = vadd.bf16 %v1894, %v2086
    %v2151 = vadd.bf16 %v1895, %v2087
    %v2152 = vadd.bf16 %v1896, %v2088
    %v2153 = vadd.bf16 %v1897, %v2089
    %v2154 = vadd.bf16 %v1898, %v2090
    %v2155 = vadd.bf16 %v1899, %v2091
    %v2156 = vadd.bf16 %v1900, %v2092
    %v2157 = vadd.bf16 %v1901, %v2093
    %v2158 = vadd.bf16 %v1902, %v2094
    %v2159 = vadd.bf16 %v1903, %v2095
    %v2160 = vadd.bf16 %v1904, %v2096
    %v2161 = vadd.bf16 %v1905, %v2097
    %v2162 = vadd.bf16 %v1906, %v2098
    %v2163 = vadd.bf16 %v1907, %v2099
    %v2164 = vadd.bf16 %v1908, %v2100
    %v2165 = vadd.bf16 %v1909, %v2101
    %v2166 = vadd.bf16 %v1910, %v2102
    %v2167 = vadd.bf16 %v1911, %v2103
    %v2168 = vadd.bf16 %v1912, %v2104
    %v2169 = vadd.bf16 %v1913, %v2105
    %v2170 = vadd.bf16 %v1914, %v2106
    %v2171 = vadd.bf16 %v1915, %v2107
    %v2172 = vadd.bf16 %v1916, %v2108
    %v2173 = vadd.bf16 %v1917, %v2109
    %v2174 = vadd.bf16 %v1918, %v2110
    %v2175 = vadd.bf16 %v1919, %v2111
    %v2176 = vadd.bf16 %v1920, %v2112
    %v2177 = vadd.bf16 %v1921, %v2113
    %v2178 = vadd.bf16 %v1922, %v2114
    %v2179 = vadd.bf16 %v1923, %v2115
    %v2180 = vadd.bf16 %v1924, %v2116
    %v2181 = vadd.bf16 %v1925, %v2117
    %v2182 = vadd.bf16 %v1926, %v2118
    %v2183 = vadd.bf16 %v1927, %v2119
    %v2184 = vadd.bf16 %v1928, %v2120
    %v2185 = vadd.bf16 %v1929, %v2121
    %v2186 = vadd.bf16 %v1930, %v2122
    %v2187 = vadd.bf16 %v1931, %v2123
    %v2188 = vadd.bf16 %v1932, %v2124
    %v2189 = vadd.bf16 %v1933, %v2125
    %v2190 = vadd.bf16 %v1934, %v2126
    %v2191 = vadd.bf16 %v1935, %v2127
    %v2192 = vadd.bf16 %v1936, %v2128
    %v2193 = vadd.bf16 %v1937, %v2129
    %v2194 = vadd.bf16 %v1938, %v2130
    %v2195 = vadd.bf16 %v1939, %v2131
    %v2196 = vadd.bf16 %v1940, %v2132
    %v2197 = vadd.bf16 %v1941, %v2133
    %v2198 = vadd.bf16 %v1942, %v2134
    %v2199 = vadd.bf16 %v1943, %v2135
    %v2200 = vadd.bf16 %v1944, %v2136
    %v2201 = vmul.bf16 %v2137, 1061961548
    %v2202 = vmul.bf16 %v2138, 1061961548
    %v2203 = vmul.bf16 %v2139, 1061961548
    %v2204 = vmul.bf16 %v2140, 1061961548
    %v2205 = vmul.bf16 %v2141, 1061961548
    %v2206 = vmul.bf16 %v2142, 1061961548
    %v2207 = vmul.bf16 %v2143, 1061961548
    %v2208 = vmul.bf16 %v2144, 1061961548
    %v2209 = vmul.bf16 %v2145, 1061961548
    %v2210 = vmul.bf16 %v2146, 1061961548
    %v2211 = vmul.bf16 %v2147, 1061961548
    %v2212 = vmul.bf16 %v2148, 1061961548
    %v2213 = vmul.bf16 %v2149, 1061961548
    %v2214 = vmul.bf16 %v2150, 1061961548
    %v2215 = vmul.bf16 %v2151, 1061961548
    %v2216 = vmul.bf16 %v2152, 1061961548
    %v2217 = vmul.bf16 %v2153, 1061961548
    %v2218 = vmul.bf16 %v2154, 1061961548
    %v2219 = vmul.bf16 %v2155, 1061961548
    %v2220 = vmul.bf16 %v2156, 1061961548
    %v2221 = vmul.bf16 %v2157, 1061961548
    %v2222 = vmul.bf16 %v2158, 1061961548
    %v2223 = vmul.bf16 %v2159, 1061961548
    %v2224 = vmul.bf16 %v2160, 1061961548
    %v2225 = vmul.bf16 %v2161, 1061961548
    %v2226 = vmul.bf16 %v2162, 1061961548
    %v2227 = vmul.bf16 %v2163, 1061961548
    %v2228 = vmul.bf16 %v2164, 1061961548
    %v2229 = vmul.bf16 %v2165, 1061961548
    %v2230 = vmul.bf16 %v2166, 1061961548
    %v2231 = vmul.bf16 %v2167, 1061961548
    %v2232 = vmul.bf16 %v2168, 1061961548
    %v2233 = vmul.bf16 %v2169, 1061961548
    %v2234 = vmul.bf16 %v2170, 1061961548
    %v2235 = vmul.bf16 %v2171, 1061961548
    %v2236 = vmul.bf16 %v2172, 1061961548
    %v2237 = vmul.bf16 %v2173, 1061961548
    %v2238 = vmul.bf16 %v2174, 1061961548
    %v2239 = vmul.bf16 %v2175, 1061961548
    %v2240 = vmul.bf16 %v2176, 1061961548
    %v2241 = vmul.bf16 %v2177, 1061961548
    %v2242 = vmul.bf16 %v2178, 1061961548
    %v2243 = vmul.bf16 %v2179, 1061961548
    %v2244 = vmul.bf16 %v2180, 1061961548
    %v2245 = vmul.bf16 %v2181, 1061961548
    %v2246 = vmul.bf16 %v2182, 1061961548
    %v2247 = vmul.bf16 %v2183, 1061961548
    %v2248 = vmul.bf16 %v2184, 1061961548
    %v2249 = vmul.bf16 %v2185, 1061961548
    %v2250 = vmul.bf16 %v2186, 1061961548
    %v2251 = vmul.bf16 %v2187, 1061961548
    %v2252 = vmul.bf16 %v2188, 1061961548
    %v2253 = vmul.bf16 %v2189, 1061961548
    %v2254 = vmul.bf16 %v2190, 1061961548
    %v2255 = vmul.bf16 %v2191, 1061961548
    %v2256 = vmul.bf16 %v2192, 1061961548
    %v2257 = vmul.bf16 %v2193, 1061961548
    %v2258 = vmul.bf16 %v2194, 1061961548
    %v2259 = vmul.bf16 %v2195, 1061961548
    %v2260 = vmul.bf16 %v2196, 1061961548
    %v2261 = vmul.bf16 %v2197, 1061961548
    %v2262 = vmul.bf16 %v2198, 1061961548
    %v2263 = vmul.bf16 %v2199, 1061961548
    %v2264 = vmul.bf16 %v2200, 1061961548
    %v2265 = vtanh.bf16.pop %v2201
    %v2266 = vtanh.bf16.pop %v2202
    %v2267 = vtanh.bf16.pop %v2203
    %v2268 = vtanh.bf16.pop %v2204
    %v2269 = vtanh.bf16.pop %v2205
    %v2270 = vtanh.bf16.pop %v2206
    %v2271 = vtanh.bf16.pop %v2207
    %v2272 = vtanh.bf16.pop %v2208
    %v2273 = vtanh.bf16.pop %v2209
    %v2274 = vtanh.bf16.pop %v2210
    %v2275 = vtanh.bf16.pop %v2211
    %v2276 = vtanh.bf16.pop %v2212
    %v2277 = vtanh.bf16.pop %v2213
    %v2278 = vtanh.bf16.pop %v2214
    %v2279 = vtanh.bf16.pop %v2215
    %v2280 = vtanh.bf16.pop %v2216
    %v2281 = vtanh.bf16.pop %v2217
    %v2282 = vtanh.bf16.pop %v2218
    %v2283 = vtanh.bf16.pop %v2219
    %v2284 = vtanh.bf16.pop %v2220
    %v2285 = vtanh.bf16.pop %v2221
    %v2286 = vtanh.bf16.pop %v2222
    %v2287 = vtanh.bf16.pop %v2223
    %v2288 = vtanh.bf16.pop %v2224
    %v2289 = vtanh.bf16.pop %v2225
    %v2290 = vtanh.bf16.pop %v2226
    %v2291 = vtanh.bf16.pop %v2227
    %v2292 = vtanh.bf16.pop %v2228
    %v2293 = vtanh.bf16.pop %v2229
    %v2294 = vtanh.bf16.pop %v2230
    %v2295 = vtanh.bf16.pop %v2231
    %v2296 = vtanh.bf16.pop %v2232
    %v2297 = vtanh.bf16.pop %v2233
    %v2298 = vtanh.bf16.pop %v2234
    %v2299 = vtanh.bf16.pop %v2235
    %v2300 = vtanh.bf16.pop %v2236
    %v2301 = vtanh.bf16.pop %v2237
    %v2302 = vtanh.bf16.pop %v2238
    %v2303 = vtanh.bf16.pop %v2239
    %v2304 = vtanh.bf16.pop %v2240
    %v2305 = vtanh.bf16.pop %v2241
    %v2306 = vtanh.bf16.pop %v2242
    %v2307 = vtanh.bf16.pop %v2243
    %v2308 = vtanh.bf16.pop %v2244
    %v2309 = vtanh.bf16.pop %v2245
    %v2310 = vtanh.bf16.pop %v2246
    %v2311 = vtanh.bf16.pop %v2247
    %v2312 = vtanh.bf16.pop %v2248
    %v2313 = vtanh.bf16.pop %v2249
    %v2314 = vtanh.bf16.pop %v2250
    %v2315 = vtanh.bf16.pop %v2251
    %v2316 = vtanh.bf16.pop %v2252
    %v2317 = vtanh.bf16.pop %v2253
    %v2318 = vtanh.bf16.pop %v2254
    %v2319 = vtanh.bf16.pop %v2255
    %v2320 = vtanh.bf16.pop %v2256
    %v2321 = vtanh.bf16.pop %v2257
    %v2322 = vtanh.bf16.pop %v2258
    %v2323 = vtanh.bf16.pop %v2259
    %v2324 = vtanh.bf16.pop %v2260
    %v2325 = vtanh.bf16.pop %v2261
    %v2326 = vtanh.bf16.pop %v2262
    %v2327 = vtanh.bf16.pop %v2263
    %v2328 = vtanh.bf16.pop %v2264
    %v2329 = vadd.bf16 %v2265, 1065369472
    %v2330 = vadd.bf16 %v2266, 1065369472
    %v2331 = vadd.bf16 %v2267, 1065369472
    %v2332 = vadd.bf16 %v2268, 1065369472
    %v2333 = vadd.bf16 %v2269, 1065369472
    %v2334 = vadd.bf16 %v2270, 1065369472
    %v2335 = vadd.bf16 %v2271, 1065369472
    %v2336 = vadd.bf16 %v2272, 1065369472
    %v2337 = vadd.bf16 %v2273, 1065369472
    %v2338 = vadd.bf16 %v2274, 1065369472
    %v2339 = vadd.bf16 %v2275, 1065369472
    %v2340 = vadd.bf16 %v2276, 1065369472
    %v2341 = vadd.bf16 %v2277, 1065369472
    %v2342 = vadd.bf16 %v2278, 1065369472
    %v2343 = vadd.bf16 %v2279, 1065369472
    %v2344 = vadd.bf16 %v2280, 1065369472
    %v2345 = vadd.bf16 %v2281, 1065369472
    %v2346 = vadd.bf16 %v2282, 1065369472
    %v2347 = vadd.bf16 %v2283, 1065369472
    %v2348 = vadd.bf16 %v2284, 1065369472
    %v2349 = vadd.bf16 %v2285, 1065369472
    %v2350 = vadd.bf16 %v2286, 1065369472
    %v2351 = vadd.bf16 %v2287, 1065369472
    %v2352 = vadd.bf16 %v2288, 1065369472
    %v2353 = vadd.bf16 %v2289, 1065369472
    %v2354 = vadd.bf16 %v2290, 1065369472
    %v2355 = vadd.bf16 %v2291, 1065369472
    %v2356 = vadd.bf16 %v2292, 1065369472
    %v2357 = vadd.bf16 %v2293, 1065369472
    %v2358 = vadd.bf16 %v2294, 1065369472
    %v2359 = vadd.bf16 %v2295, 1065369472
    %v2360 = vadd.bf16 %v2296, 1065369472
    %v2361 = vadd.bf16 %v2297, 1065369472
    %v2362 = vadd.bf16 %v2298, 1065369472
    %v2363 = vadd.bf16 %v2299, 1065369472
    %v2364 = vadd.bf16 %v2300, 1065369472
    %v2365 = vadd.bf16 %v2301, 1065369472
    %v2366 = vadd.bf16 %v2302, 1065369472
    %v2367 = vadd.bf16 %v2303, 1065369472
    %v2368 = vadd.bf16 %v2304, 1065369472
    %v2369 = vadd.bf16 %v2305, 1065369472
    %v2370 = vadd.bf16 %v2306, 1065369472
    %v2371 = vadd.bf16 %v2307, 1065369472
    %v2372 = vadd.bf16 %v2308, 1065369472
    %v2373 = vadd.bf16 %v2309, 1065369472
    %v2374 = vadd.bf16 %v2310, 1065369472
    %v2375 = vadd.bf16 %v2311, 1065369472
    %v2376 = vadd.bf16 %v2312, 1065369472
    %v2377 = vadd.bf16 %v2313, 1065369472
    %v2378 = vadd.bf16 %v2314, 1065369472
    %v2379 = vadd.bf16 %v2315, 1065369472
    %v2380 = vadd.bf16 %v2316, 1065369472
    %v2381 = vadd.bf16 %v2317, 1065369472
    %v2382 = vadd.bf16 %v2318, 1065369472
    %v2383 = vadd.bf16 %v2319, 1065369472
    %v2384 = vadd.bf16 %v2320, 1065369472
    %v2385 = vadd.bf16 %v2321, 1065369472
    %v2386 = vadd.bf16 %v2322, 1065369472
    %v2387 = vadd.bf16 %v2323, 1065369472
    %v2388 = vadd.bf16 %v2324, 1065369472
    %v2389 = vadd.bf16 %v2325, 1065369472
    %v2390 = vadd.bf16 %v2326, 1065369472
    %v2391 = vadd.bf16 %v2327, 1065369472
    %v2392 = vadd.bf16 %v2328, 1065369472
    %v2393 = vmul.bf16 %v2329, 1056980736
    %v2394 = vmul.bf16 %v2330, 1056980736
    %v2395 = vmul.bf16 %v2331, 1056980736
    %v2396 = vmul.bf16 %v2332, 1056980736
    %v2397 = vmul.bf16 %v2333, 1056980736
    %v2398 = vmul.bf16 %v2334, 1056980736
    %v2399 = vmul.bf16 %v2335, 1056980736
    %v2400 = vmul.bf16 %v2336, 1056980736
    %v2401 = vmul.bf16 %v2337, 1056980736
    %v2402 = vmul.bf16 %v2338, 1056980736
    %v2403 = vmul.bf16 %v2339, 1056980736
    %v2404 = vmul.bf16 %v2340, 1056980736
    %v2405 = vmul.bf16 %v2341, 1056980736
    %v2406 = vmul.bf16 %v2342, 1056980736
    %v2407 = vmul.bf16 %v2343, 1056980736
    %v2408 = vmul.bf16 %v2344, 1056980736
    %v2409 = vmul.bf16 %v2345, 1056980736
    %v2410 = vmul.bf16 %v2346, 1056980736
    %v2411 = vmul.bf16 %v2347, 1056980736
    %v2412 = vmul.bf16 %v2348, 1056980736
    %v2413 = vmul.bf16 %v2349, 1056980736
    %v2414 = vmul.bf16 %v2350, 1056980736
    %v2415 = vmul.bf16 %v2351, 1056980736
    %v2416 = vmul.bf16 %v2352, 1056980736
    %v2417 = vmul.bf16 %v2353, 1056980736
    %v2418 = vmul.bf16 %v2354, 1056980736
    %v2419 = vmul.bf16 %v2355, 1056980736
    %v2420 = vmul.bf16 %v2356, 1056980736
    %v2421 = vmul.bf16 %v2357, 1056980736
    %v2422 = vmul.bf16 %v2358, 1056980736
    %v2423 = vmul.bf16 %v2359, 1056980736
    %v2424 = vmul.bf16 %v2360, 1056980736
    %v2425 = vmul.bf16 %v2361, 1056980736
    %v2426 = vmul.bf16 %v2362, 1056980736
    %v2427 = vmul.bf16 %v2363, 1056980736
    %v2428 = vmul.bf16 %v2364, 1056980736
    %v2429 = vmul.bf16 %v2365, 1056980736
    %v2430 = vmul.bf16 %v2366, 1056980736
    %v2431 = vmul.bf16 %v2367, 1056980736
    %v2432 = vmul.bf16 %v2368, 1056980736
    %v2433 = vmul.bf16 %v2369, 1056980736
    %v2434 = vmul.bf16 %v2370, 1056980736
    %v2435 = vmul.bf16 %v2371, 1056980736
    %v2436 = vmul.bf16 %v2372, 1056980736
    %v2437 = vmul.bf16 %v2373, 1056980736
    %v2438 = vmul.bf16 %v2374, 1056980736
    %v2439 = vmul.bf16 %v2375, 1056980736
    %v2440 = vmul.bf16 %v2376, 1056980736
    %v2441 = vmul.bf16 %v2377, 1056980736
    %v2442 = vmul.bf16 %v2378, 1056980736
    %v2443 = vmul.bf16 %v2379, 1056980736
    %v2444 = vmul.bf16 %v2380, 1056980736
    %v2445 = vmul.bf16 %v2381, 1056980736
    %v2446 = vmul.bf16 %v2382, 1056980736
    %v2447 = vmul.bf16 %v2383, 1056980736
    %v2448 = vmul.bf16 %v2384, 1056980736
    %v2449 = vmul.bf16 %v2385, 1056980736
    %v2450 = vmul.bf16 %v2386, 1056980736
    %v2451 = vmul.bf16 %v2387, 1056980736
    %v2452 = vmul.bf16 %v2388, 1056980736
    %v2453 = vmul.bf16 %v2389, 1056980736
    %v2454 = vmul.bf16 %v2390, 1056980736
    %v2455 = vmul.bf16 %v2391, 1056980736
    %v2456 = vmul.bf16 %v2392, 1056980736
    %v2457 = vmul.bf16 %v1881, %v2393
    %v2458 = vmul.bf16 %v1882, %v2394
    %v2459 = vmul.bf16 %v1883, %v2395
    %v2460 = vmul.bf16 %v1884, %v2396
    %v2461 = vmul.bf16 %v1885, %v2397
    %v2462 = vmul.bf16 %v1886, %v2398
    %v2463 = vmul.bf16 %v1887, %v2399
    %v2464 = vmul.bf16 %v1888, %v2400
    %v2465 = vmul.bf16 %v1889, %v2401
    %v2466 = vmul.bf16 %v1890, %v2402
    %v2467 = vmul.bf16 %v1891, %v2403
    %v2468 = vmul.bf16 %v1892, %v2404
    %v2469 = vmul.bf16 %v1893, %v2405
    %v2470 = vmul.bf16 %v1894, %v2406
    %v2471 = vmul.bf16 %v1895, %v2407
    %v2472 = vmul.bf16 %v1896, %v2408
    %v2473 = vmul.bf16 %v1897, %v2409
    %v2474 = vmul.bf16 %v1898, %v2410
    %v2475 = vmul.bf16 %v1899, %v2411
    %v2476 = vmul.bf16 %v1900, %v2412
    %v2477 = vmul.bf16 %v1901, %v2413
    %v2478 = vmul.bf16 %v1902, %v2414
    %v2479 = vmul.bf16 %v1903, %v2415
    %v2480 = vmul.bf16 %v1904, %v2416
    %v2481 = vmul.bf16 %v1905, %v2417
    %v2482 = vmul.bf16 %v1906, %v2418
    %v2483 = vmul.bf16 %v1907, %v2419
    %v2484 = vmul.bf16 %v1908, %v2420
    %v2485 = vmul.bf16 %v1909, %v2421
    %v2486 = vmul.bf16 %v1910, %v2422
    %v2487 = vmul.bf16 %v1911, %v2423
    %v2488 = vmul.bf16 %v1912, %v2424
    %v2489 = vmul.bf16 %v1913, %v2425
    %v2490 = vmul.bf16 %v1914, %v2426
    %v2491 = vmul.bf16 %v1915, %v2427
    %v2492 = vmul.bf16 %v1916, %v2428
    %v2493 = vmul.bf16 %v1917, %v2429
    %v2494 = vmul.bf16 %v1918, %v2430
    %v2495 = vmul.bf16 %v1919, %v2431
    %v2496 = vmul.bf16 %v1920, %v2432
    %v2497 = vmul.bf16 %v1921, %v2433
    %v2498 = vmul.bf16 %v1922, %v2434
    %v2499 = vmul.bf16 %v1923, %v2435
    %v2500 = vmul.bf16 %v1924, %v2436
    %v2501 = vmul.bf16 %v1925, %v2437
    %v2502 = vmul.bf16 %v1926, %v2438
    %v2503 = vmul.bf16 %v1927, %v2439
    %v2504 = vmul.bf16 %v1928, %v2440
    %v2505 = vmul.bf16 %v1929, %v2441
    %v2506 = vmul.bf16 %v1930, %v2442
    %v2507 = vmul.bf16 %v1931, %v2443
    %v2508 = vmul.bf16 %v1932, %v2444
    %v2509 = vmul.bf16 %v1933, %v2445
    %v2510 = vmul.bf16 %v1934, %v2446
    %v2511 = vmul.bf16 %v1935, %v2447
    %v2512 = vmul.bf16 %v1936, %v2448
    %v2513 = vmul.bf16 %v1937, %v2449
    %v2514 = vmul.bf16 %v1938, %v2450
    %v2515 = vmul.bf16 %v1939, %v2451
    %v2516 = vmul.bf16 %v1940, %v2452
    %v2517 = vmul.bf16 %v1941, %v2453
    %v2518 = vmul.bf16 %v1942, %v2454
    %v2519 = vmul.bf16 %v1943, %v2455
    %v2520 = vmul.bf16 %v1944, %v2456
    %v2521 = vld [vmem:[%s3] sm:$0xff]
    %v2522 = vld [vmem:[%s3 + $0x8] sm:$0xff]
    %v2523 = vld [vmem:[%s3 + $0x10] sm:$0xff]
    %v2524 = vld [vmem:[%s3 + $0x18] sm:$0xff]
    %v2525 = vld [vmem:[%s3 + $0x20] sm:$0xff]
    %v2526 = vld [vmem:[%s3 + $0x28] sm:$0xff]
    %v2527 = vld [vmem:[%s3 + $0x30] sm:$0xff]
    %v2528 = vld [vmem:[%s3 + $0x38] sm:$0xff]
    %v2529 = vld [vmem:[%s3 + $0x40] sm:$0xff]
    %v2530 = vld [vmem:[%s3 + $0x48] sm:$0xff]
    %v2531 = vld [vmem:[%s3 + $0x50] sm:$0xff]
    %v2532 = vld [vmem:[%s3 + $0x58] sm:$0xff]
    %v2533 = vld [vmem:[%s3 + $0x60] sm:$0xff]
    %v2534 = vld [vmem:[%s3 + $0x68] sm:$0xff]
    %v2535 = vld [vmem:[%s3 + $0x70] sm:$0xff]
    %v2536 = vld [vmem:[%s3 + $0x78] sm:$0xff]
    %v2537 = vld [vmem:[%s3 + $0x80] sm:$0xff]
    %v2538 = vld [vmem:[%s3 + $0x88] sm:$0xff]
    %v2539 = vld [vmem:[%s3 + $0x90] sm:$0xff]
    %v2540 = vld [vmem:[%s3 + $0x98] sm:$0xff]
    %v2541 = vld [vmem:[%s3 + $0xa0] sm:$0xff]
    %v2542 = vld [vmem:[%s3 + $0xa8] sm:$0xff]
    %v2543 = vld [vmem:[%s3 + $0xb0] sm:$0xff]
    %v2544 = vld [vmem:[%s3 + $0xb8] sm:$0xff]
    %v2545 = vld [vmem:[%s3 + $0xc0] sm:$0xff]
    %v2546 = vld [vmem:[%s3 + $0xc8] sm:$0xff]
    %v2547 = vld [vmem:[%s3 + $0xd0] sm:$0xff]
    %v2548 = vld [vmem:[%s3 + $0xd8] sm:$0xff]
    %v2549 = vld [vmem:[%s3 + $0xe0] sm:$0xff]
    %v2550 = vld [vmem:[%s3 + $0xe8] sm:$0xff]
    %v2551 = vld [vmem:[%s3 + $0xf0] sm:$0xff]
    %v2552 = vld [vmem:[%s3 + $0xf8] sm:$0xff]
    %v2553 = vld [vmem:[%s3 + $0x100] sm:$0xff]
    %v2554 = vld [vmem:[%s3 + $0x108] sm:$0xff]
    %v2555 = vld [vmem:[%s3 + $0x110] sm:$0xff]
    %v2556 = vld [vmem:[%s3 + $0x118] sm:$0xff]
    %v2557 = vld [vmem:[%s3 + $0x120] sm:$0xff]
    %v2558 = vld [vmem:[%s3 + $0x128] sm:$0xff]
    %v2559 = vld [vmem:[%s3 + $0x130] sm:$0xff]
    %v2560 = vld [vmem:[%s3 + $0x138] sm:$0xff]
    %v2561 = vld [vmem:[%s3 + $0x140] sm:$0xff]
    %v2562 = vld [vmem:[%s3 + $0x148] sm:$0xff]
    %v2563 = vld [vmem:[%s3 + $0x150] sm:$0xff]
    %v2564 = vld [vmem:[%s3 + $0x158] sm:$0xff]
    %v2565 = vld [vmem:[%s3 + $0x160] sm:$0xff]
    %v2566 = vld [vmem:[%s3 + $0x168] sm:$0xff]
    %v2567 = vld [vmem:[%s3 + $0x170] sm:$0xff]
    %v2568 = vld [vmem:[%s3 + $0x178] sm:$0xff]
    %v2569 = vld [vmem:[%s3 + $0x180] sm:$0xff]
    %v2570 = vld [vmem:[%s3 + $0x188] sm:$0xff]
    %v2571 = vld [vmem:[%s3 + $0x190] sm:$0xff]
    %v2572 = vld [vmem:[%s3 + $0x198] sm:$0xff]
    %v2573 = vld [vmem:[%s3 + $0x1a0] sm:$0xff]
    %v2574 = vld [vmem:[%s3 + $0x1a8] sm:$0xff]
    %v2575 = vld [vmem:[%s3 + $0x1b0] sm:$0xff]
    %v2576 = vld [vmem:[%s3 + $0x1b8] sm:$0xff]
    %v2577 = vld [vmem:[%s3 + $0x1c0] sm:$0xff]
    %v2578 = vld [vmem:[%s3 + $0x1c8] sm:$0xff]
    %v2579 = vld [vmem:[%s3 + $0x1d0] sm:$0xff]
    %v2580 = vld [vmem:[%s3 + $0x1d8] sm:$0xff]
    %v2581 = vld [vmem:[%s3 + $0x1e0] sm:$0xff]
    %v2582 = vld [vmem:[%s3 + $0x1e8] sm:$0xff]
    %v2583 = vld [vmem:[%s3 + $0x1f0] sm:$0xff]
    %v2584 = vld [vmem:[%s3 + $0x1f8] sm:$0xff]
    %v2649 = vunpack.c.l.b16 %v2521
    %v2650 = vunpack.c.h.b16 %v2521
    %v2651 = vunpack.c.l.b16 %v2522
    %v2652 = vunpack.c.h.b16 %v2522
    %v2653 = vunpack.c.l.b16 %v2523
    %v2654 = vunpack.c.h.b16 %v2523
    %v2655 = vunpack.c.l.b16 %v2524
    %v2656 = vunpack.c.h.b16 %v2524
    %v2657 = vunpack.c.l.b16 %v2525
    %v2658 = vunpack.c.h.b16 %v2525
    %v2659 = vunpack.c.l.b16 %v2526
    %v2660 = vunpack.c.h.b16 %v2526
    %v2661 = vunpack.c.l.b16 %v2527
    %v2662 = vunpack.c.h.b16 %v2527
    %v2663 = vunpack.c.l.b16 %v2528
    %v2664 = vunpack.c.h.b16 %v2528
    %v2665 = vunpack.c.l.b16 %v2529
    %v2666 = vunpack.c.h.b16 %v2529
    %v2667 = vunpack.c.l.b16 %v2530
    %v2668 = vunpack.c.h.b16 %v2530
    %v2669 = vunpack.c.l.b16 %v2531
    %v2670 = vunpack.c.h.b16 %v2531
    %v2671 = vunpack.c.l.b16 %v2532
    %v2672 = vunpack.c.h.b16 %v2532
    %v2673 = vunpack.c.l.b16 %v2533
    %v2674 = vunpack.c.h.b16 %v2533
    %v2675 = vunpack.c.l.b16 %v2534
    %v2676 = vunpack.c.h.b16 %v2534
    %v2677 = vunpack.c.l.b16 %v2535
    %v2678 = vunpack.c.h.b16 %v2535
    %v2679 = vunpack.c.l.b16 %v2536
    %v2680 = vunpack.c.h.b16 %v2536
    %v2681 = vunpack.c.l.b16 %v2537
    %v2682 = vunpack.c.h.b16 %v2537
    %v2683 = vunpack.c.l.b16 %v2538
    %v2684 = vunpack.c.h.b16 %v2538
    %v2685 = vunpack.c.l.b16 %v2539
    %v2686 = vunpack.c.h.b16 %v2539
    %v2687 = vunpack.c.l.b16 %v2540
    %v2688 = vunpack.c.h.b16 %v2540
    %v2689 = vunpack.c.l.b16 %v2541
    %v2690 = vunpack.c.h.b16 %v2541
    %v2691 = vunpack.c.l.b16 %v2542
    %v2692 = vunpack.c.h.b16 %v2542
    %v2693 = vunpack.c.l.b16 %v2543
    %v2694 = vunpack.c.h.b16 %v2543
    %v2695 = vunpack.c.l.b16 %v2544
    %v2696 = vunpack.c.h.b16 %v2544
    %v2697 = vunpack.c.l.b16 %v2545
    %v2698 = vunpack.c.h.b16 %v2545
    %v2699 = vunpack.c.l.b16 %v2546
    %v2700 = vunpack.c.h.b16 %v2546
    %v2701 = vunpack.c.l.b16 %v2547
    %v2702 = vunpack.c.h.b16 %v2547
    %v2703 = vunpack.c.l.b16 %v2548
    %v2704 = vunpack.c.h.b16 %v2548
    %v2705 = vunpack.c.l.b16 %v2549
    %v2706 = vunpack.c.h.b16 %v2549
    %v2707 = vunpack.c.l.b16 %v2550
    %v2708 = vunpack.c.h.b16 %v2550
    %v2709 = vunpack.c.l.b16 %v2551
    %v2710 = vunpack.c.h.b16 %v2551
    %v2711 = vunpack.c.l.b16 %v2552
    %v2712 = vunpack.c.h.b16 %v2552
    %v2713 = vunpack.c.l.b16 %v2553
    %v2714 = vunpack.c.h.b16 %v2553
    %v2715 = vunpack.c.l.b16 %v2554
    %v2716 = vunpack.c.h.b16 %v2554
    %v2717 = vunpack.c.l.b16 %v2555
    %v2718 = vunpack.c.h.b16 %v2555
    %v2719 = vunpack.c.l.b16 %v2556
    %v2720 = vunpack.c.h.b16 %v2556
    %v2721 = vunpack.c.l.b16 %v2557
    %v2722 = vunpack.c.h.b16 %v2557
    %v2723 = vunpack.c.l.b16 %v2558
    %v2724 = vunpack.c.h.b16 %v2558
    %v2725 = vunpack.c.l.b16 %v2559
    %v2726 = vunpack.c.h.b16 %v2559
    %v2727 = vunpack.c.l.b16 %v2560
    %v2728 = vunpack.c.h.b16 %v2560
    %v2729 = vunpack.c.l.b16 %v2561
    %v2730 = vunpack.c.h.b16 %v2561
    %v2731 = vunpack.c.l.b16 %v2562
    %v2732 = vunpack.c.h.b16 %v2562
    %v2733 = vunpack.c.l.b16 %v2563
    %v2734 = vunpack.c.h.b16 %v2563
    %v2735 = vunpack.c.l.b16 %v2564
    %v2736 = vunpack.c.h.b16 %v2564
    %v2737 = vunpack.c.l.b16 %v2565
    %v2738 = vunpack.c.h.b16 %v2565
    %v2739 = vunpack.c.l.b16 %v2566
    %v2740 = vunpack.c.h.b16 %v2566
    %v2741 = vunpack.c.l.b16 %v2567
    %v2742 = vunpack.c.h.b16 %v2567
    %v2743 = vunpack.c.l.b16 %v2568
    %v2744 = vunpack.c.h.b16 %v2568
    %v2745 = vunpack.c.l.b16 %v2569
    %v2746 = vunpack.c.h.b16 %v2569
    %v2747 = vunpack.c.l.b16 %v2570
    %v2748 = vunpack.c.h.b16 %v2570
    %v2749 = vunpack.c.l.b16 %v2571
    %v2750 = vunpack.c.h.b16 %v2571
    %v2751 = vunpack.c.l.b16 %v2572
    %v2752 = vunpack.c.h.b16 %v2572
    %v2753 = vunpack.c.l.b16 %v2573
    %v2754 = vunpack.c.h.b16 %v2573
    %v2755 = vunpack.c.l.b16 %v2574
    %v2756 = vunpack.c.h.b16 %v2574
    %v2757 = vunpack.c.l.b16 %v2575
    %v2758 = vunpack.c.h.b16 %v2575
    %v2759 = vunpack.c.l.b16 %v2576
    %v2760 = vunpack.c.h.b16 %v2576
    %v2761 = vunpack.c.l.b16 %v2577
    %v2762 = vunpack.c.h.b16 %v2577
    %v2763 = vunpack.c.l.b16 %v2578
    %v2764 = vunpack.c.h.b16 %v2578
    %v2765 = vunpack.c.l.b16 %v2579
    %v2766 = vunpack.c.h.b16 %v2579
    %v2767 = vunpack.c.l.b16 %v2580
    %v2768 = vunpack.c.h.b16 %v2580
    %v2769 = vunpack.c.l.b16 %v2581
    %v2770 = vunpack.c.h.b16 %v2581
    %v2771 = vunpack.c.l.b16 %v2582
    %v2772 = vunpack.c.h.b16 %v2582
    %v2773 = vunpack.c.l.b16 %v2583
    %v2774 = vunpack.c.h.b16 %v2583
    %v2775 = vunpack.c.l.b16 %v2584
    %v2776 = vunpack.c.h.b16 %v2584
    %v2777 = vpack.c.b16 %v2651, %v2649
    %v2778 = vpack.c.b16 %v2652, %v2650
    %v2779 = vpack.c.b16 %v2655, %v2653
    %v2780 = vpack.c.b16 %v2656, %v2654
    %v2781 = vpack.c.b16 %v2659, %v2657
    %v2782 = vpack.c.b16 %v2660, %v2658
    %v2783 = vpack.c.b16 %v2663, %v2661
    %v2784 = vpack.c.b16 %v2664, %v2662
    %v2785 = vpack.c.b16 %v2667, %v2665
    %v2786 = vpack.c.b16 %v2668, %v2666
    %v2787 = vpack.c.b16 %v2671, %v2669
    %v2788 = vpack.c.b16 %v2672, %v2670
    %v2789 = vpack.c.b16 %v2675, %v2673
    %v2790 = vpack.c.b16 %v2676, %v2674
    %v2791 = vpack.c.b16 %v2679, %v2677
    %v2792 = vpack.c.b16 %v2680, %v2678
    %v2793 = vpack.c.b16 %v2683, %v2681
    %v2794 = vpack.c.b16 %v2684, %v2682
    %v2795 = vpack.c.b16 %v2687, %v2685
    %v2796 = vpack.c.b16 %v2688, %v2686
    %v2797 = vpack.c.b16 %v2691, %v2689
    %v2798 = vpack.c.b16 %v2692, %v2690
    %v2799 = vpack.c.b16 %v2695, %v2693
    %v2800 = vpack.c.b16 %v2696, %v2694
    %v2801 = vpack.c.b16 %v2699, %v2697
    %v2802 = vpack.c.b16 %v2700, %v2698
    %v2803 = vpack.c.b16 %v2703, %v2701
    %v2804 = vpack.c.b16 %v2704, %v2702
    %v2805 = vpack.c.b16 %v2707, %v2705
    %v2806 = vpack.c.b16 %v2708, %v2706
    %v2807 = vpack.c.b16 %v2711, %v2709
    %v2808 = vpack.c.b16 %v2712, %v2710
    %v2809 = vpack.c.b16 %v2715, %v2713
    %v2810 = vpack.c.b16 %v2716, %v2714
    %v2811 = vpack.c.b16 %v2719, %v2717
    %v2812 = vpack.c.b16 %v2720, %v2718
    %v2813 = vpack.c.b16 %v2723, %v2721
    %v2814 = vpack.c.b16 %v2724, %v2722
    %v2815 = vpack.c.b16 %v2727, %v2725
    %v2816 = vpack.c.b16 %v2728, %v2726
    %v2817 = vpack.c.b16 %v2731, %v2729
    %v2818 = vpack.c.b16 %v2732, %v2730
    %v2819 = vpack.c.b16 %v2735, %v2733
    %v2820 = vpack.c.b16 %v2736, %v2734
    %v2821 = vpack.c.b16 %v2739, %v2737
    %v2822 = vpack.c.b16 %v2740, %v2738
    %v2823 = vpack.c.b16 %v2743, %v2741
    %v2824 = vpack.c.b16 %v2744, %v2742
    %v2825 = vpack.c.b16 %v2747, %v2745
    %v2826 = vpack.c.b16 %v2748, %v2746
    %v2827 = vpack.c.b16 %v2751, %v2749
    %v2828 = vpack.c.b16 %v2752, %v2750
    %v2829 = vpack.c.b16 %v2755, %v2753
    %v2830 = vpack.c.b16 %v2756, %v2754
    %v2831 = vpack.c.b16 %v2759, %v2757
    %v2832 = vpack.c.b16 %v2760, %v2758
    %v2833 = vpack.c.b16 %v2763, %v2761
    %v2834 = vpack.c.b16 %v2764, %v2762
    %v2835 = vpack.c.b16 %v2767, %v2765
    %v2836 = vpack.c.b16 %v2768, %v2766
    %v2837 = vpack.c.b16 %v2771, %v2769
    %v2838 = vpack.c.b16 %v2772, %v2770
    %v2839 = vpack.c.b16 %v2775, %v2773
    %v2840 = vpack.c.b16 %v2776, %v2774
    %2905 = vmatprep.subr.bf16.mxu0 %v2778
    %2906 = vmatpush1.bf16.msra.mxu0 %v2777
    %2907 = vmatprep.subr.bf16.mxu0 %v2780
    %2908 = vmatpush1.bf16.msra.mxu0 %v2779
    %2909 = vmatprep.subr.bf16.mxu0 %v2782
    %2910 = vmatpush1.bf16.msra.mxu0 %v2781
    %2911 = vmatprep.subr.bf16.mxu0 %v2784
    %2912 = vmatpush1.bf16.msra.mxu0 %v2783
    %2913 = vmatprep.subr.bf16.mxu0 %v2786
    %2914 = vmatpush1.bf16.msra.mxu0 %v2785
    %2915 = vmatprep.subr.bf16.mxu0 %v2788
    %2916 = vmatpush1.bf16.msra.mxu0 %v2787
    %2917 = vmatprep.subr.bf16.mxu0 %v2790
    %2918 = vmatpush1.bf16.msra.mxu0 %v2789
    %2919 = vmatprep.subr.bf16.mxu0 %v2792
    %2920 = vmatpush1.bf16.msra.mxu0 %v2791
    %2921 = vmatprep.subr.bf16.mxu0 %v2794
    %2922 = vmatpush1.bf16.msra.mxu0 %v2793
    %2923 = vmatprep.subr.bf16.mxu0 %v2796
    %2924 = vmatpush1.bf16.msra.mxu0 %v2795
    %2925 = vmatprep.subr.bf16.mxu0 %v2798
    %2926 = vmatpush1.bf16.msra.mxu0 %v2797
    %2927 = vmatprep.subr.bf16.mxu0 %v2800
    %2928 = vmatpush1.bf16.msra.mxu0 %v2799
    %2929 = vmatprep.subr.bf16.mxu0 %v2802
    %2930 = vmatpush1.bf16.msra.mxu0 %v2801
    %2931 = vmatprep.subr.bf16.mxu0 %v2804
    %2932 = vmatpush1.bf16.msra.mxu0 %v2803
    %2933 = vmatprep.subr.bf16.mxu0 %v2806
    %2934 = vmatpush1.bf16.msra.mxu0 %v2805
    %2935 = vmatprep.subr.bf16.mxu0 %v2808
    %2936 = vmatpush1.bf16.msra.mxu0 %v2807
    %2937 = vmatprep.mubr.bf16.mxu0 %v2458
    %2938 = vmatmul.mubr.bf16.gmra.mrb[0].mxu0 %v2457
    %v2939 = vpop.f32.mrb[0].mxu0
    %v2940 = vadd.f32 0.0, %v2939
    %v2941 = vpop.f32.mrb[0].mxu0
    %v2942 = vadd.f32 0.0, %v2941
    %v2943 = vpop.f32.mrb[0].mxu0
    %v2944 = vadd.f32 0.0, %v2943
    %v2945 = vpop.f32.mrb[0].mxu0
    %v2946 = vadd.f32 0.0, %v2945
    %2947 = vmatprep.mubr.bf16.mxu0 %v2462
    %2948 = vmatmul.mubr.bf16.gmra.mrb[0].mxu0 %v2461
    %v2949 = vpop.f32.mrb[0].mxu0
    %v2950 = vadd.f32 0.0, %v2949
    %v2951 = vpop.f32.mrb[0].mxu0
    %v2952 = vadd.f32 0.0, %v2951
    %v2953 = vpop.f32.mrb[0].mxu0
    %v2954 = vadd.f32 0.0, %v2953
    %v2955 = vpop.f32.mrb[0].mxu0
    %v2956 = vadd.f32 0.0, %v2955
    %2957 = vmatprep.mubr.bf16.mxu0 %v2466
    %2958 = vmatmul.mubr.bf16.gmra.mrb[0].mxu0 %v2465
    %v2959 = vpop.f32.mrb[0].mxu0
    %v2960 = vadd.f32 0.0, %v2959
    %v2961 = vpop.f32.mrb[0].mxu0
    %v2962 = vadd.f32 0.0, %v2961
    %v2963 = vpop.f32.mrb[0].mxu0
    %v2964 = vadd.f32 0.0, %v2963
    %v2965 = vpop.f32.mrb[0].mxu0
    %v2966 = vadd.f32 0.0, %v2965
    %2967 = vmatprep.mubr.bf16.mxu0 %v2470
    %2968 = vmatmul.mubr.bf16.gmra.mrb[0].mxu0 %v2469
    %v2969 = vpop.f32.mrb[0].mxu0
    %v2970 = vadd.f32 0.0, %v2969
    %v2971 = vpop.f32.mrb[0].mxu0
    %v2972 = vadd.f32 0.0, %v2971
    %v2973 = vpop.f32.mrb[0].mxu0
    %v2974 = vadd.f32 0.0, %v2973
    %v2975 = vpop.f32.mrb[0].mxu0
    %v2976 = vadd.f32 0.0, %v2975
    %2977 = vmatprep.mubr.bf16.mxu0 %v2474
    %2978 = vmatmul.mubr.bf16.gmra.mrb[0].mxu0 %v2473
    %v2979 = vpop.f32.mrb[0].mxu0
    %v2980 = vadd.f32 0.0, %v2979
    %v2981 = vpop.f32.mrb[0].mxu0
    %v2982 = vadd.f32 0.0, %v2981
    %v2983 = vpop.f32.mrb[0].mxu0
    %v2984 = vadd.f32 0.0, %v2983
    %v2985 = vpop.f32.mrb[0].mxu0
    %v2986 = vadd.f32 0.0, %v2985
    %2987 = vmatprep.mubr.bf16.mxu0 %v2478
    %2988 = vmatmul.mubr.bf16.gmra.mrb[0].mxu0 %v2477
    %v2989 = vpop.f32.mrb[0].mxu0
    %v2990 = vadd.f32 0.0, %v2989
    %v2991 = vpop.f32.mrb[0].mxu0
    %v2992 = vadd.f32 0.0, %v2991
    %v2993 = vpop.f32.mrb[0].mxu0
    %v2994 = vadd.f32 0.0, %v2993
    %v2995 = vpop.f32.mrb[0].mxu0
    %v2996 = vadd.f32 0.0, %v2995
    %2997 = vmatprep.mubr.bf16.mxu0 %v2482
    %2998 = vmatmul.mubr.bf16.gmra.mrb[0].mxu0 %v2481
    %v2999 = vpop.f32.mrb[0].mxu0
    %v3000 = vadd.f32 0.0, %v2999
    %v3001 = vpop.f32.mrb[0].mxu0
    %v3002 = vadd.f32 0.0, %v3001
    %v3003 = vpop.f32.mrb[0].mxu0
    %v3004 = vadd.f32 0.0, %v3003
    %v3005 = vpop.f32.mrb[0].mxu0
    %v3006 = vadd.f32 0.0, %v3005
    %3007 = vmatprep.mubr.bf16.mxu0 %v2486
    %3008 = vmatmul.mubr.bf16.gmra.mrb[0].mxu0 %v2485
    %v3009 = vpop.f32.mrb[0].mxu0
    %v3010 = vadd.f32 0.0, %v3009
    %v3011 = vpop.f32.mrb[0].mxu0
    %v3012 = vadd.f32 0.0, %v3011
    %v3013 = vpop.f32.mrb[0].mxu0
    %v3014 = vadd.f32 0.0, %v3013
    %v3015 = vpop.f32.mrb[0].mxu0
    %v3016 = vadd.f32 0.0, %v3015
    %3017 = vmatprep.mubr.bf16.mxu0 %v2490
    %3018 = vmatmul.mubr.bf16.gmra.mrb[0].mxu0 %v2489
    %v3019 = vpop.f32.mrb[0].mxu0
    %v3020 = vadd.f32 0.0, %v3019
    %v3021 = vpop.f32.mrb[0].mxu0
    %v3022 = vadd.f32 0.0, %v3021
    %v3023 = vpop.f32.mrb[0].mxu0
    %v3024 = vadd.f32 0.0, %v3023
    %v3025 = vpop.f32.mrb[0].mxu0
    %v3026 = vadd.f32 0.0, %v3025
    %3027 = vmatprep.mubr.bf16.mxu0 %v2494
    %3028 = vmatmul.mubr.bf16.gmra.mrb[0].mxu0 %v2493
    %v3029 = vpop.f32.mrb[0].mxu0
    %v3030 = vadd.f32 0.0, %v3029
    %v3031 = vpop.f32.mrb[0].mxu0
    %v3032 = vadd.f32 0.0, %v3031
    %v3033 = vpop.f32.mrb[0].mxu0
    %v3034 = vadd.f32 0.0, %v3033
    %v3035 = vpop.f32.mrb[0].mxu0
    %v3036 = vadd.f32 0.0, %v3035
    %3037 = vmatprep.mubr.bf16.mxu0 %v2498
    %3038 = vmatmul.mubr.bf16.gmra.mrb[0].mxu0 %v2497
    %v3039 = vpop.f32.mrb[0].mxu0
    %v3040 = vadd.f32 0.0, %v3039
    %v3041 = vpop.f32.mrb[0].mxu0
    %v3042 = vadd.f32 0.0, %v3041
    %v3043 = vpop.f32.mrb[0].mxu0
    %v3044 = vadd.f32 0.0, %v3043
    %v3045 = vpop.f32.mrb[0].mxu0
    %v3046 = vadd.f32 0.0, %v3045
    %3047 = vmatprep.mubr.bf16.mxu0 %v2502
    %3048 = vmatmul.mubr.bf16.gmra.mrb[0].mxu0 %v2501
    %v3049 = vpop.f32.mrb[0].mxu0
    %v3050 = vadd.f32 0.0, %v3049
    %v3051 = vpop.f32.mrb[0].mxu0
    %v3052 = vadd.f32 0.0, %v3051
    %v3053 = vpop.f32.mrb[0].mxu0
    %v3054 = vadd.f32 0.0, %v3053
    %v3055 = vpop.f32.mrb[0].mxu0
    %v3056 = vadd.f32 0.0, %v3055
    %3057 = vmatprep.mubr.bf16.mxu0 %v2506
    %3058 = vmatmul.mubr.bf16.gmra.mrb[0].mxu0 %v2505
    %v3059 = vpop.f32.mrb[0].mxu0
    %v3060 = vadd.f32 0.0, %v3059
    %v3061 = vpop.f32.mrb[0].mxu0
    %v3062 = vadd.f32 0.0, %v3061
    %v3063 = vpop.f32.mrb[0].mxu0
    %v3064 = vadd.f32 0.0, %v3063
    %v3065 = vpop.f32.mrb[0].mxu0
    %v3066 = vadd.f32 0.0, %v3065
    %3067 = vmatprep.mubr.bf16.mxu0 %v2510
    %3068 = vmatmul.mubr.bf16.gmra.mrb[0].mxu0 %v2509
    %v3069 = vpop.f32.mrb[0].mxu0
    %v3070 = vadd.f32 0.0, %v3069
    %v3071 = vpop.f32.mrb[0].mxu0
    %v3072 = vadd.f32 0.0, %v3071
    %v3073 = vpop.f32.mrb[0].mxu0
    %v3074 = vadd.f32 0.0, %v3073
    %v3075 = vpop.f32.mrb[0].mxu0
    %v3076 = vadd.f32 0.0, %v3075
    %3077 = vmatprep.mubr.bf16.mxu0 %v2514
    %3078 = vmatmul.mubr.bf16.gmra.mrb[0].mxu0 %v2513
    %v3079 = vpop.f32.mrb[0].mxu0
    %v3080 = vadd.f32 0.0, %v3079
    %v3081 = vpop.f32.mrb[0].mxu0
    %v3082 = vadd.f32 0.0, %v3081
    %v3083 = vpop.f32.mrb[0].mxu0
    %v3084 = vadd.f32 0.0, %v3083
    %v3085 = vpop.f32.mrb[0].mxu0
    %v3086 = vadd.f32 0.0, %v3085
    %3087 = vmatprep.mubr.bf16.mxu0 %v2518
    %3088 = vmatmul.mubr.bf16.gmra.mrb[0].mxu0 %v2517
    %v3089 = vpop.f32.mrb[0].mxu0
    %v3090 = vadd.f32 0.0, %v3089
    %v3091 = vpop.f32.mrb[0].mxu0
    %v3092 = vadd.f32 0.0, %v3091
    %v3093 = vpop.f32.mrb[0].mxu0
    %v3094 = vadd.f32 0.0, %v3093
    %v3095 = vpop.f32.mrb[0].mxu0
    %v3096 = vadd.f32 0.0, %v3095
    %3097 = vdwg.mxu0
    %3098 = vmatprep.subr.bf16.mxu0 %v2810
    %3099 = vmatpush1.bf16.msra.mxu0 %v2809
    %3100 = vmatprep.subr.bf16.mxu0 %v2812
    %3101 = vmatpush1.bf16.msra.mxu0 %v2811
    %3102 = vmatprep.subr.bf16.mxu0 %v2814
    %3103 = vmatpush1.bf16.msra.mxu0 %v2813
    %3104 = vmatprep.subr.bf16.mxu0 %v2816
    %3105 = vmatpush1.bf16.msra.mxu0 %v2815
    %3106 = vmatprep.subr.bf16.mxu0 %v2818
    %3107 = vmatpush1.bf16.msra.mxu0 %v2817
    %3108 = vmatprep.subr.bf16.mxu0 %v2820
    %3109 = vmatpush1.bf16.msra.mxu0 %v2819
    %3110 = vmatprep.subr.bf16.mxu0 %v2822
    %3111 = vmatpush1.bf16.msra.mxu0 %v2821
    %3112 = vmatprep.subr.bf16.mxu0 %v2824
    %3113 = vmatpush1.bf16.msra.mxu0 %v2823
    %3114 = vmatprep.subr.bf16.mxu0 %v2826
    %3115 = vmatpush1.bf16.msra.mxu0 %v2825
    %3116 = vmatprep.subr.bf16.mxu0 %v2828
    %3117 = vmatpush1.bf16.msra.mxu0 %v2827
    %3118 = vmatprep.subr.bf16.mxu0 %v2830
    %3119 = vmatpush1.bf16.msra.mxu0 %v2829
    %3120 = vmatprep.subr.bf16.mxu0 %v2832
    %3121 = vmatpush1.bf16.msra.mxu0 %v2831
    %3122 = vmatprep.subr.bf16.mxu0 %v2834
    %3123 = vmatpush1.bf16.msra.mxu0 %v2833
    %3124 = vmatprep.subr.bf16.mxu0 %v2836
    %3125 = vmatpush1.bf16.msra.mxu0 %v2835
    %3126 = vmatprep.subr.bf16.mxu0 %v2838
    %3127 = vmatpush1.bf16.msra.mxu0 %v2837
    %3128 = vmatprep.subr.bf16.mxu0 %v2840
    %3129 = vmatpush1.bf16.msra.mxu0 %v2839
    %3130 = vmatprep.mubr.bf16.mxu0 %v2460
    %3131 = vmatmul.mubr.bf16.gmra.mrb[0].mxu0 %v2459
    %v3132 = vpop.f32.mrb[0].mxu0
    %v3133 = vadd.f32 %v2940, %v3132
    %v3134 = vpop.f32.mrb[0].mxu0
    %v3135 = vadd.f32 %v2942, %v3134
    %v3136 = vpop.f32.mrb[0].mxu0
    %v3137 = vadd.f32 %v2944, %v3136
    %v3138 = vpop.f32.mrb[0].mxu0
    %v3139 = vadd.f32 %v2946, %v3138
    %3140 = vmatprep.mubr.bf16.mxu0 %v2464
    %3141 = vmatmul.mubr.bf16.gmra.mrb[0].mxu0 %v2463
    %v3142 = vpop.f32.mrb[0].mxu0
    %v3143 = vadd.f32 %v2950, %v3142
    %v3144 = vpop.f32.mrb[0].mxu0
    %v3145 = vadd.f32 %v2952, %v3144
    %v3146 = vpop.f32.mrb[0].mxu0
    %v3147 = vadd.f32 %v2954, %v3146
    %v3148 = vpop.f32.mrb[0].mxu0
    %v3149 = vadd.f32 %v2956, %v3148
    %3150 = vmatprep.mubr.bf16.mxu0 %v2468
    %3151 = vmatmul.mubr.bf16.gmra.mrb[0].mxu0 %v2467
    %v3152 = vpop.f32.mrb[0].mxu0
    %v3153 = vadd.f32 %v2960, %v3152
    %v3154 = vpop.f32.mrb[0].mxu0
    %v3155 = vadd.f32 %v2962, %v3154
    %v3156 = vpop.f32.mrb[0].mxu0
    %v3157 = vadd.f32 %v2964, %v3156
    %v3158 = vpop.f32.mrb[0].mxu0
    %v3159 = vadd.f32 %v2966, %v3158
    %3160 = vmatprep.mubr.bf16.mxu0 %v2472
    %3161 = vmatmul.mubr.bf16.gmra.mrb[0].mxu0 %v2471
    %v3162 = vpop.f32.mrb[0].mxu0
    %v3163 = vadd.f32 %v2970, %v3162
    %v3164 = vpop.f32.mrb[0].mxu0
    %v3165 = vadd.f32 %v2972, %v3164
    %v3166 = vpop.f32.mrb[0].mxu0
    %v3167 = vadd.f32 %v2974, %v3166
    %v3168 = vpop.f32.mrb[0].mxu0
    %v3169 = vadd.f32 %v2976, %v3168
    %3170 = vmatprep.mubr.bf16.mxu0 %v2476
    %3171 = vmatmul.mubr.bf16.gmra.mrb[0].mxu0 %v2475
    %v3172 = vpop.f32.mrb[0].mxu0
    %v3173 = vadd.f32 %v2980, %v3172
    %v3174 = vpop.f32.mrb[0].mxu0
    %v3175 = vadd.f32 %v2982, %v3174
    %v3176 = vpop.f32.mrb[0].mxu0
    %v3177 = vadd.f32 %v2984, %v3176
    %v3178 = vpop.f32.mrb[0].mxu0
    %v3179 = vadd.f32 %v2986, %v3178
    %3180 = vmatprep.mubr.bf16.mxu0 %v2480
    %3181 = vmatmul.mubr.bf16.gmra.mrb[0].mxu0 %v2479
    %v3182 = vpop.f32.mrb[0].mxu0
    %v3183 = vadd.f32 %v2990, %v3182
    %v3184 = vpop.f32.mrb[0].mxu0
    %v3185 = vadd.f32 %v2992, %v3184
    %v3186 = vpop.f32.mrb[0].mxu0
    %v3187 = vadd.f32 %v2994, %v3186
    %v3188 = vpop.f32.mrb[0].mxu0
    %v3189 = vadd.f32 %v2996, %v3188
    %3190 = vmatprep.mubr.bf16.mxu0 %v2484
    %3191 = vmatmul.mubr.bf16.gmra.mrb[0].mxu0 %v2483
    %v3192 = vpop.f32.mrb[0].mxu0
    %v3193 = vadd.f32 %v3000, %v3192
    %v3194 = vpop.f32.mrb[0].mxu0
    %v3195 = vadd.f32 %v3002, %v3194
    %v3196 = vpop.f32.mrb[0].mxu0
    %v3197 = vadd.f32 %v3004, %v3196
    %v3198 = vpop.f32.mrb[0].mxu0
    %v3199 = vadd.f32 %v3006, %v3198
    %3200 = vmatprep.mubr.bf16.mxu0 %v2488
    %3201 = vmatmul.mubr.bf16.gmra.mrb[0].mxu0 %v2487
    %v3202 = vpop.f32.mrb[0].mxu0
    %v3203 = vadd.f32 %v3010, %v3202
    %v3204 = vpop.f32.mrb[0].mxu0
    %v3205 = vadd.f32 %v3012, %v3204
    %v3206 = vpop.f32.mrb[0].mxu0
    %v3207 = vadd.f32 %v3014, %v3206
    %v3208 = vpop.f32.mrb[0].mxu0
    %v3209 = vadd.f32 %v3016, %v3208
    %3210 = vmatprep.mubr.bf16.mxu0 %v2492
    %3211 = vmatmul.mubr.bf16.gmra.mrb[0].mxu0 %v2491
    %v3212 = vpop.f32.mrb[0].mxu0
    %v3213 = vadd.f32 %v3020, %v3212
    %v3214 = vpop.f32.mrb[0].mxu0
    %v3215 = vadd.f32 %v3022, %v3214
    %v3216 = vpop.f32.mrb[0].mxu0
    %v3217 = vadd.f32 %v3024, %v3216
    %v3218 = vpop.f32.mrb[0].mxu0
    %v3219 = vadd.f32 %v3026, %v3218
    %3220 = vmatprep.mubr.bf16.mxu0 %v2496
    %3221 = vmatmul.mubr.bf16.gmra.mrb[0].mxu0 %v2495
    %v3222 = vpop.f32.mrb[0].mxu0
    %v3223 = vadd.f32 %v3030, %v3222
    %v3224 = vpop.f32.mrb[0].mxu0
    %v3225 = vadd.f32 %v3032, %v3224
    %v3226 = vpop.f32.mrb[0].mxu0
    %v3227 = vadd.f32 %v3034, %v3226
    %v3228 = vpop.f32.mrb[0].mxu0
    %v3229 = vadd.f32 %v3036, %v3228
    %3230 = vmatprep.mubr.bf16.mxu0 %v2500
    %3231 = vmatmul.mubr.bf16.gmra.mrb[0].mxu0 %v2499
    %v3232 = vpop.f32.mrb[0].mxu0
    %v3233 = vadd.f32 %v3040, %v3232
    %v3234 = vpop.f32.mrb[0].mxu0
    %v3235 = vadd.f32 %v3042, %v3234
    %v3236 = vpop.f32.mrb[0].mxu0
    %v3237 = vadd.f32 %v3044, %v3236
    %v3238 = vpop.f32.mrb[0].mxu0
    %v3239 = vadd.f32 %v3046, %v3238
    %3240 = vmatprep.mubr.bf16.mxu0 %v2504
    %3241 = vmatmul.mubr.bf16.gmra.mrb[0].mxu0 %v2503
    %v3242 = vpop.f32.mrb[0].mxu0
    %v3243 = vadd.f32 %v3050, %v3242
    %v3244 = vpop.f32.mrb[0].mxu0
    %v3245 = vadd.f32 %v3052, %v3244
    %v3246 = vpop.f32.mrb[0].mxu0
    %v3247 = vadd.f32 %v3054, %v3246
    %v3248 = vpop.f32.mrb[0].mxu0
    %v3249 = vadd.f32 %v3056, %v3248
    %3250 = vmatprep.mubr.bf16.mxu0 %v2508
    %3251 = vmatmul.mubr.bf16.gmra.mrb[0].mxu0 %v2507
    %v3252 = vpop.f32.mrb[0].mxu0
    %v3253 = vadd.f32 %v3060, %v3252
    %v3254 = vpop.f32.mrb[0].mxu0
    %v3255 = vadd.f32 %v3062, %v3254
    %v3256 = vpop.f32.mrb[0].mxu0
    %v3257 = vadd.f32 %v3064, %v3256
    %v3258 = vpop.f32.mrb[0].mxu0
    %v3259 = vadd.f32 %v3066, %v3258
    %3260 = vmatprep.mubr.bf16.mxu0 %v2512
    %3261 = vmatmul.mubr.bf16.gmra.mrb[0].mxu0 %v2511
    %v3262 = vpop.f32.mrb[0].mxu0
    %v3263 = vadd.f32 %v3070, %v3262
    %v3264 = vpop.f32.mrb[0].mxu0
    %v3265 = vadd.f32 %v3072, %v3264
    %v3266 = vpop.f32.mrb[0].mxu0
    %v3267 = vadd.f32 %v3074, %v3266
    %v3268 = vpop.f32.mrb[0].mxu0
    %v3269 = vadd.f32 %v3076, %v3268
    %3270 = vmatprep.mubr.bf16.mxu0 %v2516
    %3271 = vmatmul.mubr.bf16.gmra.mrb[0].mxu0 %v2515
    %v3272 = vpop.f32.mrb[0].mxu0
    %v3273 = vadd.f32 %v3080, %v3272
    %v3274 = vpop.f32.mrb[0].mxu0
    %v3275 = vadd.f32 %v3082, %v3274
    %v3276 = vpop.f32.mrb[0].mxu0
    %v3277 = vadd.f32 %v3084, %v3276
    %v3278 = vpop.f32.mrb[0].mxu0
    %v3279 = vadd.f32 %v3086, %v3278
    %3280 = vmatprep.mubr.bf16.mxu0 %v2520
    %3281 = vmatmul.mubr.bf16.gmra.mrb[0].mxu0 %v2519
    %v3282 = vpop.f32.mrb[0].mxu0
    %v3283 = vadd.f32 %v3090, %v3282
    %v3284 = vpop.f32.mrb[0].mxu0
    %v3285 = vadd.f32 %v3092, %v3284
    %v3286 = vpop.f32.mrb[0].mxu0
    %v3287 = vadd.f32 %v3094, %v3286
    %v3288 = vpop.f32.mrb[0].mxu0
    %v3289 = vadd.f32 %v3096, %v3288
    %3290 = vdwg.mxu0
    %v3291 = vadd.f32 %v1015, %v3133
    %v3292 = vadd.f32 %v1016, %v3135
    %v3293 = vadd.f32 %v1017, %v3137
    %v3294 = vadd.f32 %v1018, %v3139
    %v3295 = vadd.f32 %v1019, %v3143
    %v3296 = vadd.f32 %v1020, %v3145
    %v3297 = vadd.f32 %v1021, %v3147
    %v3298 = vadd.f32 %v1022, %v3149
    %v3299 = vadd.f32 %v1023, %v3153
    %v3300 = vadd.f32 %v1024, %v3155
    %v3301 = vadd.f32 %v1025, %v3157
    %v3302 = vadd.f32 %v1026, %v3159
    %v3303 = vadd.f32 %v1027, %v3163
    %v3304 = vadd.f32 %v1028, %v3165
    %v3305 = vadd.f32 %v1029, %v3167
    %v3306 = vadd.f32 %v1030, %v3169
    %v3307 = vadd.f32 %v1031, %v3173
    %v3308 = vadd.f32 %v1032, %v3175
    %v3309 = vadd.f32 %v1033, %v3177
    %v3310 = vadd.f32 %v1034, %v3179
    %v3311 = vadd.f32 %v1035, %v3183
    %v3312 = vadd.f32 %v1036, %v3185
    %v3313 = vadd.f32 %v1037, %v3187
    %v3314 = vadd.f32 %v1038, %v3189
    %v3315 = vadd.f32 %v1039, %v3193
    %v3316 = vadd.f32 %v1040, %v3195
    %v3317 = vadd.f32 %v1041, %v3197
    %v3318 = vadd.f32 %v1042, %v3199
    %v3319 = vadd.f32 %v1043, %v3203
    %v3320 = vadd.f32 %v1044, %v3205
    %v3321 = vadd.f32 %v1045, %v3207
    %v3322 = vadd.f32 %v1046, %v3209
    %v3323 = vadd.f32 %v1047, %v3213
    %v3324 = vadd.f32 %v1048, %v3215
    %v3325 = vadd.f32 %v1049, %v3217
    %v3326 = vadd.f32 %v1050, %v3219
    %v3327 = vadd.f32 %v1051, %v3223
    %v3328 = vadd.f32 %v1052, %v3225
    %v3329 = vadd.f32 %v1053, %v3227
    %v3330 = vadd.f32 %v1054, %v3229
    %v3331 = vadd.f32 %v1055, %v3233
    %v3332 = vadd.f32 %v1056, %v3235
    %v3333 = vadd.f32 %v1057, %v3237
    %v3334 = vadd.f32 %v1058, %v3239
    %v3335 = vadd.f32 %v1059, %v3243
    %v3336 = vadd.f32 %v1060, %v3245
    %v3337 = vadd.f32 %v1061, %v3247
    %v3338 = vadd.f32 %v1062, %v3249
    %v3339 = vadd.f32 %v1063, %v3253
    %v3340 = vadd.f32 %v1064, %v3255
    %v3341 = vadd.f32 %v1065, %v3257
    %v3342 = vadd.f32 %v1066, %v3259
    %v3343 = vadd.f32 %v1067, %v3263
    %v3344 = vadd.f32 %v1068, %v3265
    %v3345 = vadd.f32 %v1069, %v3267
    %v3346 = vadd.f32 %v1070, %v3269
    %v3347 = vadd.f32 %v1071, %v3273
    %v3348 = vadd.f32 %v1072, %v3275
    %v3349 = vadd.f32 %v1073, %v3277
    %v3350 = vadd.f32 %v1074, %v3279
    %v3351 = vadd.f32 %v1075, %v3283
    %v3352 = vadd.f32 %v1076, %v3285
    %v3353 = vadd.f32 %v1077, %v3287
    %v3354 = vadd.f32 %v1078, %v3289
    %v3355 = vadd.f32 %v3291, %v3293
    %v3356 = vadd.f32 %v3355, %v3295
    %v3357 = vadd.f32 %v3356, %v3297
    %v3358 = vadd.f32 %v3357, %v3299
    %v3359 = vadd.f32 %v3358, %v3301
    %v3360 = vadd.f32 %v3359, %v3303
    %v3361 = vadd.f32 %v3360, %v3305
    %v3362 = vadd.f32 %v3361, %v3307
    %v3363 = vadd.f32 %v3362, %v3309
    %v3364 = vadd.f32 %v3363, %v3311
    %v3365 = vadd.f32 %v3364, %v3313
    %v3366 = vadd.f32 %v3365, %v3315
    %v3367 = vadd.f32 %v3366, %v3317
    %v3368 = vadd.f32 %v3367, %v3319
    %v3369 = vadd.f32 %v3368, %v3321
    %v3370 = vadd.f32 %v3369, %v3323
    %v3371 = vadd.f32 %v3370, %v3325
    %v3372 = vadd.f32 %v3371, %v3327
    %v3373 = vadd.f32 %v3372, %v3329
    %v3374 = vadd.f32 %v3373, %v3331
    %v3375 = vadd.f32 %v3374, %v3333
    %v3376 = vadd.f32 %v3375, %v3335
    %v3377 = vadd.f32 %v3376, %v3337
    %v3378 = vadd.f32 %v3377, %v3339
    %v3379 = vadd.f32 %v3378, %v3341
    %v3380 = vadd.f32 %v3379, %v3343
    %v3381 = vadd.f32 %v3380, %v3345
    %v3382 = vadd.f32 %v3381, %v3347
    %v3383 = vadd.f32 %v3382, %v3349
    %v3384 = vadd.f32 %v3383, %v3351
    %v3385 = vadd.f32 %v3384, %v3353
    %v3386 = vrot.slane %v3385, 4
    %v3387 = vadd.f32 %v3385, %v3386
    %v3388 = vrot.slane %v3387, 2
    %v3389 = vadd.f32 %v3387, %v3388
    %v3390 = vrot.slane %v3389, 1
    %v3391 = vadd.f32 %v3389, %v3390
    %v3392 = vadd.f32 %v3292, %v3294
    %v3393 = vadd.f32 %v3392, %v3296
    %v3394 = vadd.f32 %v3393, %v3298
    %v3395 = vadd.f32 %v3394, %v3300
    %v3396 = vadd.f32 %v3395, %v3302
    %v3397 = vadd.f32 %v3396, %v3304
    %v3398 = vadd.f32 %v3397, %v3306
    %v3399 = vadd.f32 %v3398, %v3308
    %v3400 = vadd.f32 %v3399, %v3310
    %v3401 = vadd.f32 %v3400, %v3312
    %v3402 = vadd.f32 %v3401, %v3314
    %v3403 = vadd.f32 %v3402, %v3316
    %v3404 = vadd.f32 %v3403, %v3318
    %v3405 = vadd.f32 %v3404, %v3320
    %v3406 = vadd.f32 %v3405, %v3322
    %v3407 = vadd.f32 %v3406, %v3324
    %v3408 = vadd.f32 %v3407, %v3326
    %v3409 = vadd.f32 %v3408, %v3328
    %v3410 = vadd.f32 %v3409, %v3330
    %v3411 = vadd.f32 %v3410, %v3332
    %v3412 = vadd.f32 %v3411, %v3334
    %v3413 = vadd.f32 %v3412, %v3336
    %v3414 = vadd.f32 %v3413, %v3338
    %v3415 = vadd.f32 %v3414, %v3340
    %v3416 = vadd.f32 %v3415, %v3342
    %v3417 = vadd.f32 %v3416, %v3344
    %v3418 = vadd.f32 %v3417, %v3346
    %v3419 = vadd.f32 %v3418, %v3348
    %v3420 = vadd.f32 %v3419, %v3350
    %v3421 = vadd.f32 %v3420, %v3352
    %v3422 = vadd.f32 %v3421, %v3354
    %v3423 = vrot.slane %v3422, 4
    %v3424 = vadd.f32 %v3422, %v3423
    %v3425 = vrot.slane %v3424, 2
    %v3426 = vadd.f32 %v3424, %v3425
    %v3427 = vrot.slane %v3426, 1
    %v3428 = vadd.f32 %v3426, %v3427
    %v3429 = vmul.f32 %v3391, 0.00390625
    %v3430 = vmul.f32 %v3428, 0.00390625
    %v3433 = vcombine.low %v3429, %v3430
    %v3435 = vunpack.c.l.s4 1966171168
    %v3436 = vunpack.c.0.s8 %v3435
    %v3437 = vlaneseq
    %v3438 = vshrl.u32 %v3437, 7
    %v3439 = vsub.s32 %v3436, %v3438
    %v3440 = vrot.slane %v3433, %v3439
    %v3442 = vunpack.c.l.s4 1966171168
    %v3443 = vunpack.c.0.s8 %v3442
    %v3444 = vlaneseq
    %v3445 = vshrl.u32 %v3444, 7
    %v3446 = vsub.s32 %v3443, %v3445
    %v3447 = vrot.slane %v3440, %v3446
    %v3449 = vlaneseq
    %vm3450 = vcmp.ge.s32.totalorder %v3449, 0
    %vm3451 = vcmp.lt.s32.totalorder %v3449, 256
    %vm3452 = vmand %vm3450, %vm3451
    %3453 = vst.msk [vmem:[#allocation2] sm:$0x3] %vm3452, %v3447
    // Predicated region
    $region18: #{wav2vec2_encoder_forward.1} parent=1 // pred_check
      _
    $region19: #{wav2vec2_encoder_forward.1} parent=1 // pred_check_branch
      %3455 = sbr.rel (0) target = $region21
    $region20: #{wav2vec2_encoder_forward.1} parent=1 // pred_region
      %s3457 = ssub.s32 32, 32
      %3458 = vsyncadd [#allocation3], %s3457
      %s3460 = sshll.u32 [#allocation2], 4
      %s3461 = int_to_ptr.vmem [resolvable:$true] %s3460
      %3463 = dma.vmem_to_hbm [thread:$0]  %s3461, 32, %s4, [#allocation3]
    $region21: #{wav2vec2_encoder_forward.1} parent=1 // pred_fallthru
      _
    // Predicated region
    $region22: #{wav2vec2_encoder_forward.1} parent=1 // pred_check
      _
    $region23: #{wav2vec2_encoder_forward.1} parent=1 // pred_check_branch
      %3465 = sbr.rel (0) target = $region25
    $region24: #{wav2vec2_encoder_forward.1} parent=1 // pred_region
      %3466 = dma.done [#allocation3], 32
    $region25: #{wav2vec2_encoder_forward.1} parent=1 // pred_fallthru
      _
    %3467 = vsyncpa [#allocation3], 1

</llo_original>
